<compile_context>
chip_gen: v6e
topology: v6e:2x2x1
jax: 0.10.0
libtpu: 0.0.40
codegen_flags: <defaults>
</compile_context>

<pallas_src>
import functools
import math

import jax
import jax.numpy as jnp
import numpy as np
from jax.experimental import pallas as pl
from jax.experimental.pallas import tpu as pltpu


DILATIONS = (1, 3, 5)


# ----------------------------------------------------------------------------
# Fixed (non-trainable) kaiser-windowed sinc low-pass filter used by BigVGAN's
# alias-free Activation1d (UpSample1d / DownSample1d, ratio=2, 12 taps).
# Baked into the kernel as compile-time Python float constants.
# ----------------------------------------------------------------------------
def _kaiser_sinc_filter1d(cutoff, half_width, kernel_size):
    even = kernel_size % 2 == 0
    half_size = kernel_size // 2
    delta_f = 4.0 * half_width
    A = 2.285 * (half_size - 1) * math.pi * delta_f + 7.95
    if A > 50.0:
        beta = 0.1102 * (A - 8.7)
    elif A >= 21.0:
        beta = 0.5842 * (A - 21.0) ** 0.4 + 0.07886 * (A - 21.0)
    else:
        beta = 0.0
    window = np.kaiser(kernel_size, beta)
    if even:
        time = np.arange(-half_size, half_size) + 0.5
    else:
        time = np.arange(kernel_size) - half_size
    filt = 2.0 * cutoff * window * np.sinc(2.0 * cutoff * time)
    filt = filt / filt.sum()
    return tuple(float(v) for v in filt)


_FIR_TAPS = _kaiser_sinc_filter1d(0.5 / 2, 0.6 / 2, 12)


# ----------------------------------------------------------------------------
# Fused Pallas kernel: all 3 residual layers, x stays resident in VMEM/vregs.
# ----------------------------------------------------------------------------
def _amp_block_kernel(x_ref, w1_ref, b1_ref, w2_ref, b2_ref, a1_ref, a2_ref,
                      o_ref, *, taps):
    x = x_ref[0]                                         # (C, T) f32
    C, T = x.shape
    lane = jax.lax.broadcasted_iota(jnp.int32, (C, T), 1)

    def shift(v, s, left, right):
        """out[:, t] = v[:, t+s] if 0 <= t+s < T, else left / right fill."""
        if s == 0:
            return v
        r = pltpu.roll(v, (-s) % T, 1)                   # XLU lane rotation
        if s > 0:
            return jnp.where(lane >= T - s, right, r)
        return jnp.where(lane < -s, left, r)

    def activation1d(v, alpha):
        """Alias-free Snake: polyphase 2x kaiser-sinc upsample -> snake ->
        anti-aliased stride-2 downsample. Every tensor stays (C, T)."""
        inv_a = 1.0 / (alpha + 1e-9)                     # hoisted reciprocal
        lft, rgt = v[:, :1], v[:, T - 1:]
        e = o = None                                     # even / odd 2x phases
        for s in range(-3, 4):                           # shared shifted views
            sv = shift(v, s, lft, rgt)
            if s <= 2:                                   # e[t] += 2*f[11-2p]*x[t+p-3]
                ce = 2.0 * taps[5 - 2 * s]
                e = ce * sv if e is None else e + ce * sv
            if s >= -2:                                  # o[t] += 2*f[10-2p]*x[t+p-2]
                co = 2.0 * taps[6 - 2 * s]
                o = co * sv if o is None else o + co * sv
        e = e + inv_a * jnp.square(jnp.sin(alpha * e))   # snake at the 2x rate
        o = o + inv_a * jnp.square(jnp.sin(alpha * o))
        # Downsample: left pads alias e[0], right pads alias o[T-1] (the
        # replicate pad of the interleaved 2T-rate signal crosses phases).
        lft, rgt = e[:, :1], o[:, T - 1:]
        y = None
        for s in range(-3, 4):
            if s >= -2:                                  # y[t] += f[2p+1]*e[t+p-2]
                t_e = taps[2 * s + 5] * shift(e, s, lft, rgt)
                y = t_e if y is None else y + t_e
            if s <= 2:                                   # y[t] += f[2p]*o[t+p-3]
                t_o = taps[2 * s + 6] * shift(o, s, lft, rgt)
                y = t_o if y is None else y + t_o
        return y

    def conv3(v, w, b, dil):
        """Conv1d(C, C, 3, dilation=dil, padding=dil, zeros): one
        (3C, C) @ (C, T) bf16 MXU matmul on the unshifted lane-aligned
        operand; per-tap results are shifted with zero edge masks."""
        ys = jnp.dot(w, v.astype(jnp.bfloat16),
                     preferred_element_type=jnp.float32)        # (3C, T) f32
        acc = None
        for k in range(3):
            term = shift(ys[k * C:(k + 1) * C, :], (k - 1) * dil, 0.0, 0.0)
            acc = term if acc is None else acc + term
        return acc + b

    for l, dil in enumerate(DILATIONS):
        xt = activation1d(x, a1_ref[l])
        xt = conv3(xt, w1_ref[l], b1_ref[l], dil)
        xt = activation1d(xt, a2_ref[l])
        xt = conv3(xt, w2_ref[l], b2_ref[l], 1)
        x = xt + x                                       # residual add
    o_ref[0] = x


def amp_block1_forward(x, params):
    """AMPBlock1.forward fused into a single Pallas call (grid over batch)."""
    B, C, T = x.shape
    L = len(DILATIONS)
    # Fold the tap dim into rows: (L, 3, C_out, C_in) -> (L, 3*C_out, C_in).
    # Weights are bf16 MXU operands (halved DMA/VMEM), accumulation stays f32.
    w1 = params["w1"].reshape(L, 3 * C, C).astype(jnp.bfloat16)
    w2 = params["w2"].reshape(L, 3 * C, C).astype(jnp.bfloat16)
    b1, b2 = params["b1"], params["b2"]
    a1 = params["alpha"][0::2]
    a2 = params["alpha"][1::2]

    def full(arr):
        return pl.BlockSpec(arr.shape, lambda i, _n=arr.ndim: (0,) * _n)

    # TODO(synk): for production sizes (C=512, T>=8k) add time tiling with a
    # ~48-sample halo (grid=(B, T//T_TILE)) so blocks fit v7x's 64 MiB VMEM and
    # the DMA pipeline has enough steps; unnecessary at these demo shapes.
    return pl.pallas_call(
        functools.partial(_amp_block_kernel, taps=_FIR_TAPS),
        out_shape=jax.ShapeDtypeStruct((B, C, T), x.dtype),
        grid=(B,),
        in_specs=[
            pl.BlockSpec((1, C, T), lambda i: (i, 0, 0)),   # x, one batch row
            full(w1), full(b1),                             # conv1 weight/bias
            full(w2), full(b2),                             # conv2 weight/bias
            full(a1), full(a2),                             # snake alphas
        ],
        out_specs=pl.BlockSpec((1, C, T), lambda i: (i, 0, 0)),
        compiler_params=pltpu.CompilerParams(
            dimension_semantics=("parallel",)),
    )(x, w1, b1, w2, b2, a1, a2)


# ----------------------------------------------------------------------------
# Pure-JAX (non-Pallas) reference using the pad/slice formulation of the same
# math; same bf16 MXU operand cast as the kernel so tolerances stay tight.
# ----------------------------------------------------------------------------
def _reference_forward(x, params):
    f = _FIR_TAPS
    B, C, T = x.shape
    L = len(DILATIONS)
    w1 = params["w1"].reshape(L, 3 * C, C).astype(jnp.bfloat16)
    w2 = params["w2"].reshape(L, 3 * C, C).astype(jnp.bfloat16)

    def pad3(v, left, right):
        return jnp.concatenate(
            [jnp.broadcast_to(left, left.shape[:-1] + (3,)), v,
             jnp.broadcast_to(right, right.shape[:-1] + (3,))], axis=-1)

    def activation1d(v, alpha):
        inv_a = 1.0 / (alpha + 1e-9)
        vp = pad3(v, v[..., :1], v[..., -1:])
        e = jnp.zeros_like(v)
        o = jnp.zeros_like(v)
        for s in range(-3, 4):
            sv = vp[..., 3 + s:3 + s + T]
            if s <= 2:
                e = e + (2.0 * f[5 - 2 * s]) * sv
            if s >= -2:
                o = o + (2.0 * f[6 - 2 * s]) * sv
        e = e + inv_a * jnp.square(jnp.sin(alpha * e))
        o = o + inv_a * jnp.square(jnp.sin(alpha * o))
        ep = pad3(e, e[..., :1], o[..., -1:])
        op = pad3(o, e[..., :1], o[..., -1:])
        y = jnp.zeros_like(v)
        for s in range(-3, 4):
            if s >= -2:
                y = y + f[2 * s + 5] * ep[..., 3 + s:3 + s + T]
            if s <= 2:
                y = y + f[2 * s + 6] * op[..., 3 + s:3 + s + T]
        return y

    def conv3(v, w, b, dil):
        ys = jnp.einsum("oc,bct->bot", w, v.astype(jnp.bfloat16),
                        preferred_element_type=jnp.float32)
        out = jnp.zeros(v.shape, jnp.float32)
        for k in range(3):
            yk = ys[:, k * C:(k + 1) * C, :]
            s = (k - 1) * dil
            if s == 0:
                out = out + yk
            elif s > 0:
                out = out.at[..., : T - s].add(yk[..., s:])
            else:
                out = out.at[..., -s:].add(yk[..., : T + s])
        return out + b

    for l, dil in enumerate(DILATIONS):
        xt = activation1d(x, params["alpha"][2 * l])
        xt = conv3(xt, w1[l], params["b1"][l], dil)
        xt = activation1d(xt, params["alpha"][2 * l + 1])
        xt = conv3(xt, w2[l], params["b2"][l], 1)
        x = xt + x
    return x


# ----------------------------------------------------------------------------
# Deterministic synthetic parameter init (same shapes as the torch module).
# weight_norm is the identity reparameterization at init, so plain conv
# weights reproduce it exactly. Torch Conv1d weight is (C_out, C_in, K); we
# store it tap-major as (K, C_out, C_in).
# ----------------------------------------------------------------------------
def init_params(key, channels, kernel_size=3):
    n = len(DILATIONS)
    ks = jax.random.split(key, 5)
    w1 = 0.01 * jax.random.normal(ks[0], (n, kernel_size, channels, channels), jnp.float32)
    w2 = 0.01 * jax.random.normal(ks[1], (n, kernel_size, channels, channels), jnp.float32)
    bound = 1.0 / math.sqrt(channels * kernel_size)
    b1 = jax.random.uniform(ks[2], (n, channels, 1), jnp.float32, -bound, bound)
    b2 = jax.random.uniform(ks[3], (n, channels, 1), jnp.float32, -bound, bound)
    # Snake alpha (real init is ones for log_scale=False); deterministic
    # positive values here to exercise the per-channel broadcast.
    alpha = jax.random.uniform(ks[4], (2 * n, channels, 1), jnp.float32, 0.5, 1.5)
    return {"w1": w1, "b1": b1, "w2": w2, "b2": b2, "alpha": alpha}


if __name__ == "__main__":
    key = jax.random.PRNGKey(0)
    B, C, T = 2, 8, 128
    kx, kp = jax.random.split(key)
    x = jax.random.normal(kx, (B, C, T), jnp.float32)
    params = init_params(kp, C)

    y = jax.jit(amp_block1_forward)(x, params)
    jax.block_until_ready(y)
    assert y.shape == (B, C, T)
    assert bool(jnp.all(jnp.isfinite(y)))

    # Numerical validation of the fused kernel against the pad/slice reference.
    y_ref = _reference_forward(x, params)
    err = float(jnp.max(jnp.abs(y - y_ref)))
    assert err < 5e-3, f"kernel/reference mismatch: max abs err {err}"
    print("KERNEL_OK")
</pallas_src>

<mosaic_0001>
module attributes {stable_mosaic.version = 11 : i64} {
  func.func @_amp_block_kernel(%arg0: i32, %arg1: memref<1x8x128xf32, #tpu.memory_space<vmem>>, %arg2: memref<3x24x8xbf16, #tpu.memory_space<vmem>>, %arg3: memref<3x8x1xf32, #tpu.memory_space<vmem>>, %arg4: memref<3x24x8xbf16, #tpu.memory_space<vmem>>, %arg5: memref<3x8x1xf32, #tpu.memory_space<vmem>>, %arg6: memref<3x8x1xf32, #tpu.memory_space<vmem>>, %arg7: memref<3x8x1xf32, #tpu.memory_space<vmem>>, %arg8: memref<1x8x128xf32, #tpu.memory_space<vmem>>) attributes {dimension_semantics = [#tpu.dimension_semantics<parallel>], iteration_bounds = array<i64: 2>, scalar_prefetch = 0 : i64, scratch_operands = 0 : i64, tpu.core_type = #tpu.core_type<tc>, window_params = [{transform_indices = @transform_0, window_bounds = array<i64: 1, 8, 128>}, {pipeline_mode = #tpu.pipeline_mode<synchronous>, transform_indices = @transform_1, window_bounds = array<i64: 3, 24, 8>}, {pipeline_mode = #tpu.pipeline_mode<synchronous>, transform_indices = @transform_2, window_bounds = array<i64: 3, 8, 1>}, {pipeline_mode = #tpu.pipeline_mode<synchronous>, transform_indices = @transform_3, window_bounds = array<i64: 3, 24, 8>}, {pipeline_mode = #tpu.pipeline_mode<synchronous>, transform_indices = @transform_4, window_bounds = array<i64: 3, 8, 1>}, {pipeline_mode = #tpu.pipeline_mode<synchronous>, transform_indices = @transform_5, window_bounds = array<i64: 3, 8, 1>}, {pipeline_mode = #tpu.pipeline_mode<synchronous>, transform_indices = @transform_6, window_bounds = array<i64: 3, 8, 1>}, {transform_indices = @transform_7, window_bounds = array<i64: 1, 8, 128>}]} {
    %c0 = arith.constant 0 : index
    %c0_0 = arith.constant 0 : index
    %c0_1 = arith.constant 0 : index
    %0 = vector.load %arg1[%c0, %c0_0, %c0_1] : memref<1x8x128xf32, #tpu.memory_space<vmem>>, vector<1x8x128xf32>
    %1 = vector.shape_cast %0 : vector<1x8x128xf32> to vector<8x128xf32>
    %2 = tpu.iota {dimensions = array<i32: 1>} : vector<8x128xi32>
    %c0_2 = arith.constant 0 : index
    %c0_3 = arith.constant 0 : index
    %c0_4 = arith.constant 0 : index
    %3 = vector.load %arg6[%c0_2, %c0_3, %c0_4] : memref<3x8x1xf32, #tpu.memory_space<vmem>>, vector<1x8x1xf32>
    %4 = vector.shape_cast %3 : vector<1x8x1xf32> to vector<8x1xf32>
    %cst = arith.constant 9.99999971E-10 : f32
    %5 = vector.broadcast %cst : f32 to vector<8x1xf32>
    %6 = arith.addf %4, %5 : vector<8x1xf32>
    %cst_5 = arith.constant 1.000000e+00 : f32
    %7 = vector.broadcast %cst_5 : f32 to vector<8x1xf32>
    %8 = arith.divf %7, %6 : vector<8x1xf32>
    %9 = vector.extract_strided_slice %1 {offsets = [0, 0], sizes = [8, 1], strides = [1, 1]} : vector<8x128xf32> to vector<8x1xf32>
    %10 = vector.extract_strided_slice %1 {offsets = [0, 127], sizes = [8, 1], strides = [1, 1]} : vector<8x128xf32> to vector<8x1xf32>
    %c3_i32 = arith.constant 3 : i32
    %11 = tpu.dynamic_rotate %1 by %c3_i32 dim 1 : vector<8x128xf32>, i32 -> vector<8x128xf32>
    %c3_i32_6 = arith.constant 3 : i32
    %12 = vector.broadcast %c3_i32_6 : i32 to vector<8x128xi32>
    %13 = arith.cmpi slt, %2, %12 : vector<8x128xi32>
    %14 = vector.shape_cast %9 : vector<8x1xf32> to vector<8x1xf32>
    %15 = vector.broadcast %14 : vector<8x1xf32> to vector<8x128xf32>
    %16 = arith.select %13, %15, %11 : vector<8x128xi1>, vector<8x128xf32>
    %cst_7 = arith.constant 0.00405793311 : f32
    %17 = vector.broadcast %cst_7 : f32 to vector<8x128xf32>
    %18 = arith.mulf %17, %16 : vector<8x128xf32>
    %c2_i32 = arith.constant 2 : i32
    %19 = tpu.dynamic_rotate %1 by %c2_i32 dim 1 : vector<8x128xf32>, i32 -> vector<8x128xf32>
    %c2_i32_8 = arith.constant 2 : i32
    %20 = vector.broadcast %c2_i32_8 : i32 to vector<8x128xi32>
    %21 = arith.cmpi slt, %2, %20 : vector<8x128xi32>
    %22 = vector.shape_cast %9 : vector<8x1xf32> to vector<8x1xf32>
    %23 = vector.broadcast %22 : vector<8x1xf32> to vector<8x128xf32>
    %24 = arith.select %21, %23, %19 : vector<8x128xi1>, vector<8x128xf32>
    %cst_9 = arith.constant -0.0510869287 : f32
    %25 = vector.broadcast %cst_9 : f32 to vector<8x128xf32>
    %26 = arith.mulf %25, %24 : vector<8x128xf32>
    %27 = arith.addf %18, %26 : vector<8x128xf32>
    %cst_10 = arith.constant 0.0187789276 : f32
    %28 = vector.broadcast %cst_10 : f32 to vector<8x128xf32>
    %29 = arith.mulf %28, %24 : vector<8x128xf32>
    %c1_i32 = arith.constant 1 : i32
    %30 = tpu.dynamic_rotate %1 by %c1_i32 dim 1 : vector<8x128xf32>, i32 -> vector<8x128xf32>
    %c1_i32_11 = arith.constant 1 : i32
    %31 = vector.broadcast %c1_i32_11 : i32 to vector<8x128xi32>
    %32 = arith.cmpi slt, %2, %31 : vector<8x128xi32>
    %33 = vector.shape_cast %9 : vector<8x1xf32> to vector<8x1xf32>
    %34 = vector.broadcast %33 : vector<8x1xf32> to vector<8x128xf32>
    %35 = arith.select %32, %34, %30 : vector<8x128xi1>, vector<8x128xf32>
    %cst_12 = arith.constant 0.257145226 : f32
    %36 = vector.broadcast %cst_12 : f32 to vector<8x128xf32>
    %37 = arith.mulf %36, %35 : vector<8x128xf32>
    %38 = arith.addf %27, %37 : vector<8x128xf32>
    %cst_13 = arith.constant -0.115314752 : f32
    %39 = vector.broadcast %cst_13 : f32 to vector<8x128xf32>
    %40 = arith.mulf %39, %35 : vector<8x128xf32>
    %41 = arith.addf %29, %40 : vector<8x128xf32>
    %cst_14 = arith.constant 0.886419594 : f32
    %42 = vector.broadcast %cst_14 : f32 to vector<8x128xf32>
    %43 = arith.mulf %42, %1 : vector<8x128xf32>
    %44 = arith.addf %38, %43 : vector<8x128xf32>
    %cst_15 = arith.constant 0.886419594 : f32
    %45 = vector.broadcast %cst_15 : f32 to vector<8x128xf32>
    %46 = arith.mulf %45, %1 : vector<8x128xf32>
    %47 = arith.addf %41, %46 : vector<8x128xf32>
    %c127_i32 = arith.constant 127 : i32
    %48 = tpu.dynamic_rotate %1 by %c127_i32 dim 1 : vector<8x128xf32>, i32 -> vector<8x128xf32>
    %c127_i32_16 = arith.constant 127 : i32
    %49 = vector.broadcast %c127_i32_16 : i32 to vector<8x128xi32>
    %50 = arith.cmpi sge, %2, %49 : vector<8x128xi32>
    %51 = vector.shape_cast %10 : vector<8x1xf32> to vector<8x1xf32>
    %52 = vector.broadcast %51 : vector<8x1xf32> to vector<8x128xf32>
    %53 = arith.select %50, %52, %48 : vector<8x128xi1>, vector<8x128xf32>
    %cst_17 = arith.constant -0.115314752 : f32
    %54 = vector.broadcast %cst_17 : f32 to vector<8x128xf32>
    %55 = arith.mulf %54, %53 : vector<8x128xf32>
    %56 = arith.addf %44, %55 : vector<8x128xf32>
    %cst_18 = arith.constant 0.257145226 : f32
    %57 = vector.broadcast %cst_18 : f32 to vector<8x128xf32>
    %58 = arith.mulf %57, %53 : vector<8x128xf32>
    %59 = arith.addf %47, %58 : vector<8x128xf32>
    %c126_i32 = arith.constant 126 : i32
    %60 = tpu.dynamic_rotate %1 by %c126_i32 dim 1 : vector<8x128xf32>, i32 -> vector<8x128xf32>
    %c126_i32_19 = arith.constant 126 : i32
    %61 = vector.broadcast %c126_i32_19 : i32 to vector<8x128xi32>
    %62 = arith.cmpi sge, %2, %61 : vector<8x128xi32>
    %63 = vector.shape_cast %10 : vector<8x1xf32> to vector<8x1xf32>
    %64 = vector.broadcast %63 : vector<8x1xf32> to vector<8x128xf32>
    %65 = arith.select %62, %64, %60 : vector<8x128xi1>, vector<8x128xf32>
    %cst_20 = arith.constant 0.0187789276 : f32
    %66 = vector.broadcast %cst_20 : f32 to vector<8x128xf32>
    %67 = arith.mulf %66, %65 : vector<8x128xf32>
    %68 = arith.addf %56, %67 : vector<8x128xf32>
    %cst_21 = arith.constant -0.0510869287 : f32
    %69 = vector.broadcast %cst_21 : f32 to vector<8x128xf32>
    %70 = arith.mulf %69, %65 : vector<8x128xf32>
    %71 = arith.addf %59, %70 : vector<8x128xf32>
    %c125_i32 = arith.constant 125 : i32
    %72 = tpu.dynamic_rotate %1 by %c125_i32 dim 1 : vector<8x128xf32>, i32 -> vector<8x128xf32>
    %c125_i32_22 = arith.constant 125 : i32
    %73 = vector.broadcast %c125_i32_22 : i32 to vector<8x128xi32>
    %74 = arith.cmpi sge, %2, %73 : vector<8x128xi32>
    %75 = vector.shape_cast %10 : vector<8x1xf32> to vector<8x1xf32>
    %76 = vector.broadcast %75 : vector<8x1xf32> to vector<8x128xf32>
    %77 = arith.select %74, %76, %72 : vector<8x128xi1>, vector<8x128xf32>
    %cst_23 = arith.constant 0.00405793311 : f32
    %78 = vector.broadcast %cst_23 : f32 to vector<8x128xf32>
    %79 = arith.mulf %78, %77 : vector<8x128xf32>
    %80 = arith.addf %71, %79 : vector<8x128xf32>
    %81 = vector.broadcast %4 : vector<8x1xf32> to vector<8x128xf32>
    %82 = arith.mulf %81, %68 : vector<8x128xf32>
    %83 = math.sin %82 : vector<8x128xf32>
    %84 = arith.mulf %83, %83 : vector<8x128xf32>
    %85 = vector.broadcast %8 : vector<8x1xf32> to vector<8x128xf32>
    %86 = arith.mulf %85, %84 : vector<8x128xf32>
    %87 = arith.addf %68, %86 : vector<8x128xf32>
    %88 = vector.broadcast %4 : vector<8x1xf32> to vector<8x128xf32>
    %89 = arith.mulf %88, %80 : vector<8x128xf32>
    %90 = math.sin %89 : vector<8x128xf32>
    %91 = arith.mulf %90, %90 : vector<8x128xf32>
    %92 = vector.broadcast %8 : vector<8x1xf32> to vector<8x128xf32>
    %93 = arith.mulf %92, %91 : vector<8x128xf32>
    %94 = arith.addf %80, %93 : vector<8x128xf32>
    %95 = vector.extract_strided_slice %87 {offsets = [0, 0], sizes = [8, 1], strides = [1, 1]} : vector<8x128xf32> to vector<8x1xf32>
    %96 = vector.extract_strided_slice %94 {offsets = [0, 127], sizes = [8, 1], strides = [1, 1]} : vector<8x128xf32> to vector<8x1xf32>
    %c3_i32_24 = arith.constant 3 : i32
    %97 = tpu.dynamic_rotate %94 by %c3_i32_24 dim 1 : vector<8x128xf32>, i32 -> vector<8x128xf32>
    %c3_i32_25 = arith.constant 3 : i32
    %98 = vector.broadcast %c3_i32_25 : i32 to vector<8x128xi32>
    %99 = arith.cmpi slt, %2, %98 : vector<8x128xi32>
    %100 = vector.shape_cast %95 : vector<8x1xf32> to vector<8x1xf32>
    %101 = vector.broadcast %100 : vector<8x1xf32> to vector<8x128xf32>
    %102 = arith.select %99, %101, %97 : vector<8x128xi1>, vector<8x128xf32>
    %cst_26 = arith.constant 0.00202896656 : f32
    %103 = vector.broadcast %cst_26 : f32 to vector<8x128xf32>
    %104 = arith.mulf %103, %102 : vector<8x128xf32>
    %c2_i32_27 = arith.constant 2 : i32
    %105 = tpu.dynamic_rotate %87 by %c2_i32_27 dim 1 : vector<8x128xf32>, i32 -> vector<8x128xf32>
    %c2_i32_28 = arith.constant 2 : i32
    %106 = vector.broadcast %c2_i32_28 : i32 to vector<8x128xi32>
    %107 = arith.cmpi slt, %2, %106 : vector<8x128xi32>
    %108 = vector.shape_cast %95 : vector<8x1xf32> to vector<8x1xf32>
    %109 = vector.broadcast %108 : vector<8x1xf32> to vector<8x128xf32>
    %110 = arith.select %107, %109, %105 : vector<8x128xi1>, vector<8x128xf32>
    %cst_29 = arith.constant 0.00938946381 : f32
    %111 = vector.broadcast %cst_29 : f32 to vector<8x128xf32>
    %112 = arith.mulf %111, %110 : vector<8x128xf32>
    %113 = arith.addf %104, %112 : vector<8x128xf32>
    %c2_i32_30 = arith.constant 2 : i32
    %114 = tpu.dynamic_rotate %94 by %c2_i32_30 dim 1 : vector<8x128xf32>, i32 -> vector<8x128xf32>
    %c2_i32_31 = arith.constant 2 : i32
    %115 = vector.broadcast %c2_i32_31 : i32 to vector<8x128xi32>
    %116 = arith.cmpi slt, %2, %115 : vector<8x128xi32>
    %117 = vector.shape_cast %95 : vector<8x1xf32> to vector<8x1xf32>
    %118 = vector.broadcast %117 : vector<8x1xf32> to vector<8x128xf32>
    %119 = arith.select %116, %118, %114 : vector<8x128xi1>, vector<8x128xf32>
    %cst_32 = arith.constant -0.0255434643 : f32
    %120 = vector.broadcast %cst_32 : f32 to vector<8x128xf32>
    %121 = arith.mulf %120, %119 : vector<8x128xf32>
    %122 = arith.addf %113, %121 : vector<8x128xf32>
    %c1_i32_33 = arith.constant 1 : i32
    %123 = tpu.dynamic_rotate %87 by %c1_i32_33 dim 1 : vector<8x128xf32>, i32 -> vector<8x128xf32>
    %c1_i32_34 = arith.constant 1 : i32
    %124 = vector.broadcast %c1_i32_34 : i32 to vector<8x128xi32>
    %125 = arith.cmpi slt, %2, %124 : vector<8x128xi32>
    %126 = vector.shape_cast %95 : vector<8x1xf32> to vector<8x1xf32>
    %127 = vector.broadcast %126 : vector<8x1xf32> to vector<8x128xf32>
    %128 = arith.select %125, %127, %123 : vector<8x128xi1>, vector<8x128xf32>
    %cst_35 = arith.constant -0.0576573759 : f32
    %129 = vector.broadcast %cst_35 : f32 to vector<8x128xf32>
    %130 = arith.mulf %129, %128 : vector<8x128xf32>
    %131 = arith.addf %122, %130 : vector<8x128xf32>
    %c1_i32_36 = arith.constant 1 : i32
    %132 = tpu.dynamic_rotate %94 by %c1_i32_36 dim 1 : vector<8x128xf32>, i32 -> vector<8x128xf32>
    %c1_i32_37 = arith.constant 1 : i32
    %133 = vector.broadcast %c1_i32_37 : i32 to vector<8x128xi32>
    %134 = arith.cmpi slt, %2, %133 : vector<8x128xi32>
    %135 = vector.shape_cast %95 : vector<8x1xf32> to vector<8x1xf32>
    %136 = vector.broadcast %135 : vector<8x1xf32> to vector<8x128xf32>
    %137 = arith.select %134, %136, %132 : vector<8x128xi1>, vector<8x128xf32>
    %cst_38 = arith.constant 0.128572613 : f32
    %138 = vector.broadcast %cst_38 : f32 to vector<8x128xf32>
    %139 = arith.mulf %138, %137 : vector<8x128xf32>
    %140 = arith.addf %131, %139 : vector<8x128xf32>
    %cst_39 = arith.constant 0.443209797 : f32
    %141 = vector.broadcast %cst_39 : f32 to vector<8x128xf32>
    %142 = arith.mulf %141, %87 : vector<8x128xf32>
    %143 = arith.addf %140, %142 : vector<8x128xf32>
    %cst_40 = arith.constant 0.443209797 : f32
    %144 = vector.broadcast %cst_40 : f32 to vector<8x128xf32>
    %145 = arith.mulf %144, %94 : vector<8x128xf32>
    %146 = arith.addf %143, %145 : vector<8x128xf32>
    %c127_i32_41 = arith.constant 127 : i32
    %147 = tpu.dynamic_rotate %87 by %c127_i32_41 dim 1 : vector<8x128xf32>, i32 -> vector<8x128xf32>
    %c127_i32_42 = arith.constant 127 : i32
    %148 = vector.broadcast %c127_i32_42 : i32 to vector<8x128xi32>
    %149 = arith.cmpi sge, %2, %148 : vector<8x128xi32>
    %150 = vector.shape_cast %96 : vector<8x1xf32> to vector<8x1xf32>
    %151 = vector.broadcast %150 : vector<8x1xf32> to vector<8x128xf32>
    %152 = arith.select %149, %151, %147 : vector<8x128xi1>, vector<8x128xf32>
    %cst_43 = arith.constant 0.128572613 : f32
    %153 = vector.broadcast %cst_43 : f32 to vector<8x128xf32>
    %154 = arith.mulf %153, %152 : vector<8x128xf32>
    %155 = arith.addf %146, %154 : vector<8x128xf32>
    %c127_i32_44 = arith.constant 127 : i32
    %156 = tpu.dynamic_rotate %94 by %c127_i32_44 dim 1 : vector<8x128xf32>, i32 -> vector<8x128xf32>
    %c127_i32_45 = arith.constant 127 : i32
    %157 = vector.broadcast %c127_i32_45 : i32 to vector<8x128xi32>
    %158 = arith.cmpi sge, %2, %157 : vector<8x128xi32>
    %159 = vector.shape_cast %96 : vector<8x1xf32> to vector<8x1xf32>
    %160 = vector.broadcast %159 : vector<8x1xf32> to vector<8x128xf32>
    %161 = arith.select %158, %160, %156 : vector<8x128xi1>, vector<8x128xf32>
    %cst_46 = arith.constant -0.0576573759 : f32
    %162 = vector.broadcast %cst_46 : f32 to vector<8x128xf32>
    %163 = arith.mulf %162, %161 : vector<8x128xf32>
    %164 = arith.addf %155, %163 : vector<8x128xf32>
    %c126_i32_47 = arith.constant 126 : i32
    %165 = tpu.dynamic_rotate %87 by %c126_i32_47 dim 1 : vector<8x128xf32>, i32 -> vector<8x128xf32>
    %c126_i32_48 = arith.constant 126 : i32
    %166 = vector.broadcast %c126_i32_48 : i32 to vector<8x128xi32>
    %167 = arith.cmpi sge, %2, %166 : vector<8x128xi32>
    %168 = vector.shape_cast %96 : vector<8x1xf32> to vector<8x1xf32>
    %169 = vector.broadcast %168 : vector<8x1xf32> to vector<8x128xf32>
    %170 = arith.select %167, %169, %165 : vector<8x128xi1>, vector<8x128xf32>
    %cst_49 = arith.constant -0.0255434643 : f32
    %171 = vector.broadcast %cst_49 : f32 to vector<8x128xf32>
    %172 = arith.mulf %171, %170 : vector<8x128xf32>
    %173 = arith.addf %164, %172 : vector<8x128xf32>
    %c126_i32_50 = arith.constant 126 : i32
    %174 = tpu.dynamic_rotate %94 by %c126_i32_50 dim 1 : vector<8x128xf32>, i32 -> vector<8x128xf32>
    %c126_i32_51 = arith.constant 126 : i32
    %175 = vector.broadcast %c126_i32_51 : i32 to vector<8x128xi32>
    %176 = arith.cmpi sge, %2, %175 : vector<8x128xi32>
    %177 = vector.shape_cast %96 : vector<8x1xf32> to vector<8x1xf32>
    %178 = vector.broadcast %177 : vector<8x1xf32> to vector<8x128xf32>
    %179 = arith.select %176, %178, %174 : vector<8x128xi1>, vector<8x128xf32>
    %cst_52 = arith.constant 0.00938946381 : f32
    %180 = vector.broadcast %cst_52 : f32 to vector<8x128xf32>
    %181 = arith.mulf %180, %179 : vector<8x128xf32>
    %182 = arith.addf %173, %181 : vector<8x128xf32>
    %c125_i32_53 = arith.constant 125 : i32
    %183 = tpu.dynamic_rotate %87 by %c125_i32_53 dim 1 : vector<8x128xf32>, i32 -> vector<8x128xf32>
    %c125_i32_54 = arith.constant 125 : i32
    %184 = vector.broadcast %c125_i32_54 : i32 to vector<8x128xi32>
    %185 = arith.cmpi sge, %2, %184 : vector<8x128xi32>
    %186 = vector.shape_cast %96 : vector<8x1xf32> to vector<8x1xf32>
    %187 = vector.broadcast %186 : vector<8x1xf32> to vector<8x128xf32>
    %188 = arith.select %185, %187, %183 : vector<8x128xi1>, vector<8x128xf32>
    %cst_55 = arith.constant 0.00202896656 : f32
    %189 = vector.broadcast %cst_55 : f32 to vector<8x128xf32>
    %190 = arith.mulf %189, %188 : vector<8x128xf32>
    %191 = arith.addf %182, %190 : vector<8x128xf32>
    %c0_56 = arith.constant 0 : index
    %c0_57 = arith.constant 0 : index
    %c0_58 = arith.constant 0 : index
    %192 = vector.load %arg2[%c0_56, %c0_57, %c0_58] : memref<3x24x8xbf16, #tpu.memory_space<vmem>>, vector<1x24x8xbf16>
    %193 = vector.shape_cast %192 : vector<1x24x8xbf16> to vector<24x8xbf16>
    %c0_59 = arith.constant 0 : index
    %c0_60 = arith.constant 0 : index
    %c0_61 = arith.constant 0 : index
    %194 = vector.load %arg3[%c0_59, %c0_60, %c0_61] : memref<3x8x1xf32, #tpu.memory_space<vmem>>, vector<1x8x1xf32>
    %195 = vector.shape_cast %194 : vector<1x8x1xf32> to vector<8x1xf32>
    %196 = arith.truncf %191 : vector<8x128xf32> to vector<8x128xbf16>
    %cst_62 = arith.constant dense<0.000000e+00> : vector<24x128xf32>
    %197 = tpu.matmul %193, %196, %cst_62 {dimension_numbers = #tpu.dot_dimension_numbers<[1], [0], [0], [1], [0, 0, 1, 1], [], []>} : vector<24x8xbf16>, vector<8x128xbf16>, vector<24x128xf32> -> vector<24x128xf32>
    %198 = vector.extract_strided_slice %197 {offsets = [0, 0], sizes = [8, 128], strides = [1, 1]} : vector<24x128xf32> to vector<8x128xf32>
    %c1_i32_63 = arith.constant 1 : i32
    %199 = tpu.dynamic_rotate %198 by %c1_i32_63 dim 1 : vector<8x128xf32>, i32 -> vector<8x128xf32>
    %c1_i32_64 = arith.constant 1 : i32
    %200 = vector.broadcast %c1_i32_64 : i32 to vector<8x128xi32>
    %201 = arith.cmpi slt, %2, %200 : vector<8x128xi32>
    %cst_65 = arith.constant 0.000000e+00 : f32
    %202 = vector.broadcast %cst_65 : f32 to vector<8x128xf32>
    %203 = arith.select %201, %202, %199 : vector<8x128xi1>, vector<8x128xf32>
    %204 = vector.extract_strided_slice %197 {offsets = [8, 0], sizes = [8, 128], strides = [1, 1]} : vector<24x128xf32> to vector<8x128xf32>
    %205 = arith.addf %203, %204 : vector<8x128xf32>
    %206 = vector.extract_strided_slice %197 {offsets = [16, 0], sizes = [8, 128], strides = [1, 1]} : vector<24x128xf32> to vector<8x128xf32>
    %c127_i32_66 = arith.constant 127 : i32
    %207 = tpu.dynamic_rotate %206 by %c127_i32_66 dim 1 : vector<8x128xf32>, i32 -> vector<8x128xf32>
    %c127_i32_67 = arith.constant 127 : i32
    %208 = vector.broadcast %c127_i32_67 : i32 to vector<8x128xi32>
    %209 = arith.cmpi sge, %2, %208 : vector<8x128xi32>
    %cst_68 = arith.constant 0.000000e+00 : f32
    %210 = vector.broadcast %cst_68 : f32 to vector<8x128xf32>
    %211 = arith.select %209, %210, %207 : vector<8x128xi1>, vector<8x128xf32>
    %212 = arith.addf %205, %211 : vector<8x128xf32>
    %213 = vector.broadcast %195 : vector<8x1xf32> to vector<8x128xf32>
    %214 = arith.addf %212, %213 : vector<8x128xf32>
    %c0_69 = arith.constant 0 : index
    %c0_70 = arith.constant 0 : index
    %c0_71 = arith.constant 0 : index
    %215 = vector.load %arg7[%c0_69, %c0_70, %c0_71] : memref<3x8x1xf32, #tpu.memory_space<vmem>>, vector<1x8x1xf32>
    %216 = vector.shape_cast %215 : vector<1x8x1xf32> to vector<8x1xf32>
    %cst_72 = arith.constant 9.99999971E-10 : f32
    %217 = vector.broadcast %cst_72 : f32 to vector<8x1xf32>
    %218 = arith.addf %216, %217 : vector<8x1xf32>
    %cst_73 = arith.constant 1.000000e+00 : f32
    %219 = vector.broadcast %cst_73 : f32 to vector<8x1xf32>
    %220 = arith.divf %219, %218 : vector<8x1xf32>
    %221 = vector.extract_strided_slice %214 {offsets = [0, 0], sizes = [8, 1], strides = [1, 1]} : vector<8x128xf32> to vector<8x1xf32>
    %222 = vector.extract_strided_slice %214 {offsets = [0, 127], sizes = [8, 1], strides = [1, 1]} : vector<8x128xf32> to vector<8x1xf32>
    %c3_i32_74 = arith.constant 3 : i32
    %223 = tpu.dynamic_rotate %214 by %c3_i32_74 dim 1 : vector<8x128xf32>, i32 -> vector<8x128xf32>
    %c3_i32_75 = arith.constant 3 : i32
    %224 = vector.broadcast %c3_i32_75 : i32 to vector<8x128xi32>
    %225 = arith.cmpi slt, %2, %224 : vector<8x128xi32>
    %226 = vector.shape_cast %221 : vector<8x1xf32> to vector<8x1xf32>
    %227 = vector.broadcast %226 : vector<8x1xf32> to vector<8x128xf32>
    %228 = arith.select %225, %227, %223 : vector<8x128xi1>, vector<8x128xf32>
    %cst_76 = arith.constant 0.00405793311 : f32
    %229 = vector.broadcast %cst_76 : f32 to vector<8x128xf32>
    %230 = arith.mulf %229, %228 : vector<8x128xf32>
    %c2_i32_77 = arith.constant 2 : i32
    %231 = tpu.dynamic_rotate %214 by %c2_i32_77 dim 1 : vector<8x128xf32>, i32 -> vector<8x128xf32>
    %c2_i32_78 = arith.constant 2 : i32
    %232 = vector.broadcast %c2_i32_78 : i32 to vector<8x128xi32>
    %233 = arith.cmpi slt, %2, %232 : vector<8x128xi32>
    %234 = vector.shape_cast %221 : vector<8x1xf32> to vector<8x1xf32>
    %235 = vector.broadcast %234 : vector<8x1xf32> to vector<8x128xf32>
    %236 = arith.select %233, %235, %231 : vector<8x128xi1>, vector<8x128xf32>
    %cst_79 = arith.constant -0.0510869287 : f32
    %237 = vector.broadcast %cst_79 : f32 to vector<8x128xf32>
    %238 = arith.mulf %237, %236 : vector<8x128xf32>
    %239 = arith.addf %230, %238 : vector<8x128xf32>
    %cst_80 = arith.constant 0.0187789276 : f32
    %240 = vector.broadcast %cst_80 : f32 to vector<8x128xf32>
    %241 = arith.mulf %240, %236 : vector<8x128xf32>
    %c1_i32_81 = arith.constant 1 : i32
    %242 = tpu.dynamic_rotate %214 by %c1_i32_81 dim 1 : vector<8x128xf32>, i32 -> vector<8x128xf32>
    %c1_i32_82 = arith.constant 1 : i32
    %243 = vector.broadcast %c1_i32_82 : i32 to vector<8x128xi32>
    %244 = arith.cmpi slt, %2, %243 : vector<8x128xi32>
    %245 = vector.shape_cast %221 : vector<8x1xf32> to vector<8x1xf32>
    %246 = vector.broadcast %245 : vector<8x1xf32> to vector<8x128xf32>
    %247 = arith.select %244, %246, %242 : vector<8x128xi1>, vector<8x128xf32>
    %cst_83 = arith.constant 0.257145226 : f32
    %248 = vector.broadcast %cst_83 : f32 to vector<8x128xf32>
    %249 = arith.mulf %248, %247 : vector<8x128xf32>
    %250 = arith.addf %239, %249 : vector<8x128xf32>
    %cst_84 = arith.constant -0.115314752 : f32
    %251 = vector.broadcast %cst_84 : f32 to vector<8x128xf32>
    %252 = arith.mulf %251, %247 : vector<8x128xf32>
    %253 = arith.addf %241, %252 : vector<8x128xf32>
    %cst_85 = arith.constant 0.886419594 : f32
    %254 = vector.broadcast %cst_85 : f32 to vector<8x128xf32>
    %255 = arith.mulf %254, %214 : vector<8x128xf32>
    %256 = arith.addf %250, %255 : vector<8x128xf32>
    %cst_86 = arith.constant 0.886419594 : f32
    %257 = vector.broadcast %cst_86 : f32 to vector<8x128xf32>
    %258 = arith.mulf %257, %214 : vector<8x128xf32>
    %259 = arith.addf %253, %258 : vector<8x128xf32>
    %c127_i32_87 = arith.constant 127 : i32
    %260 = tpu.dynamic_rotate %214 by %c127_i32_87 dim 1 : vector<8x128xf32>, i32 -> vector<8x128xf32>
    %c127_i32_88 = arith.constant 127 : i32
    %261 = vector.broadcast %c127_i32_88 : i32 to vector<8x128xi32>
    %262 = arith.cmpi sge, %2, %261 : vector<8x128xi32>
    %263 = vector.shape_cast %222 : vector<8x1xf32> to vector<8x1xf32>
    %264 = vector.broadcast %263 : vector<8x1xf32> to vector<8x128xf32>
    %265 = arith.select %262, %264, %260 : vector<8x128xi1>, vector<8x128xf32>
    %cst_89 = arith.constant -0.115314752 : f32
    %266 = vector.broadcast %cst_89 : f32 to vector<8x128xf32>
    %267 = arith.mulf %266, %265 : vector<8x128xf32>
    %268 = arith.addf %256, %267 : vector<8x128xf32>
    %cst_90 = arith.constant 0.257145226 : f32
    %269 = vector.broadcast %cst_90 : f32 to vector<8x128xf32>
    %270 = arith.mulf %269, %265 : vector<8x128xf32>
    %271 = arith.addf %259, %270 : vector<8x128xf32>
    %c126_i32_91 = arith.constant 126 : i32
    %272 = tpu.dynamic_rotate %214 by %c126_i32_91 dim 1 : vector<8x128xf32>, i32 -> vector<8x128xf32>
    %c126_i32_92 = arith.constant 126 : i32
    %273 = vector.broadcast %c126_i32_92 : i32 to vector<8x128xi32>
    %274 = arith.cmpi sge, %2, %273 : vector<8x128xi32>
    %275 = vector.shape_cast %222 : vector<8x1xf32> to vector<8x1xf32>
    %276 = vector.broadcast %275 : vector<8x1xf32> to vector<8x128xf32>
    %277 = arith.select %274, %276, %272 : vector<8x128xi1>, vector<8x128xf32>
    %cst_93 = arith.constant 0.0187789276 : f32
    %278 = vector.broadcast %cst_93 : f32 to vector<8x128xf32>
    %279 = arith.mulf %278, %277 : vector<8x128xf32>
    %280 = arith.addf %268, %279 : vector<8x128xf32>
    %cst_94 = arith.constant -0.0510869287 : f32
    %281 = vector.broadcast %cst_94 : f32 to vector<8x128xf32>
    %282 = arith.mulf %281, %277 : vector<8x128xf32>
    %283 = arith.addf %271, %282 : vector<8x128xf32>
    %c125_i32_95 = arith.constant 125 : i32
    %284 = tpu.dynamic_rotate %214 by %c125_i32_95 dim 1 : vector<8x128xf32>, i32 -> vector<8x128xf32>
    %c125_i32_96 = arith.constant 125 : i32
    %285 = vector.broadcast %c125_i32_96 : i32 to vector<8x128xi32>
    %286 = arith.cmpi sge, %2, %285 : vector<8x128xi32>
    %287 = vector.shape_cast %222 : vector<8x1xf32> to vector<8x1xf32>
    %288 = vector.broadcast %287 : vector<8x1xf32> to vector<8x128xf32>
    %289 = arith.select %286, %288, %284 : vector<8x128xi1>, vector<8x128xf32>
    %cst_97 = arith.constant 0.00405793311 : f32
    %290 = vector.broadcast %cst_97 : f32 to vector<8x128xf32>
    %291 = arith.mulf %290, %289 : vector<8x128xf32>
    %292 = arith.addf %283, %291 : vector<8x128xf32>
    %293 = vector.broadcast %216 : vector<8x1xf32> to vector<8x128xf32>
    %294 = arith.mulf %293, %280 : vector<8x128xf32>
    %295 = math.sin %294 : vector<8x128xf32>
    %296 = arith.mulf %295, %295 : vector<8x128xf32>
    %297 = vector.broadcast %220 : vector<8x1xf32> to vector<8x128xf32>
    %298 = arith.mulf %297, %296 : vector<8x128xf32>
    %299 = arith.addf %280, %298 : vector<8x128xf32>
    %300 = vector.broadcast %216 : vector<8x1xf32> to vector<8x128xf32>
    %301 = arith.mulf %300, %292 : vector<8x128xf32>
    %302 = math.sin %301 : vector<8x128xf32>
    %303 = arith.mulf %302, %302 : vector<8x128xf32>
    %304 = vector.broadcast %220 : vector<8x1xf32> to vector<8x128xf32>
    %305 = arith.mulf %304, %303 : vector<8x128xf32>
    %306 = arith.addf %292, %305 : vector<8x128xf32>
    %307 = vector.extract_strided_slice %299 {offsets = [0, 0], sizes = [8, 1], strides = [1, 1]} : vector<8x128xf32> to vector<8x1xf32>
    %308 = vector.extract_strided_slice %306 {offsets = [0, 127], sizes = [8, 1], strides = [1, 1]} : vector<8x128xf32> to vector<8x1xf32>
    %c3_i32_98 = arith.constant 3 : i32
    %309 = tpu.dynamic_rotate %306 by %c3_i32_98 dim 1 : vector<8x128xf32>, i32 -> vector<8x128xf32>
    %c3_i32_99 = arith.constant 3 : i32
    %310 = vector.broadcast %c3_i32_99 : i32 to vector<8x128xi32>
    %311 = arith.cmpi slt, %2, %310 : vector<8x128xi32>
    %312 = vector.shape_cast %307 : vector<8x1xf32> to vector<8x1xf32>
    %313 = vector.broadcast %312 : vector<8x1xf32> to vector<8x128xf32>
    %314 = arith.select %311, %313, %309 : vector<8x128xi1>, vector<8x128xf32>
    %cst_100 = arith.constant 0.00202896656 : f32
    %315 = vector.broadcast %cst_100 : f32 to vector<8x128xf32>
    %316 = arith.mulf %315, %314 : vector<8x128xf32>
    %c2_i32_101 = arith.constant 2 : i32
    %317 = tpu.dynamic_rotate %299 by %c2_i32_101 dim 1 : vector<8x128xf32>, i32 -> vector<8x128xf32>
    %c2_i32_102 = arith.constant 2 : i32
    %318 = vector.broadcast %c2_i32_102 : i32 to vector<8x128xi32>
    %319 = arith.cmpi slt, %2, %318 : vector<8x128xi32>
    %320 = vector.shape_cast %307 : vector<8x1xf32> to vector<8x1xf32>
    %321 = vector.broadcast %320 : vector<8x1xf32> to vector<8x128xf32>
    %322 = arith.select %319, %321, %317 : vector<8x128xi1>, vector<8x128xf32>
    %cst_103 = arith.constant 0.00938946381 : f32
    %323 = vector.broadcast %cst_103 : f32 to vector<8x128xf32>
    %324 = arith.mulf %323, %322 : vector<8x128xf32>
    %325 = arith.addf %316, %324 : vector<8x128xf32>
    %c2_i32_104 = arith.constant 2 : i32
    %326 = tpu.dynamic_rotate %306 by %c2_i32_104 dim 1 : vector<8x128xf32>, i32 -> vector<8x128xf32>
    %c2_i32_105 = arith.constant 2 : i32
    %327 = vector.broadcast %c2_i32_105 : i32 to vector<8x128xi32>
    %328 = arith.cmpi slt, %2, %327 : vector<8x128xi32>
    %329 = vector.shape_cast %307 : vector<8x1xf32> to vector<8x1xf32>
    %330 = vector.broadcast %329 : vector<8x1xf32> to vector<8x128xf32>
    %331 = arith.select %328, %330, %326 : vector<8x128xi1>, vector<8x128xf32>
    %cst_106 = arith.constant -0.0255434643 : f32
    %332 = vector.broadcast %cst_106 : f32 to vector<8x128xf32>
    %333 = arith.mulf %332, %331 : vector<8x128xf32>
    %334 = arith.addf %325, %333 : vector<8x128xf32>
    %c1_i32_107 = arith.constant 1 : i32
    %335 = tpu.dynamic_rotate %299 by %c1_i32_107 dim 1 : vector<8x128xf32>, i32 -> vector<8x128xf32>
    %c1_i32_108 = arith.constant 1 : i32
    %336 = vector.broadcast %c1_i32_108 : i32 to vector<8x128xi32>
    %337 = arith.cmpi slt, %2, %336 : vector<8x128xi32>
    %338 = vector.shape_cast %307 : vector<8x1xf32> to vector<8x1xf32>
    %339 = vector.broadcast %338 : vector<8x1xf32> to vector<8x128xf32>
    %340 = arith.select %337, %339, %335 : vector<8x128xi1>, vector<8x128xf32>
    %cst_109 = arith.constant -0.0576573759 : f32
    %341 = vector.broadcast %cst_109 : f32 to vector<8x128xf32>
    %342 = arith.mulf %341, %340 : vector<8x128xf32>
    %343 = arith.addf %334, %342 : vector<8x128xf32>
    %c1_i32_110 = arith.constant 1 : i32
    %344 = tpu.dynamic_rotate %306 by %c1_i32_110 dim 1 : vector<8x128xf32>, i32 -> vector<8x128xf32>
    %c1_i32_111 = arith.constant 1 : i32
    %345 = vector.broadcast %c1_i32_111 : i32 to vector<8x128xi32>
    %346 = arith.cmpi slt, %2, %345 : vector<8x128xi32>
    %347 = vector.shape_cast %307 : vector<8x1xf32> to vector<8x1xf32>
    %348 = vector.broadcast %347 : vector<8x1xf32> to vector<8x128xf32>
    %349 = arith.select %346, %348, %344 : vector<8x128xi1>, vector<8x128xf32>
    %cst_112 = arith.constant 0.128572613 : f32
    %350 = vector.broadcast %cst_112 : f32 to vector<8x128xf32>
    %351 = arith.mulf %350, %349 : vector<8x128xf32>
    %352 = arith.addf %343, %351 : vector<8x128xf32>
    %cst_113 = arith.constant 0.443209797 : f32
    %353 = vector.broadcast %cst_113 : f32 to vector<8x128xf32>
    %354 = arith.mulf %353, %299 : vector<8x128xf32>
    %355 = arith.addf %352, %354 : vector<8x128xf32>
    %cst_114 = arith.constant 0.443209797 : f32
    %356 = vector.broadcast %cst_114 : f32 to vector<8x128xf32>
    %357 = arith.mulf %356, %306 : vector<8x128xf32>
    %358 = arith.addf %355, %357 : vector<8x128xf32>
    %c127_i32_115 = arith.constant 127 : i32
    %359 = tpu.dynamic_rotate %299 by %c127_i32_115 dim 1 : vector<8x128xf32>, i32 -> vector<8x128xf32>
    %c127_i32_116 = arith.constant 127 : i32
    %360 = vector.broadcast %c127_i32_116 : i32 to vector<8x128xi32>
    %361 = arith.cmpi sge, %2, %360 : vector<8x128xi32>
    %362 = vector.shape_cast %308 : vector<8x1xf32> to vector<8x1xf32>
    %363 = vector.broadcast %362 : vector<8x1xf32> to vector<8x128xf32>
    %364 = arith.select %361, %363, %359 : vector<8x128xi1>, vector<8x128xf32>
    %cst_117 = arith.constant 0.128572613 : f32
    %365 = vector.broadcast %cst_117 : f32 to vector<8x128xf32>
    %366 = arith.mulf %365, %364 : vector<8x128xf32>
    %367 = arith.addf %358, %366 : vector<8x128xf32>
    %c127_i32_118 = arith.constant 127 : i32
    %368 = tpu.dynamic_rotate %306 by %c127_i32_118 dim 1 : vector<8x128xf32>, i32 -> vector<8x128xf32>
    %c127_i32_119 = arith.constant 127 : i32
    %369 = vector.broadcast %c127_i32_119 : i32 to vector<8x128xi32>
    %370 = arith.cmpi sge, %2, %369 : vector<8x128xi32>
    %371 = vector.shape_cast %308 : vector<8x1xf32> to vector<8x1xf32>
    %372 = vector.broadcast %371 : vector<8x1xf32> to vector<8x128xf32>
    %373 = arith.select %370, %372, %368 : vector<8x128xi1>, vector<8x128xf32>
    %cst_120 = arith.constant -0.0576573759 : f32
    %374 = vector.broadcast %cst_120 : f32 to vector<8x128xf32>
    %375 = arith.mulf %374, %373 : vector<8x128xf32>
    %376 = arith.addf %367, %375 : vector<8x128xf32>
    %c126_i32_121 = arith.constant 126 : i32
    %377 = tpu.dynamic_rotate %299 by %c126_i32_121 dim 1 : vector<8x128xf32>, i32 -> vector<8x128xf32>
    %c126_i32_122 = arith.constant 126 : i32
    %378 = vector.broadcast %c126_i32_122 : i32 to vector<8x128xi32>
    %379 = arith.cmpi sge, %2, %378 : vector<8x128xi32>
    %380 = vector.shape_cast %308 : vector<8x1xf32> to vector<8x1xf32>
    %381 = vector.broadcast %380 : vector<8x1xf32> to vector<8x128xf32>
    %382 = arith.select %379, %381, %377 : vector<8x128xi1>, vector<8x128xf32>
    %cst_123 = arith.constant -0.0255434643 : f32
    %383 = vector.broadcast %cst_123 : f32 to vector<8x128xf32>
    %384 = arith.mulf %383, %382 : vector<8x128xf32>
    %385 = arith.addf %376, %384 : vector<8x128xf32>
    %c126_i32_124 = arith.constant 126 : i32
    %386 = tpu.dynamic_rotate %306 by %c126_i32_124 dim 1 : vector<8x128xf32>, i32 -> vector<8x128xf32>
    %c126_i32_125 = arith.constant 126 : i32
    %387 = vector.broadcast %c126_i32_125 : i32 to vector<8x128xi32>
    %388 = arith.cmpi sge, %2, %387 : vector<8x128xi32>
    %389 = vector.shape_cast %308 : vector<8x1xf32> to vector<8x1xf32>
    %390 = vector.broadcast %389 : vector<8x1xf32> to vector<8x128xf32>
    %391 = arith.select %388, %390, %386 : vector<8x128xi1>, vector<8x128xf32>
    %cst_126 = arith.constant 0.00938946381 : f32
    %392 = vector.broadcast %cst_126 : f32 to vector<8x128xf32>
    %393 = arith.mulf %392, %391 : vector<8x128xf32>
    %394 = arith.addf %385, %393 : vector<8x128xf32>
    %c125_i32_127 = arith.constant 125 : i32
    %395 = tpu.dynamic_rotate %299 by %c125_i32_127 dim 1 : vector<8x128xf32>, i32 -> vector<8x128xf32>
    %c125_i32_128 = arith.constant 125 : i32
    %396 = vector.broadcast %c125_i32_128 : i32 to vector<8x128xi32>
    %397 = arith.cmpi sge, %2, %396 : vector<8x128xi32>
    %398 = vector.shape_cast %308 : vector<8x1xf32> to vector<8x1xf32>
    %399 = vector.broadcast %398 : vector<8x1xf32> to vector<8x128xf32>
    %400 = arith.select %397, %399, %395 : vector<8x128xi1>, vector<8x128xf32>
    %cst_129 = arith.constant 0.00202896656 : f32
    %401 = vector.broadcast %cst_129 : f32 to vector<8x128xf32>
    %402 = arith.mulf %401, %400 : vector<8x128xf32>
    %403 = arith.addf %394, %402 : vector<8x128xf32>
    %c0_130 = arith.constant 0 : index
    %c0_131 = arith.constant 0 : index
    %c0_132 = arith.constant 0 : index
    %404 = vector.load %arg4[%c0_130, %c0_131, %c0_132] : memref<3x24x8xbf16, #tpu.memory_space<vmem>>, vector<1x24x8xbf16>
    %405 = vector.shape_cast %404 : vector<1x24x8xbf16> to vector<24x8xbf16>
    %c0_133 = arith.constant 0 : index
    %c0_134 = arith.constant 0 : index
    %c0_135 = arith.constant 0 : index
    %406 = vector.load %arg5[%c0_133, %c0_134, %c0_135] : memref<3x8x1xf32, #tpu.memory_space<vmem>>, vector<1x8x1xf32>
    %407 = vector.shape_cast %406 : vector<1x8x1xf32> to vector<8x1xf32>
    %408 = arith.truncf %403 : vector<8x128xf32> to vector<8x128xbf16>
    %cst_136 = arith.constant dense<0.000000e+00> : vector<24x128xf32>
    %409 = tpu.matmul %405, %408, %cst_136 {dimension_numbers = #tpu.dot_dimension_numbers<[1], [0], [0], [1], [0, 0, 1, 1], [], []>} : vector<24x8xbf16>, vector<8x128xbf16>, vector<24x128xf32> -> vector<24x128xf32>
    %410 = vector.extract_strided_slice %409 {offsets = [0, 0], sizes = [8, 128], strides = [1, 1]} : vector<24x128xf32> to vector<8x128xf32>
    %c1_i32_137 = arith.constant 1 : i32
    %411 = tpu.dynamic_rotate %410 by %c1_i32_137 dim 1 : vector<8x128xf32>, i32 -> vector<8x128xf32>
    %c1_i32_138 = arith.constant 1 : i32
    %412 = vector.broadcast %c1_i32_138 : i32 to vector<8x128xi32>
    %413 = arith.cmpi slt, %2, %412 : vector<8x128xi32>
    %cst_139 = arith.constant 0.000000e+00 : f32
    %414 = vector.broadcast %cst_139 : f32 to vector<8x128xf32>
    %415 = arith.select %413, %414, %411 : vector<8x128xi1>, vector<8x128xf32>
    %416 = vector.extract_strided_slice %409 {offsets = [8, 0], sizes = [8, 128], strides = [1, 1]} : vector<24x128xf32> to vector<8x128xf32>
    %417 = arith.addf %415, %416 : vector<8x128xf32>
    %418 = vector.extract_strided_slice %409 {offsets = [16, 0], sizes = [8, 128], strides = [1, 1]} : vector<24x128xf32> to vector<8x128xf32>
    %c127_i32_140 = arith.constant 127 : i32
    %419 = tpu.dynamic_rotate %418 by %c127_i32_140 dim 1 : vector<8x128xf32>, i32 -> vector<8x128xf32>
    %c127_i32_141 = arith.constant 127 : i32
    %420 = vector.broadcast %c127_i32_141 : i32 to vector<8x128xi32>
    %421 = arith.cmpi sge, %2, %420 : vector<8x128xi32>
    %cst_142 = arith.constant 0.000000e+00 : f32
    %422 = vector.broadcast %cst_142 : f32 to vector<8x128xf32>
    %423 = arith.select %421, %422, %419 : vector<8x128xi1>, vector<8x128xf32>
    %424 = arith.addf %417, %423 : vector<8x128xf32>
    %425 = vector.broadcast %407 : vector<8x1xf32> to vector<8x128xf32>
    %426 = arith.addf %424, %425 : vector<8x128xf32>
    %427 = arith.addf %426, %1 : vector<8x128xf32>
    %c1 = arith.constant 1 : index
    %c0_143 = arith.constant 0 : index
    %c0_144 = arith.constant 0 : index
    %428 = vector.load %arg6[%c1, %c0_143, %c0_144] : memref<3x8x1xf32, #tpu.memory_space<vmem>>, vector<1x8x1xf32>
    %429 = vector.shape_cast %428 : vector<1x8x1xf32> to vector<8x1xf32>
    %cst_145 = arith.constant 9.99999971E-10 : f32
    %430 = vector.broadcast %cst_145 : f32 to vector<8x1xf32>
    %431 = arith.addf %429, %430 : vector<8x1xf32>
    %cst_146 = arith.constant 1.000000e+00 : f32
    %432 = vector.broadcast %cst_146 : f32 to vector<8x1xf32>
    %433 = arith.divf %432, %431 : vector<8x1xf32>
    %434 = vector.extract_strided_slice %427 {offsets = [0, 0], sizes = [8, 1], strides = [1, 1]} : vector<8x128xf32> to vector<8x1xf32>
    %435 = vector.extract_strided_slice %427 {offsets = [0, 127], sizes = [8, 1], strides = [1, 1]} : vector<8x128xf32> to vector<8x1xf32>
    %c3_i32_147 = arith.constant 3 : i32
    %436 = tpu.dynamic_rotate %427 by %c3_i32_147 dim 1 : vector<8x128xf32>, i32 -> vector<8x128xf32>
    %c3_i32_148 = arith.constant 3 : i32
    %437 = vector.broadcast %c3_i32_148 : i32 to vector<8x128xi32>
    %438 = arith.cmpi slt, %2, %437 : vector<8x128xi32>
    %439 = vector.shape_cast %434 : vector<8x1xf32> to vector<8x1xf32>
    %440 = vector.broadcast %439 : vector<8x1xf32> to vector<8x128xf32>
    %441 = arith.select %438, %440, %436 : vector<8x128xi1>, vector<8x128xf32>
    %cst_149 = arith.constant 0.00405793311 : f32
    %442 = vector.broadcast %cst_149 : f32 to vector<8x128xf32>
    %443 = arith.mulf %442, %441 : vector<8x128xf32>
    %c2_i32_150 = arith.constant 2 : i32
    %444 = tpu.dynamic_rotate %427 by %c2_i32_150 dim 1 : vector<8x128xf32>, i32 -> vector<8x128xf32>
    %c2_i32_151 = arith.constant 2 : i32
    %445 = vector.broadcast %c2_i32_151 : i32 to vector<8x128xi32>
    %446 = arith.cmpi slt, %2, %445 : vector<8x128xi32>
    %447 = vector.shape_cast %434 : vector<8x1xf32> to vector<8x1xf32>
    %448 = vector.broadcast %447 : vector<8x1xf32> to vector<8x128xf32>
    %449 = arith.select %446, %448, %444 : vector<8x128xi1>, vector<8x128xf32>
    %cst_152 = arith.constant -0.0510869287 : f32
    %450 = vector.broadcast %cst_152 : f32 to vector<8x128xf32>
    %451 = arith.mulf %450, %449 : vector<8x128xf32>
    %452 = arith.addf %443, %451 : vector<8x128xf32>
    %cst_153 = arith.constant 0.0187789276 : f32
    %453 = vector.broadcast %cst_153 : f32 to vector<8x128xf32>
    %454 = arith.mulf %453, %449 : vector<8x128xf32>
    %c1_i32_154 = arith.constant 1 : i32
    %455 = tpu.dynamic_rotate %427 by %c1_i32_154 dim 1 : vector<8x128xf32>, i32 -> vector<8x128xf32>
    %c1_i32_155 = arith.constant 1 : i32
    %456 = vector.broadcast %c1_i32_155 : i32 to vector<8x128xi32>
    %457 = arith.cmpi slt, %2, %456 : vector<8x128xi32>
    %458 = vector.shape_cast %434 : vector<8x1xf32> to vector<8x1xf32>
    %459 = vector.broadcast %458 : vector<8x1xf32> to vector<8x128xf32>
    %460 = arith.select %457, %459, %455 : vector<8x128xi1>, vector<8x128xf32>
    %cst_156 = arith.constant 0.257145226 : f32
    %461 = vector.broadcast %cst_156 : f32 to vector<8x128xf32>
    %462 = arith.mulf %461, %460 : vector<8x128xf32>
    %463 = arith.addf %452, %462 : vector<8x128xf32>
    %cst_157 = arith.constant -0.115314752 : f32
    %464 = vector.broadcast %cst_157 : f32 to vector<8x128xf32>
    %465 = arith.mulf %464, %460 : vector<8x128xf32>
    %466 = arith.addf %454, %465 : vector<8x128xf32>
    %cst_158 = arith.constant 0.886419594 : f32
    %467 = vector.broadcast %cst_158 : f32 to vector<8x128xf32>
    %468 = arith.mulf %467, %427 : vector<8x128xf32>
    %469 = arith.addf %463, %468 : vector<8x128xf32>
    %cst_159 = arith.constant 0.886419594 : f32
    %470 = vector.broadcast %cst_159 : f32 to vector<8x128xf32>
    %471 = arith.mulf %470, %427 : vector<8x128xf32>
    %472 = arith.addf %466, %471 : vector<8x128xf32>
    %c127_i32_160 = arith.constant 127 : i32
    %473 = tpu.dynamic_rotate %427 by %c127_i32_160 dim 1 : vector<8x128xf32>, i32 -> vector<8x128xf32>
    %c127_i32_161 = arith.constant 127 : i32
    %474 = vector.broadcast %c127_i32_161 : i32 to vector<8x128xi32>
    %475 = arith.cmpi sge, %2, %474 : vector<8x128xi32>
    %476 = vector.shape_cast %435 : vector<8x1xf32> to vector<8x1xf32>
    %477 = vector.broadcast %476 : vector<8x1xf32> to vector<8x128xf32>
    %478 = arith.select %475, %477, %473 : vector<8x128xi1>, vector<8x128xf32>
    %cst_162 = arith.constant -0.115314752 : f32
    %479 = vector.broadcast %cst_162 : f32 to vector<8x128xf32>
    %480 = arith.mulf %479, %478 : vector<8x128xf32>
    %481 = arith.addf %469, %480 : vector<8x128xf32>
    %cst_163 = arith.constant 0.257145226 : f32
    %482 = vector.broadcast %cst_163 : f32 to vector<8x128xf32>
    %483 = arith.mulf %482, %478 : vector<8x128xf32>
    %484 = arith.addf %472, %483 : vector<8x128xf32>
    %c126_i32_164 = arith.constant 126 : i32
    %485 = tpu.dynamic_rotate %427 by %c126_i32_164 dim 1 : vector<8x128xf32>, i32 -> vector<8x128xf32>
    %c126_i32_165 = arith.constant 126 : i32
    %486 = vector.broadcast %c126_i32_165 : i32 to vector<8x128xi32>
    %487 = arith.cmpi sge, %2, %486 : vector<8x128xi32>
    %488 = vector.shape_cast %435 : vector<8x1xf32> to vector<8x1xf32>
    %489 = vector.broadcast %488 : vector<8x1xf32> to vector<8x128xf32>
    %490 = arith.select %487, %489, %485 : vector<8x128xi1>, vector<8x128xf32>
    %cst_166 = arith.constant 0.0187789276 : f32
    %491 = vector.broadcast %cst_166 : f32 to vector<8x128xf32>
    %492 = arith.mulf %491, %490 : vector<8x128xf32>
    %493 = arith.addf %481, %492 : vector<8x128xf32>
    %cst_167 = arith.constant -0.0510869287 : f32
    %494 = vector.broadcast %cst_167 : f32 to vector<8x128xf32>
    %495 = arith.mulf %494, %490 : vector<8x128xf32>
    %496 = arith.addf %484, %495 : vector<8x128xf32>
    %c125_i32_168 = arith.constant 125 : i32
    %497 = tpu.dynamic_rotate %427 by %c125_i32_168 dim 1 : vector<8x128xf32>, i32 -> vector<8x128xf32>
    %c125_i32_169 = arith.constant 125 : i32
    %498 = vector.broadcast %c125_i32_169 : i32 to vector<8x128xi32>
    %499 = arith.cmpi sge, %2, %498 : vector<8x128xi32>
    %500 = vector.shape_cast %435 : vector<8x1xf32> to vector<8x1xf32>
    %501 = vector.broadcast %500 : vector<8x1xf32> to vector<8x128xf32>
    %502 = arith.select %499, %501, %497 : vector<8x128xi1>, vector<8x128xf32>
    %cst_170 = arith.constant 0.00405793311 : f32
    %503 = vector.broadcast %cst_170 : f32 to vector<8x128xf32>
    %504 = arith.mulf %503, %502 : vector<8x128xf32>
    %505 = arith.addf %496, %504 : vector<8x128xf32>
    %506 = vector.broadcast %429 : vector<8x1xf32> to vector<8x128xf32>
    %507 = arith.mulf %506, %493 : vector<8x128xf32>
    %508 = math.sin %507 : vector<8x128xf32>
    %509 = arith.mulf %508, %508 : vector<8x128xf32>
    %510 = vector.broadcast %433 : vector<8x1xf32> to vector<8x128xf32>
    %511 = arith.mulf %510, %509 : vector<8x128xf32>
    %512 = arith.addf %493, %511 : vector<8x128xf32>
    %513 = vector.broadcast %429 : vector<8x1xf32> to vector<8x128xf32>
    %514 = arith.mulf %513, %505 : vector<8x128xf32>
    %515 = math.sin %514 : vector<8x128xf32>
    %516 = arith.mulf %515, %515 : vector<8x128xf32>
    %517 = vector.broadcast %433 : vector<8x1xf32> to vector<8x128xf32>
    %518 = arith.mulf %517, %516 : vector<8x128xf32>
    %519 = arith.addf %505, %518 : vector<8x128xf32>
    %520 = vector.extract_strided_slice %512 {offsets = [0, 0], sizes = [8, 1], strides = [1, 1]} : vector<8x128xf32> to vector<8x1xf32>
    %521 = vector.extract_strided_slice %519 {offsets = [0, 127], sizes = [8, 1], strides = [1, 1]} : vector<8x128xf32> to vector<8x1xf32>
    %c3_i32_171 = arith.constant 3 : i32
    %522 = tpu.dynamic_rotate %519 by %c3_i32_171 dim 1 : vector<8x128xf32>, i32 -> vector<8x128xf32>
    %c3_i32_172 = arith.constant 3 : i32
    %523 = vector.broadcast %c3_i32_172 : i32 to vector<8x128xi32>
    %524 = arith.cmpi slt, %2, %523 : vector<8x128xi32>
    %525 = vector.shape_cast %520 : vector<8x1xf32> to vector<8x1xf32>
    %526 = vector.broadcast %525 : vector<8x1xf32> to vector<8x128xf32>
    %527 = arith.select %524, %526, %522 : vector<8x128xi1>, vector<8x128xf32>
    %cst_173 = arith.constant 0.00202896656 : f32
    %528 = vector.broadcast %cst_173 : f32 to vector<8x128xf32>
    %529 = arith.mulf %528, %527 : vector<8x128xf32>
    %c2_i32_174 = arith.constant 2 : i32
    %530 = tpu.dynamic_rotate %512 by %c2_i32_174 dim 1 : vector<8x128xf32>, i32 -> vector<8x128xf32>
    %c2_i32_175 = arith.constant 2 : i32
    %531 = vector.broadcast %c2_i32_175 : i32 to vector<8x128xi32>
    %532 = arith.cmpi slt, %2, %531 : vector<8x128xi32>
    %533 = vector.shape_cast %520 : vector<8x1xf32> to vector<8x1xf32>
    %534 = vector.broadcast %533 : vector<8x1xf32> to vector<8x128xf32>
    %535 = arith.select %532, %534, %530 : vector<8x128xi1>, vector<8x128xf32>
    %cst_176 = arith.constant 0.00938946381 : f32
    %536 = vector.broadcast %cst_176 : f32 to vector<8x128xf32>
    %537 = arith.mulf %536, %535 : vector<8x128xf32>
    %538 = arith.addf %529, %537 : vector<8x128xf32>
    %c2_i32_177 = arith.constant 2 : i32
    %539 = tpu.dynamic_rotate %519 by %c2_i32_177 dim 1 : vector<8x128xf32>, i32 -> vector<8x128xf32>
    %c2_i32_178 = arith.constant 2 : i32
    %540 = vector.broadcast %c2_i32_178 : i32 to vector<8x128xi32>
    %541 = arith.cmpi slt, %2, %540 : vector<8x128xi32>
    %542 = vector.shape_cast %520 : vector<8x1xf32> to vector<8x1xf32>
    %543 = vector.broadcast %542 : vector<8x1xf32> to vector<8x128xf32>
    %544 = arith.select %541, %543, %539 : vector<8x128xi1>, vector<8x128xf32>
    %cst_179 = arith.constant -0.0255434643 : f32
    %545 = vector.broadcast %cst_179 : f32 to vector<8x128xf32>
    %546 = arith.mulf %545, %544 : vector<8x128xf32>
    %547 = arith.addf %538, %546 : vector<8x128xf32>
    %c1_i32_180 = arith.constant 1 : i32
    %548 = tpu.dynamic_rotate %512 by %c1_i32_180 dim 1 : vector<8x128xf32>, i32 -> vector<8x128xf32>
    %c1_i32_181 = arith.constant 1 : i32
    %549 = vector.broadcast %c1_i32_181 : i32 to vector<8x128xi32>
    %550 = arith.cmpi slt, %2, %549 : vector<8x128xi32>
    %551 = vector.shape_cast %520 : vector<8x1xf32> to vector<8x1xf32>
    %552 = vector.broadcast %551 : vector<8x1xf32> to vector<8x128xf32>
    %553 = arith.select %550, %552, %548 : vector<8x128xi1>, vector<8x128xf32>
    %cst_182 = arith.constant -0.0576573759 : f32
    %554 = vector.broadcast %cst_182 : f32 to vector<8x128xf32>
    %555 = arith.mulf %554, %553 : vector<8x128xf32>
    %556 = arith.addf %547, %555 : vector<8x128xf32>
    %c1_i32_183 = arith.constant 1 : i32
    %557 = tpu.dynamic_rotate %519 by %c1_i32_183 dim 1 : vector<8x128xf32>, i32 -> vector<8x128xf32>
    %c1_i32_184 = arith.constant 1 : i32
    %558 = vector.broadcast %c1_i32_184 : i32 to vector<8x128xi32>
    %559 = arith.cmpi slt, %2, %558 : vector<8x128xi32>
    %560 = vector.shape_cast %520 : vector<8x1xf32> to vector<8x1xf32>
    %561 = vector.broadcast %560 : vector<8x1xf32> to vector<8x128xf32>
    %562 = arith.select %559, %561, %557 : vector<8x128xi1>, vector<8x128xf32>
    %cst_185 = arith.constant 0.128572613 : f32
    %563 = vector.broadcast %cst_185 : f32 to vector<8x128xf32>
    %564 = arith.mulf %563, %562 : vector<8x128xf32>
    %565 = arith.addf %556, %564 : vector<8x128xf32>
    %cst_186 = arith.constant 0.443209797 : f32
    %566 = vector.broadcast %cst_186 : f32 to vector<8x128xf32>
    %567 = arith.mulf %566, %512 : vector<8x128xf32>
    %568 = arith.addf %565, %567 : vector<8x128xf32>
    %cst_187 = arith.constant 0.443209797 : f32
    %569 = vector.broadcast %cst_187 : f32 to vector<8x128xf32>
    %570 = arith.mulf %569, %519 : vector<8x128xf32>
    %571 = arith.addf %568, %570 : vector<8x128xf32>
    %c127_i32_188 = arith.constant 127 : i32
    %572 = tpu.dynamic_rotate %512 by %c127_i32_188 dim 1 : vector<8x128xf32>, i32 -> vector<8x128xf32>
    %c127_i32_189 = arith.constant 127 : i32
    %573 = vector.broadcast %c127_i32_189 : i32 to vector<8x128xi32>
    %574 = arith.cmpi sge, %2, %573 : vector<8x128xi32>
    %575 = vector.shape_cast %521 : vector<8x1xf32> to vector<8x1xf32>
    %576 = vector.broadcast %575 : vector<8x1xf32> to vector<8x128xf32>
    %577 = arith.select %574, %576, %572 : vector<8x128xi1>, vector<8x128xf32>
    %cst_190 = arith.constant 0.128572613 : f32
    %578 = vector.broadcast %cst_190 : f32 to vector<8x128xf32>
    %579 = arith.mulf %578, %577 : vector<8x128xf32>
    %580 = arith.addf %571, %579 : vector<8x128xf32>
    %c127_i32_191 = arith.constant 127 : i32
    %581 = tpu.dynamic_rotate %519 by %c127_i32_191 dim 1 : vector<8x128xf32>, i32 -> vector<8x128xf32>
    %c127_i32_192 = arith.constant 127 : i32
    %582 = vector.broadcast %c127_i32_192 : i32 to vector<8x128xi32>
    %583 = arith.cmpi sge, %2, %582 : vector<8x128xi32>
    %584 = vector.shape_cast %521 : vector<8x1xf32> to vector<8x1xf32>
    %585 = vector.broadcast %584 : vector<8x1xf32> to vector<8x128xf32>
    %586 = arith.select %583, %585, %581 : vector<8x128xi1>, vector<8x128xf32>
    %cst_193 = arith.constant -0.0576573759 : f32
    %587 = vector.broadcast %cst_193 : f32 to vector<8x128xf32>
    %588 = arith.mulf %587, %586 : vector<8x128xf32>
    %589 = arith.addf %580, %588 : vector<8x128xf32>
    %c126_i32_194 = arith.constant 126 : i32
    %590 = tpu.dynamic_rotate %512 by %c126_i32_194 dim 1 : vector<8x128xf32>, i32 -> vector<8x128xf32>
    %c126_i32_195 = arith.constant 126 : i32
    %591 = vector.broadcast %c126_i32_195 : i32 to vector<8x128xi32>
    %592 = arith.cmpi sge, %2, %591 : vector<8x128xi32>
    %593 = vector.shape_cast %521 : vector<8x1xf32> to vector<8x1xf32>
    %594 = vector.broadcast %593 : vector<8x1xf32> to vector<8x128xf32>
    %595 = arith.select %592, %594, %590 : vector<8x128xi1>, vector<8x128xf32>
    %cst_196 = arith.constant -0.0255434643 : f32
    %596 = vector.broadcast %cst_196 : f32 to vector<8x128xf32>
    %597 = arith.mulf %596, %595 : vector<8x128xf32>
    %598 = arith.addf %589, %597 : vector<8x128xf32>
    %c126_i32_197 = arith.constant 126 : i32
    %599 = tpu.dynamic_rotate %519 by %c126_i32_197 dim 1 : vector<8x128xf32>, i32 -> vector<8x128xf32>
    %c126_i32_198 = arith.constant 126 : i32
    %600 = vector.broadcast %c126_i32_198 : i32 to vector<8x128xi32>
    %601 = arith.cmpi sge, %2, %600 : vector<8x128xi32>
    %602 = vector.shape_cast %521 : vector<8x1xf32> to vector<8x1xf32>
    %603 = vector.broadcast %602 : vector<8x1xf32> to vector<8x128xf32>
    %604 = arith.select %601, %603, %599 : vector<8x128xi1>, vector<8x128xf32>
    %cst_199 = arith.constant 0.00938946381 : f32
    %605 = vector.broadcast %cst_199 : f32 to vector<8x128xf32>
    %606 = arith.mulf %605, %604 : vector<8x128xf32>
    %607 = arith.addf %598, %606 : vector<8x128xf32>
    %c125_i32_200 = arith.constant 125 : i32
    %608 = tpu.dynamic_rotate %512 by %c125_i32_200 dim 1 : vector<8x128xf32>, i32 -> vector<8x128xf32>
    %c125_i32_201 = arith.constant 125 : i32
    %609 = vector.broadcast %c125_i32_201 : i32 to vector<8x128xi32>
    %610 = arith.cmpi sge, %2, %609 : vector<8x128xi32>
    %611 = vector.shape_cast %521 : vector<8x1xf32> to vector<8x1xf32>
    %612 = vector.broadcast %611 : vector<8x1xf32> to vector<8x128xf32>
    %613 = arith.select %610, %612, %608 : vector<8x128xi1>, vector<8x128xf32>
    %cst_202 = arith.constant 0.00202896656 : f32
    %614 = vector.broadcast %cst_202 : f32 to vector<8x128xf32>
    %615 = arith.mulf %614, %613 : vector<8x128xf32>
    %616 = arith.addf %607, %615 : vector<8x128xf32>
    %c1_203 = arith.constant 1 : index
    %c0_204 = arith.constant 0 : index
    %c0_205 = arith.constant 0 : index
    %617 = vector.load %arg2[%c1_203, %c0_204, %c0_205] : memref<3x24x8xbf16, #tpu.memory_space<vmem>>, vector<1x24x8xbf16>
    %618 = vector.shape_cast %617 : vector<1x24x8xbf16> to vector<24x8xbf16>
    %c1_206 = arith.constant 1 : index
    %c0_207 = arith.constant 0 : index
    %c0_208 = arith.constant 0 : index
    %619 = vector.load %arg3[%c1_206, %c0_207, %c0_208] : memref<3x8x1xf32, #tpu.memory_space<vmem>>, vector<1x8x1xf32>
    %620 = vector.shape_cast %619 : vector<1x8x1xf32> to vector<8x1xf32>
    %621 = arith.truncf %616 : vector<8x128xf32> to vector<8x128xbf16>
    %cst_209 = arith.constant dense<0.000000e+00> : vector<24x128xf32>
    %622 = tpu.matmul %618, %621, %cst_209 {dimension_numbers = #tpu.dot_dimension_numbers<[1], [0], [0], [1], [0, 0, 1, 1], [], []>} : vector<24x8xbf16>, vector<8x128xbf16>, vector<24x128xf32> -> vector<24x128xf32>
    %623 = vector.extract_strided_slice %622 {offsets = [0, 0], sizes = [8, 128], strides = [1, 1]} : vector<24x128xf32> to vector<8x128xf32>
    %c3_i32_210 = arith.constant 3 : i32
    %624 = tpu.dynamic_rotate %623 by %c3_i32_210 dim 1 : vector<8x128xf32>, i32 -> vector<8x128xf32>
    %c3_i32_211 = arith.constant 3 : i32
    %625 = vector.broadcast %c3_i32_211 : i32 to vector<8x128xi32>
    %626 = arith.cmpi slt, %2, %625 : vector<8x128xi32>
    %cst_212 = arith.constant 0.000000e+00 : f32
    %627 = vector.broadcast %cst_212 : f32 to vector<8x128xf32>
    %628 = arith.select %626, %627, %624 : vector<8x128xi1>, vector<8x128xf32>
    %629 = vector.extract_strided_slice %622 {offsets = [8, 0], sizes = [8, 128], strides = [1, 1]} : vector<24x128xf32> to vector<8x128xf32>
    %630 = arith.addf %628, %629 : vector<8x128xf32>
    %631 = vector.extract_strided_slice %622 {offsets = [16, 0], sizes = [8, 128], strides = [1, 1]} : vector<24x128xf32> to vector<8x128xf32>
    %c125_i32_213 = arith.constant 125 : i32
    %632 = tpu.dynamic_rotate %631 by %c125_i32_213 dim 1 : vector<8x128xf32>, i32 -> vector<8x128xf32>
    %c125_i32_214 = arith.constant 125 : i32
    %633 = vector.broadcast %c125_i32_214 : i32 to vector<8x128xi32>
    %634 = arith.cmpi sge, %2, %633 : vector<8x128xi32>
    %cst_215 = arith.constant 0.000000e+00 : f32
    %635 = vector.broadcast %cst_215 : f32 to vector<8x128xf32>
    %636 = arith.select %634, %635, %632 : vector<8x128xi1>, vector<8x128xf32>
    %637 = arith.addf %630, %636 : vector<8x128xf32>
    %638 = vector.broadcast %620 : vector<8x1xf32> to vector<8x128xf32>
    %639 = arith.addf %637, %638 : vector<8x128xf32>
    %c1_216 = arith.constant 1 : index
    %c0_217 = arith.constant 0 : index
    %c0_218 = arith.constant 0 : index
    %640 = vector.load %arg7[%c1_216, %c0_217, %c0_218] : memref<3x8x1xf32, #tpu.memory_space<vmem>>, vector<1x8x1xf32>
    %641 = vector.shape_cast %640 : vector<1x8x1xf32> to vector<8x1xf32>
    %cst_219 = arith.constant 9.99999971E-10 : f32
    %642 = vector.broadcast %cst_219 : f32 to vector<8x1xf32>
    %643 = arith.addf %641, %642 : vector<8x1xf32>
    %cst_220 = arith.constant 1.000000e+00 : f32
    %644 = vector.broadcast %cst_220 : f32 to vector<8x1xf32>
    %645 = arith.divf %644, %643 : vector<8x1xf32>
    %646 = vector.extract_strided_slice %639 {offsets = [0, 0], sizes = [8, 1], strides = [1, 1]} : vector<8x128xf32> to vector<8x1xf32>
    %647 = vector.extract_strided_slice %639 {offsets = [0, 127], sizes = [8, 1], strides = [1, 1]} : vector<8x128xf32> to vector<8x1xf32>
    %c3_i32_221 = arith.constant 3 : i32
    %648 = tpu.dynamic_rotate %639 by %c3_i32_221 dim 1 : vector<8x128xf32>, i32 -> vector<8x128xf32>
    %c3_i32_222 = arith.constant 3 : i32
    %649 = vector.broadcast %c3_i32_222 : i32 to vector<8x128xi32>
    %650 = arith.cmpi slt, %2, %649 : vector<8x128xi32>
    %651 = vector.shape_cast %646 : vector<8x1xf32> to vector<8x1xf32>
    %652 = vector.broadcast %651 : vector<8x1xf32> to vector<8x128xf32>
    %653 = arith.select %650, %652, %648 : vector<8x128xi1>, vector<8x128xf32>
    %cst_223 = arith.constant 0.00405793311 : f32
    %654 = vector.broadcast %cst_223 : f32 to vector<8x128xf32>
    %655 = arith.mulf %654, %653 : vector<8x128xf32>
    %c2_i32_224 = arith.constant 2 : i32
    %656 = tpu.dynamic_rotate %639 by %c2_i32_224 dim 1 : vector<8x128xf32>, i32 -> vector<8x128xf32>
    %c2_i32_225 = arith.constant 2 : i32
    %657 = vector.broadcast %c2_i32_225 : i32 to vector<8x128xi32>
    %658 = arith.cmpi slt, %2, %657 : vector<8x128xi32>
    %659 = vector.shape_cast %646 : vector<8x1xf32> to vector<8x1xf32>
    %660 = vector.broadcast %659 : vector<8x1xf32> to vector<8x128xf32>
    %661 = arith.select %658, %660, %656 : vector<8x128xi1>, vector<8x128xf32>
    %cst_226 = arith.constant -0.0510869287 : f32
    %662 = vector.broadcast %cst_226 : f32 to vector<8x128xf32>
    %663 = arith.mulf %662, %661 : vector<8x128xf32>
    %664 = arith.addf %655, %663 : vector<8x128xf32>
    %cst_227 = arith.constant 0.0187789276 : f32
    %665 = vector.broadcast %cst_227 : f32 to vector<8x128xf32>
    %666 = arith.mulf %665, %661 : vector<8x128xf32>
    %c1_i32_228 = arith.constant 1 : i32
    %667 = tpu.dynamic_rotate %639 by %c1_i32_228 dim 1 : vector<8x128xf32>, i32 -> vector<8x128xf32>
    %c1_i32_229 = arith.constant 1 : i32
    %668 = vector.broadcast %c1_i32_229 : i32 to vector<8x128xi32>
    %669 = arith.cmpi slt, %2, %668 : vector<8x128xi32>
    %670 = vector.shape_cast %646 : vector<8x1xf32> to vector<8x1xf32>
    %671 = vector.broadcast %670 : vector<8x1xf32> to vector<8x128xf32>
    %672 = arith.select %669, %671, %667 : vector<8x128xi1>, vector<8x128xf32>
    %cst_230 = arith.constant 0.257145226 : f32
    %673 = vector.broadcast %cst_230 : f32 to vector<8x128xf32>
    %674 = arith.mulf %673, %672 : vector<8x128xf32>
    %675 = arith.addf %664, %674 : vector<8x128xf32>
    %cst_231 = arith.constant -0.115314752 : f32
    %676 = vector.broadcast %cst_231 : f32 to vector<8x128xf32>
    %677 = arith.mulf %676, %672 : vector<8x128xf32>
    %678 = arith.addf %666, %677 : vector<8x128xf32>
    %cst_232 = arith.constant 0.886419594 : f32
    %679 = vector.broadcast %cst_232 : f32 to vector<8x128xf32>
    %680 = arith.mulf %679, %639 : vector<8x128xf32>
    %681 = arith.addf %675, %680 : vector<8x128xf32>
    %cst_233 = arith.constant 0.886419594 : f32
    %682 = vector.broadcast %cst_233 : f32 to vector<8x128xf32>
    %683 = arith.mulf %682, %639 : vector<8x128xf32>
    %684 = arith.addf %678, %683 : vector<8x128xf32>
    %c127_i32_234 = arith.constant 127 : i32
    %685 = tpu.dynamic_rotate %639 by %c127_i32_234 dim 1 : vector<8x128xf32>, i32 -> vector<8x128xf32>
    %c127_i32_235 = arith.constant 127 : i32
    %686 = vector.broadcast %c127_i32_235 : i32 to vector<8x128xi32>
    %687 = arith.cmpi sge, %2, %686 : vector<8x128xi32>
    %688 = vector.shape_cast %647 : vector<8x1xf32> to vector<8x1xf32>
    %689 = vector.broadcast %688 : vector<8x1xf32> to vector<8x128xf32>
    %690 = arith.select %687, %689, %685 : vector<8x128xi1>, vector<8x128xf32>
    %cst_236 = arith.constant -0.115314752 : f32
    %691 = vector.broadcast %cst_236 : f32 to vector<8x128xf32>
    %692 = arith.mulf %691, %690 : vector<8x128xf32>
    %693 = arith.addf %681, %692 : vector<8x128xf32>
    %cst_237 = arith.constant 0.257145226 : f32
    %694 = vector.broadcast %cst_237 : f32 to vector<8x128xf32>
    %695 = arith.mulf %694, %690 : vector<8x128xf32>
    %696 = arith.addf %684, %695 : vector<8x128xf32>
    %c126_i32_238 = arith.constant 126 : i32
    %697 = tpu.dynamic_rotate %639 by %c126_i32_238 dim 1 : vector<8x128xf32>, i32 -> vector<8x128xf32>
    %c126_i32_239 = arith.constant 126 : i32
    %698 = vector.broadcast %c126_i32_239 : i32 to vector<8x128xi32>
    %699 = arith.cmpi sge, %2, %698 : vector<8x128xi32>
    %700 = vector.shape_cast %647 : vector<8x1xf32> to vector<8x1xf32>
    %701 = vector.broadcast %700 : vector<8x1xf32> to vector<8x128xf32>
    %702 = arith.select %699, %701, %697 : vector<8x128xi1>, vector<8x128xf32>
    %cst_240 = arith.constant 0.0187789276 : f32
    %703 = vector.broadcast %cst_240 : f32 to vector<8x128xf32>
    %704 = arith.mulf %703, %702 : vector<8x128xf32>
    %705 = arith.addf %693, %704 : vector<8x128xf32>
    %cst_241 = arith.constant -0.0510869287 : f32
    %706 = vector.broadcast %cst_241 : f32 to vector<8x128xf32>
    %707 = arith.mulf %706, %702 : vector<8x128xf32>
    %708 = arith.addf %696, %707 : vector<8x128xf32>
    %c125_i32_242 = arith.constant 125 : i32
    %709 = tpu.dynamic_rotate %639 by %c125_i32_242 dim 1 : vector<8x128xf32>, i32 -> vector<8x128xf32>
    %c125_i32_243 = arith.constant 125 : i32
    %710 = vector.broadcast %c125_i32_243 : i32 to vector<8x128xi32>
    %711 = arith.cmpi sge, %2, %710 : vector<8x128xi32>
    %712 = vector.shape_cast %647 : vector<8x1xf32> to vector<8x1xf32>
    %713 = vector.broadcast %712 : vector<8x1xf32> to vector<8x128xf32>
    %714 = arith.select %711, %713, %709 : vector<8x128xi1>, vector<8x128xf32>
    %cst_244 = arith.constant 0.00405793311 : f32
    %715 = vector.broadcast %cst_244 : f32 to vector<8x128xf32>
    %716 = arith.mulf %715, %714 : vector<8x128xf32>
    %717 = arith.addf %708, %716 : vector<8x128xf32>
    %718 = vector.broadcast %641 : vector<8x1xf32> to vector<8x128xf32>
    %719 = arith.mulf %718, %705 : vector<8x128xf32>
    %720 = math.sin %719 : vector<8x128xf32>
    %721 = arith.mulf %720, %720 : vector<8x128xf32>
    %722 = vector.broadcast %645 : vector<8x1xf32> to vector<8x128xf32>
    %723 = arith.mulf %722, %721 : vector<8x128xf32>
    %724 = arith.addf %705, %723 : vector<8x128xf32>
    %725 = vector.broadcast %641 : vector<8x1xf32> to vector<8x128xf32>
    %726 = arith.mulf %725, %717 : vector<8x128xf32>
    %727 = math.sin %726 : vector<8x128xf32>
    %728 = arith.mulf %727, %727 : vector<8x128xf32>
    %729 = vector.broadcast %645 : vector<8x1xf32> to vector<8x128xf32>
    %730 = arith.mulf %729, %728 : vector<8x128xf32>
    %731 = arith.addf %717, %730 : vector<8x128xf32>
    %732 = vector.extract_strided_slice %724 {offsets = [0, 0], sizes = [8, 1], strides = [1, 1]} : vector<8x128xf32> to vector<8x1xf32>
    %733 = vector.extract_strided_slice %731 {offsets = [0, 127], sizes = [8, 1], strides = [1, 1]} : vector<8x128xf32> to vector<8x1xf32>
    %c3_i32_245 = arith.constant 3 : i32
    %734 = tpu.dynamic_rotate %731 by %c3_i32_245 dim 1 : vector<8x128xf32>, i32 -> vector<8x128xf32>
    %c3_i32_246 = arith.constant 3 : i32
    %735 = vector.broadcast %c3_i32_246 : i32 to vector<8x128xi32>
    %736 = arith.cmpi slt, %2, %735 : vector<8x128xi32>
    %737 = vector.shape_cast %732 : vector<8x1xf32> to vector<8x1xf32>
    %738 = vector.broadcast %737 : vector<8x1xf32> to vector<8x128xf32>
    %739 = arith.select %736, %738, %734 : vector<8x128xi1>, vector<8x128xf32>
    %cst_247 = arith.constant 0.00202896656 : f32
    %740 = vector.broadcast %cst_247 : f32 to vector<8x128xf32>
    %741 = arith.mulf %740, %739 : vector<8x128xf32>
    %c2_i32_248 = arith.constant 2 : i32
    %742 = tpu.dynamic_rotate %724 by %c2_i32_248 dim 1 : vector<8x128xf32>, i32 -> vector<8x128xf32>
    %c2_i32_249 = arith.constant 2 : i32
    %743 = vector.broadcast %c2_i32_249 : i32 to vector<8x128xi32>
    %744 = arith.cmpi slt, %2, %743 : vector<8x128xi32>
    %745 = vector.shape_cast %732 : vector<8x1xf32> to vector<8x1xf32>
    %746 = vector.broadcast %745 : vector<8x1xf32> to vector<8x128xf32>
    %747 = arith.select %744, %746, %742 : vector<8x128xi1>, vector<8x128xf32>
    %cst_250 = arith.constant 0.00938946381 : f32
    %748 = vector.broadcast %cst_250 : f32 to vector<8x128xf32>
    %749 = arith.mulf %748, %747 : vector<8x128xf32>
    %750 = arith.addf %741, %749 : vector<8x128xf32>
    %c2_i32_251 = arith.constant 2 : i32
    %751 = tpu.dynamic_rotate %731 by %c2_i32_251 dim 1 : vector<8x128xf32>, i32 -> vector<8x128xf32>
    %c2_i32_252 = arith.constant 2 : i32
    %752 = vector.broadcast %c2_i32_252 : i32 to vector<8x128xi32>
    %753 = arith.cmpi slt, %2, %752 : vector<8x128xi32>
    %754 = vector.shape_cast %732 : vector<8x1xf32> to vector<8x1xf32>
    %755 = vector.broadcast %754 : vector<8x1xf32> to vector<8x128xf32>
    %756 = arith.select %753, %755, %751 : vector<8x128xi1>, vector<8x128xf32>
    %cst_253 = arith.constant -0.0255434643 : f32
    %757 = vector.broadcast %cst_253 : f32 to vector<8x128xf32>
    %758 = arith.mulf %757, %756 : vector<8x128xf32>
    %759 = arith.addf %750, %758 : vector<8x128xf32>
    %c1_i32_254 = arith.constant 1 : i32
    %760 = tpu.dynamic_rotate %724 by %c1_i32_254 dim 1 : vector<8x128xf32>, i32 -> vector<8x128xf32>
    %c1_i32_255 = arith.constant 1 : i32
    %761 = vector.broadcast %c1_i32_255 : i32 to vector<8x128xi32>
    %762 = arith.cmpi slt, %2, %761 : vector<8x128xi32>
    %763 = vector.shape_cast %732 : vector<8x1xf32> to vector<8x1xf32>
    %764 = vector.broadcast %763 : vector<8x1xf32> to vector<8x128xf32>
    %765 = arith.select %762, %764, %760 : vector<8x128xi1>, vector<8x128xf32>
    %cst_256 = arith.constant -0.0576573759 : f32
    %766 = vector.broadcast %cst_256 : f32 to vector<8x128xf32>
    %767 = arith.mulf %766, %765 : vector<8x128xf32>
    %768 = arith.addf %759, %767 : vector<8x128xf32>
    %c1_i32_257 = arith.constant 1 : i32
    %769 = tpu.dynamic_rotate %731 by %c1_i32_257 dim 1 : vector<8x128xf32>, i32 -> vector<8x128xf32>
    %c1_i32_258 = arith.constant 1 : i32
    %770 = vector.broadcast %c1_i32_258 : i32 to vector<8x128xi32>
    %771 = arith.cmpi slt, %2, %770 : vector<8x128xi32>
    %772 = vector.shape_cast %732 : vector<8x1xf32> to vector<8x1xf32>
    %773 = vector.broadcast %772 : vector<8x1xf32> to vector<8x128xf32>
    %774 = arith.select %771, %773, %769 : vector<8x128xi1>, vector<8x128xf32>
    %cst_259 = arith.constant 0.128572613 : f32
    %775 = vector.broadcast %cst_259 : f32 to vector<8x128xf32>
    %776 = arith.mulf %775, %774 : vector<8x128xf32>
    %777 = arith.addf %768, %776 : vector<8x128xf32>
    %cst_260 = arith.constant 0.443209797 : f32
    %778 = vector.broadcast %cst_260 : f32 to vector<8x128xf32>
    %779 = arith.mulf %778, %724 : vector<8x128xf32>
    %780 = arith.addf %777, %779 : vector<8x128xf32>
    %cst_261 = arith.constant 0.443209797 : f32
    %781 = vector.broadcast %cst_261 : f32 to vector<8x128xf32>
    %782 = arith.mulf %781, %731 : vector<8x128xf32>
    %783 = arith.addf %780, %782 : vector<8x128xf32>
    %c127_i32_262 = arith.constant 127 : i32
    %784 = tpu.dynamic_rotate %724 by %c127_i32_262 dim 1 : vector<8x128xf32>, i32 -> vector<8x128xf32>
    %c127_i32_263 = arith.constant 127 : i32
    %785 = vector.broadcast %c127_i32_263 : i32 to vector<8x128xi32>
    %786 = arith.cmpi sge, %2, %785 : vector<8x128xi32>
    %787 = vector.shape_cast %733 : vector<8x1xf32> to vector<8x1xf32>
    %788 = vector.broadcast %787 : vector<8x1xf32> to vector<8x128xf32>
    %789 = arith.select %786, %788, %784 : vector<8x128xi1>, vector<8x128xf32>
    %cst_264 = arith.constant 0.128572613 : f32
    %790 = vector.broadcast %cst_264 : f32 to vector<8x128xf32>
    %791 = arith.mulf %790, %789 : vector<8x128xf32>
    %792 = arith.addf %783, %791 : vector<8x128xf32>
    %c127_i32_265 = arith.constant 127 : i32
    %793 = tpu.dynamic_rotate %731 by %c127_i32_265 dim 1 : vector<8x128xf32>, i32 -> vector<8x128xf32>
    %c127_i32_266 = arith.constant 127 : i32
    %794 = vector.broadcast %c127_i32_266 : i32 to vector<8x128xi32>
    %795 = arith.cmpi sge, %2, %794 : vector<8x128xi32>
    %796 = vector.shape_cast %733 : vector<8x1xf32> to vector<8x1xf32>
    %797 = vector.broadcast %796 : vector<8x1xf32> to vector<8x128xf32>
    %798 = arith.select %795, %797, %793 : vector<8x128xi1>, vector<8x128xf32>
    %cst_267 = arith.constant -0.0576573759 : f32
    %799 = vector.broadcast %cst_267 : f32 to vector<8x128xf32>
    %800 = arith.mulf %799, %798 : vector<8x128xf32>
    %801 = arith.addf %792, %800 : vector<8x128xf32>
    %c126_i32_268 = arith.constant 126 : i32
    %802 = tpu.dynamic_rotate %724 by %c126_i32_268 dim 1 : vector<8x128xf32>, i32 -> vector<8x128xf32>
    %c126_i32_269 = arith.constant 126 : i32
    %803 = vector.broadcast %c126_i32_269 : i32 to vector<8x128xi32>
    %804 = arith.cmpi sge, %2, %803 : vector<8x128xi32>
    %805 = vector.shape_cast %733 : vector<8x1xf32> to vector<8x1xf32>
    %806 = vector.broadcast %805 : vector<8x1xf32> to vector<8x128xf32>
    %807 = arith.select %804, %806, %802 : vector<8x128xi1>, vector<8x128xf32>
    %cst_270 = arith.constant -0.0255434643 : f32
    %808 = vector.broadcast %cst_270 : f32 to vector<8x128xf32>
    %809 = arith.mulf %808, %807 : vector<8x128xf32>
    %810 = arith.addf %801, %809 : vector<8x128xf32>
    %c126_i32_271 = arith.constant 126 : i32
    %811 = tpu.dynamic_rotate %731 by %c126_i32_271 dim 1 : vector<8x128xf32>, i32 -> vector<8x128xf32>
    %c126_i32_272 = arith.constant 126 : i32
    %812 = vector.broadcast %c126_i32_272 : i32 to vector<8x128xi32>
    %813 = arith.cmpi sge, %2, %812 : vector<8x128xi32>
    %814 = vector.shape_cast %733 : vector<8x1xf32> to vector<8x1xf32>
    %815 = vector.broadcast %814 : vector<8x1xf32> to vector<8x128xf32>
    %816 = arith.select %813, %815, %811 : vector<8x128xi1>, vector<8x128xf32>
    %cst_273 = arith.constant 0.00938946381 : f32
    %817 = vector.broadcast %cst_273 : f32 to vector<8x128xf32>
    %818 = arith.mulf %817, %816 : vector<8x128xf32>
    %819 = arith.addf %810, %818 : vector<8x128xf32>
    %c125_i32_274 = arith.constant 125 : i32
    %820 = tpu.dynamic_rotate %724 by %c125_i32_274 dim 1 : vector<8x128xf32>, i32 -> vector<8x128xf32>
    %c125_i32_275 = arith.constant 125 : i32
    %821 = vector.broadcast %c125_i32_275 : i32 to vector<8x128xi32>
    %822 = arith.cmpi sge, %2, %821 : vector<8x128xi32>
    %823 = vector.shape_cast %733 : vector<8x1xf32> to vector<8x1xf32>
    %824 = vector.broadcast %823 : vector<8x1xf32> to vector<8x128xf32>
    %825 = arith.select %822, %824, %820 : vector<8x128xi1>, vector<8x128xf32>
    %cst_276 = arith.constant 0.00202896656 : f32
    %826 = vector.broadcast %cst_276 : f32 to vector<8x128xf32>
    %827 = arith.mulf %826, %825 : vector<8x128xf32>
    %828 = arith.addf %819, %827 : vector<8x128xf32>
    %c1_277 = arith.constant 1 : index
    %c0_278 = arith.constant 0 : index
    %c0_279 = arith.constant 0 : index
    %829 = vector.load %arg4[%c1_277, %c0_278, %c0_279] : memref<3x24x8xbf16, #tpu.memory_space<vmem>>, vector<1x24x8xbf16>
    %830 = vector.shape_cast %829 : vector<1x24x8xbf16> to vector<24x8xbf16>
    %c1_280 = arith.constant 1 : index
    %c0_281 = arith.constant 0 : index
    %c0_282 = arith.constant 0 : index
    %831 = vector.load %arg5[%c1_280, %c0_281, %c0_282] : memref<3x8x1xf32, #tpu.memory_space<vmem>>, vector<1x8x1xf32>
    %832 = vector.shape_cast %831 : vector<1x8x1xf32> to vector<8x1xf32>
    %833 = arith.truncf %828 : vector<8x128xf32> to vector<8x128xbf16>
    %cst_283 = arith.constant dense<0.000000e+00> : vector<24x128xf32>
    %834 = tpu.matmul %830, %833, %cst_283 {dimension_numbers = #tpu.dot_dimension_numbers<[1], [0], [0], [1], [0, 0, 1, 1], [], []>} : vector<24x8xbf16>, vector<8x128xbf16>, vector<24x128xf32> -> vector<24x128xf32>
    %835 = vector.extract_strided_slice %834 {offsets = [0, 0], sizes = [8, 128], strides = [1, 1]} : vector<24x128xf32> to vector<8x128xf32>
    %c1_i32_284 = arith.constant 1 : i32
    %836 = tpu.dynamic_rotate %835 by %c1_i32_284 dim 1 : vector<8x128xf32>, i32 -> vector<8x128xf32>
    %c1_i32_285 = arith.constant 1 : i32
    %837 = vector.broadcast %c1_i32_285 : i32 to vector<8x128xi32>
    %838 = arith.cmpi slt, %2, %837 : vector<8x128xi32>
    %cst_286 = arith.constant 0.000000e+00 : f32
    %839 = vector.broadcast %cst_286 : f32 to vector<8x128xf32>
    %840 = arith.select %838, %839, %836 : vector<8x128xi1>, vector<8x128xf32>
    %841 = vector.extract_strided_slice %834 {offsets = [8, 0], sizes = [8, 128], strides = [1, 1]} : vector<24x128xf32> to vector<8x128xf32>
    %842 = arith.addf %840, %841 : vector<8x128xf32>
    %843 = vector.extract_strided_slice %834 {offsets = [16, 0], sizes = [8, 128], strides = [1, 1]} : vector<24x128xf32> to vector<8x128xf32>
    %c127_i32_287 = arith.constant 127 : i32
    %844 = tpu.dynamic_rotate %843 by %c127_i32_287 dim 1 : vector<8x128xf32>, i32 -> vector<8x128xf32>
    %c127_i32_288 = arith.constant 127 : i32
    %845 = vector.broadcast %c127_i32_288 : i32 to vector<8x128xi32>
    %846 = arith.cmpi sge, %2, %845 : vector<8x128xi32>
    %cst_289 = arith.constant 0.000000e+00 : f32
    %847 = vector.broadcast %cst_289 : f32 to vector<8x128xf32>
    %848 = arith.select %846, %847, %844 : vector<8x128xi1>, vector<8x128xf32>
    %849 = arith.addf %842, %848 : vector<8x128xf32>
    %850 = vector.broadcast %832 : vector<8x1xf32> to vector<8x128xf32>
    %851 = arith.addf %849, %850 : vector<8x128xf32>
    %852 = arith.addf %851, %427 : vector<8x128xf32>
    %c2 = arith.constant 2 : index
    %c0_290 = arith.constant 0 : index
    %c0_291 = arith.constant 0 : index
    %853 = vector.load %arg6[%c2, %c0_290, %c0_291] : memref<3x8x1xf32, #tpu.memory_space<vmem>>, vector<1x8x1xf32>
    %854 = vector.shape_cast %853 : vector<1x8x1xf32> to vector<8x1xf32>
    %cst_292 = arith.constant 9.99999971E-10 : f32
    %855 = vector.broadcast %cst_292 : f32 to vector<8x1xf32>
    %856 = arith.addf %854, %855 : vector<8x1xf32>
    %cst_293 = arith.constant 1.000000e+00 : f32
    %857 = vector.broadcast %cst_293 : f32 to vector<8x1xf32>
    %858 = arith.divf %857, %856 : vector<8x1xf32>
    %859 = vector.extract_strided_slice %852 {offsets = [0, 0], sizes = [8, 1], strides = [1, 1]} : vector<8x128xf32> to vector<8x1xf32>
    %860 = vector.extract_strided_slice %852 {offsets = [0, 127], sizes = [8, 1], strides = [1, 1]} : vector<8x128xf32> to vector<8x1xf32>
    %c3_i32_294 = arith.constant 3 : i32
    %861 = tpu.dynamic_rotate %852 by %c3_i32_294 dim 1 : vector<8x128xf32>, i32 -> vector<8x128xf32>
    %c3_i32_295 = arith.constant 3 : i32
    %862 = vector.broadcast %c3_i32_295 : i32 to vector<8x128xi32>
    %863 = arith.cmpi slt, %2, %862 : vector<8x128xi32>
    %864 = vector.shape_cast %859 : vector<8x1xf32> to vector<8x1xf32>
    %865 = vector.broadcast %864 : vector<8x1xf32> to vector<8x128xf32>
    %866 = arith.select %863, %865, %861 : vector<8x128xi1>, vector<8x128xf32>
    %cst_296 = arith.constant 0.00405793311 : f32
    %867 = vector.broadcast %cst_296 : f32 to vector<8x128xf32>
    %868 = arith.mulf %867, %866 : vector<8x128xf32>
    %c2_i32_297 = arith.constant 2 : i32
    %869 = tpu.dynamic_rotate %852 by %c2_i32_297 dim 1 : vector<8x128xf32>, i32 -> vector<8x128xf32>
    %c2_i32_298 = arith.constant 2 : i32
    %870 = vector.broadcast %c2_i32_298 : i32 to vector<8x128xi32>
    %871 = arith.cmpi slt, %2, %870 : vector<8x128xi32>
    %872 = vector.shape_cast %859 : vector<8x1xf32> to vector<8x1xf32>
    %873 = vector.broadcast %872 : vector<8x1xf32> to vector<8x128xf32>
    %874 = arith.select %871, %873, %869 : vector<8x128xi1>, vector<8x128xf32>
    %cst_299 = arith.constant -0.0510869287 : f32
    %875 = vector.broadcast %cst_299 : f32 to vector<8x128xf32>
    %876 = arith.mulf %875, %874 : vector<8x128xf32>
    %877 = arith.addf %868, %876 : vector<8x128xf32>
    %cst_300 = arith.constant 0.0187789276 : f32
    %878 = vector.broadcast %cst_300 : f32 to vector<8x128xf32>
    %879 = arith.mulf %878, %874 : vector<8x128xf32>
    %c1_i32_301 = arith.constant 1 : i32
    %880 = tpu.dynamic_rotate %852 by %c1_i32_301 dim 1 : vector<8x128xf32>, i32 -> vector<8x128xf32>
    %c1_i32_302 = arith.constant 1 : i32
    %881 = vector.broadcast %c1_i32_302 : i32 to vector<8x128xi32>
    %882 = arith.cmpi slt, %2, %881 : vector<8x128xi32>
    %883 = vector.shape_cast %859 : vector<8x1xf32> to vector<8x1xf32>
    %884 = vector.broadcast %883 : vector<8x1xf32> to vector<8x128xf32>
    %885 = arith.select %882, %884, %880 : vector<8x128xi1>, vector<8x128xf32>
    %cst_303 = arith.constant 0.257145226 : f32
    %886 = vector.broadcast %cst_303 : f32 to vector<8x128xf32>
    %887 = arith.mulf %886, %885 : vector<8x128xf32>
    %888 = arith.addf %877, %887 : vector<8x128xf32>
    %cst_304 = arith.constant -0.115314752 : f32
    %889 = vector.broadcast %cst_304 : f32 to vector<8x128xf32>
    %890 = arith.mulf %889, %885 : vector<8x128xf32>
    %891 = arith.addf %879, %890 : vector<8x128xf32>
    %cst_305 = arith.constant 0.886419594 : f32
    %892 = vector.broadcast %cst_305 : f32 to vector<8x128xf32>
    %893 = arith.mulf %892, %852 : vector<8x128xf32>
    %894 = arith.addf %888, %893 : vector<8x128xf32>
    %cst_306 = arith.constant 0.886419594 : f32
    %895 = vector.broadcast %cst_306 : f32 to vector<8x128xf32>
    %896 = arith.mulf %895, %852 : vector<8x128xf32>
    %897 = arith.addf %891, %896 : vector<8x128xf32>
    %c127_i32_307 = arith.constant 127 : i32
    %898 = tpu.dynamic_rotate %852 by %c127_i32_307 dim 1 : vector<8x128xf32>, i32 -> vector<8x128xf32>
    %c127_i32_308 = arith.constant 127 : i32
    %899 = vector.broadcast %c127_i32_308 : i32 to vector<8x128xi32>
    %900 = arith.cmpi sge, %2, %899 : vector<8x128xi32>
    %901 = vector.shape_cast %860 : vector<8x1xf32> to vector<8x1xf32>
    %902 = vector.broadcast %901 : vector<8x1xf32> to vector<8x128xf32>
    %903 = arith.select %900, %902, %898 : vector<8x128xi1>, vector<8x128xf32>
    %cst_309 = arith.constant -0.115314752 : f32
    %904 = vector.broadcast %cst_309 : f32 to vector<8x128xf32>
    %905 = arith.mulf %904, %903 : vector<8x128xf32>
    %906 = arith.addf %894, %905 : vector<8x128xf32>
    %cst_310 = arith.constant 0.257145226 : f32
    %907 = vector.broadcast %cst_310 : f32 to vector<8x128xf32>
    %908 = arith.mulf %907, %903 : vector<8x128xf32>
    %909 = arith.addf %897, %908 : vector<8x128xf32>
    %c126_i32_311 = arith.constant 126 : i32
    %910 = tpu.dynamic_rotate %852 by %c126_i32_311 dim 1 : vector<8x128xf32>, i32 -> vector<8x128xf32>
    %c126_i32_312 = arith.constant 126 : i32
    %911 = vector.broadcast %c126_i32_312 : i32 to vector<8x128xi32>
    %912 = arith.cmpi sge, %2, %911 : vector<8x128xi32>
    %913 = vector.shape_cast %860 : vector<8x1xf32> to vector<8x1xf32>
    %914 = vector.broadcast %913 : vector<8x1xf32> to vector<8x128xf32>
    %915 = arith.select %912, %914, %910 : vector<8x128xi1>, vector<8x128xf32>
    %cst_313 = arith.constant 0.0187789276 : f32
    %916 = vector.broadcast %cst_313 : f32 to vector<8x128xf32>
    %917 = arith.mulf %916, %915 : vector<8x128xf32>
    %918 = arith.addf %906, %917 : vector<8x128xf32>
    %cst_314 = arith.constant -0.0510869287 : f32
    %919 = vector.broadcast %cst_314 : f32 to vector<8x128xf32>
    %920 = arith.mulf %919, %915 : vector<8x128xf32>
    %921 = arith.addf %909, %920 : vector<8x128xf32>
    %c125_i32_315 = arith.constant 125 : i32
    %922 = tpu.dynamic_rotate %852 by %c125_i32_315 dim 1 : vector<8x128xf32>, i32 -> vector<8x128xf32>
    %c125_i32_316 = arith.constant 125 : i32
    %923 = vector.broadcast %c125_i32_316 : i32 to vector<8x128xi32>
    %924 = arith.cmpi sge, %2, %923 : vector<8x128xi32>
    %925 = vector.shape_cast %860 : vector<8x1xf32> to vector<8x1xf32>
    %926 = vector.broadcast %925 : vector<8x1xf32> to vector<8x128xf32>
    %927 = arith.select %924, %926, %922 : vector<8x128xi1>, vector<8x128xf32>
    %cst_317 = arith.constant 0.00405793311 : f32
    %928 = vector.broadcast %cst_317 : f32 to vector<8x128xf32>
    %929 = arith.mulf %928, %927 : vector<8x128xf32>
    %930 = arith.addf %921, %929 : vector<8x128xf32>
    %931 = vector.broadcast %854 : vector<8x1xf32> to vector<8x128xf32>
    %932 = arith.mulf %931, %918 : vector<8x128xf32>
    %933 = math.sin %932 : vector<8x128xf32>
    %934 = arith.mulf %933, %933 : vector<8x128xf32>
    %935 = vector.broadcast %858 : vector<8x1xf32> to vector<8x128xf32>
    %936 = arith.mulf %935, %934 : vector<8x128xf32>
    %937 = arith.addf %918, %936 : vector<8x128xf32>
    %938 = vector.broadcast %854 : vector<8x1xf32> to vector<8x128xf32>
    %939 = arith.mulf %938, %930 : vector<8x128xf32>
    %940 = math.sin %939 : vector<8x128xf32>
    %941 = arith.mulf %940, %940 : vector<8x128xf32>
    %942 = vector.broadcast %858 : vector<8x1xf32> to vector<8x128xf32>
    %943 = arith.mulf %942, %941 : vector<8x128xf32>
    %944 = arith.addf %930, %943 : vector<8x128xf32>
    %945 = vector.extract_strided_slice %937 {offsets = [0, 0], sizes = [8, 1], strides = [1, 1]} : vector<8x128xf32> to vector<8x1xf32>
    %946 = vector.extract_strided_slice %944 {offsets = [0, 127], sizes = [8, 1], strides = [1, 1]} : vector<8x128xf32> to vector<8x1xf32>
    %c3_i32_318 = arith.constant 3 : i32
    %947 = tpu.dynamic_rotate %944 by %c3_i32_318 dim 1 : vector<8x128xf32>, i32 -> vector<8x128xf32>
    %c3_i32_319 = arith.constant 3 : i32
    %948 = vector.broadcast %c3_i32_319 : i32 to vector<8x128xi32>
    %949 = arith.cmpi slt, %2, %948 : vector<8x128xi32>
    %950 = vector.shape_cast %945 : vector<8x1xf32> to vector<8x1xf32>
    %951 = vector.broadcast %950 : vector<8x1xf32> to vector<8x128xf32>
    %952 = arith.select %949, %951, %947 : vector<8x128xi1>, vector<8x128xf32>
    %cst_320 = arith.constant 0.00202896656 : f32
    %953 = vector.broadcast %cst_320 : f32 to vector<8x128xf32>
    %954 = arith.mulf %953, %952 : vector<8x128xf32>
    %c2_i32_321 = arith.constant 2 : i32
    %955 = tpu.dynamic_rotate %937 by %c2_i32_321 dim 1 : vector<8x128xf32>, i32 -> vector<8x128xf32>
    %c2_i32_322 = arith.constant 2 : i32
    %956 = vector.broadcast %c2_i32_322 : i32 to vector<8x128xi32>
    %957 = arith.cmpi slt, %2, %956 : vector<8x128xi32>
    %958 = vector.shape_cast %945 : vector<8x1xf32> to vector<8x1xf32>
    %959 = vector.broadcast %958 : vector<8x1xf32> to vector<8x128xf32>
    %960 = arith.select %957, %959, %955 : vector<8x128xi1>, vector<8x128xf32>
    %cst_323 = arith.constant 0.00938946381 : f32
    %961 = vector.broadcast %cst_323 : f32 to vector<8x128xf32>
    %962 = arith.mulf %961, %960 : vector<8x128xf32>
    %963 = arith.addf %954, %962 : vector<8x128xf32>
    %c2_i32_324 = arith.constant 2 : i32
    %964 = tpu.dynamic_rotate %944 by %c2_i32_324 dim 1 : vector<8x128xf32>, i32 -> vector<8x128xf32>
    %c2_i32_325 = arith.constant 2 : i32
    %965 = vector.broadcast %c2_i32_325 : i32 to vector<8x128xi32>
    %966 = arith.cmpi slt, %2, %965 : vector<8x128xi32>
    %967 = vector.shape_cast %945 : vector<8x1xf32> to vector<8x1xf32>
    %968 = vector.broadcast %967 : vector<8x1xf32> to vector<8x128xf32>
    %969 = arith.select %966, %968, %964 : vector<8x128xi1>, vector<8x128xf32>
    %cst_326 = arith.constant -0.0255434643 : f32
    %970 = vector.broadcast %cst_326 : f32 to vector<8x128xf32>
    %971 = arith.mulf %970, %969 : vector<8x128xf32>
    %972 = arith.addf %963, %971 : vector<8x128xf32>
    %c1_i32_327 = arith.constant 1 : i32
    %973 = tpu.dynamic_rotate %937 by %c1_i32_327 dim 1 : vector<8x128xf32>, i32 -> vector<8x128xf32>
    %c1_i32_328 = arith.constant 1 : i32
    %974 = vector.broadcast %c1_i32_328 : i32 to vector<8x128xi32>
    %975 = arith.cmpi slt, %2, %974 : vector<8x128xi32>
    %976 = vector.shape_cast %945 : vector<8x1xf32> to vector<8x1xf32>
    %977 = vector.broadcast %976 : vector<8x1xf32> to vector<8x128xf32>
    %978 = arith.select %975, %977, %973 : vector<8x128xi1>, vector<8x128xf32>
    %cst_329 = arith.constant -0.0576573759 : f32
    %979 = vector.broadcast %cst_329 : f32 to vector<8x128xf32>
    %980 = arith.mulf %979, %978 : vector<8x128xf32>
    %981 = arith.addf %972, %980 : vector<8x128xf32>
    %c1_i32_330 = arith.constant 1 : i32
    %982 = tpu.dynamic_rotate %944 by %c1_i32_330 dim 1 : vector<8x128xf32>, i32 -> vector<8x128xf32>
    %c1_i32_331 = arith.constant 1 : i32
    %983 = vector.broadcast %c1_i32_331 : i32 to vector<8x128xi32>
    %984 = arith.cmpi slt, %2, %983 : vector<8x128xi32>
    %985 = vector.shape_cast %945 : vector<8x1xf32> to vector<8x1xf32>
    %986 = vector.broadcast %985 : vector<8x1xf32> to vector<8x128xf32>
    %987 = arith.select %984, %986, %982 : vector<8x128xi1>, vector<8x128xf32>
    %cst_332 = arith.constant 0.128572613 : f32
    %988 = vector.broadcast %cst_332 : f32 to vector<8x128xf32>
    %989 = arith.mulf %988, %987 : vector<8x128xf32>
    %990 = arith.addf %981, %989 : vector<8x128xf32>
    %cst_333 = arith.constant 0.443209797 : f32
    %991 = vector.broadcast %cst_333 : f32 to vector<8x128xf32>
    %992 = arith.mulf %991, %937 : vector<8x128xf32>
    %993 = arith.addf %990, %992 : vector<8x128xf32>
    %cst_334 = arith.constant 0.443209797 : f32
    %994 = vector.broadcast %cst_334 : f32 to vector<8x128xf32>
    %995 = arith.mulf %994, %944 : vector<8x128xf32>
    %996 = arith.addf %993, %995 : vector<8x128xf32>
    %c127_i32_335 = arith.constant 127 : i32
    %997 = tpu.dynamic_rotate %937 by %c127_i32_335 dim 1 : vector<8x128xf32>, i32 -> vector<8x128xf32>
    %c127_i32_336 = arith.constant 127 : i32
    %998 = vector.broadcast %c127_i32_336 : i32 to vector<8x128xi32>
    %999 = arith.cmpi sge, %2, %998 : vector<8x128xi32>
    %1000 = vector.shape_cast %946 : vector<8x1xf32> to vector<8x1xf32>
    %1001 = vector.broadcast %1000 : vector<8x1xf32> to vector<8x128xf32>
    %1002 = arith.select %999, %1001, %997 : vector<8x128xi1>, vector<8x128xf32>
    %cst_337 = arith.constant 0.128572613 : f32
    %1003 = vector.broadcast %cst_337 : f32 to vector<8x128xf32>
    %1004 = arith.mulf %1003, %1002 : vector<8x128xf32>
    %1005 = arith.addf %996, %1004 : vector<8x128xf32>
    %c127_i32_338 = arith.constant 127 : i32
    %1006 = tpu.dynamic_rotate %944 by %c127_i32_338 dim 1 : vector<8x128xf32>, i32 -> vector<8x128xf32>
    %c127_i32_339 = arith.constant 127 : i32
    %1007 = vector.broadcast %c127_i32_339 : i32 to vector<8x128xi32>
    %1008 = arith.cmpi sge, %2, %1007 : vector<8x128xi32>
    %1009 = vector.shape_cast %946 : vector<8x1xf32> to vector<8x1xf32>
    %1010 = vector.broadcast %1009 : vector<8x1xf32> to vector<8x128xf32>
    %1011 = arith.select %1008, %1010, %1006 : vector<8x128xi1>, vector<8x128xf32>
    %cst_340 = arith.constant -0.0576573759 : f32
    %1012 = vector.broadcast %cst_340 : f32 to vector<8x128xf32>
    %1013 = arith.mulf %1012, %1011 : vector<8x128xf32>
    %1014 = arith.addf %1005, %1013 : vector<8x128xf32>
    %c126_i32_341 = arith.constant 126 : i32
    %1015 = tpu.dynamic_rotate %937 by %c126_i32_341 dim 1 : vector<8x128xf32>, i32 -> vector<8x128xf32>
    %c126_i32_342 = arith.constant 126 : i32
    %1016 = vector.broadcast %c126_i32_342 : i32 to vector<8x128xi32>
    %1017 = arith.cmpi sge, %2, %1016 : vector<8x128xi32>
    %1018 = vector.shape_cast %946 : vector<8x1xf32> to vector<8x1xf32>
    %1019 = vector.broadcast %1018 : vector<8x1xf32> to vector<8x128xf32>
    %1020 = arith.select %1017, %1019, %1015 : vector<8x128xi1>, vector<8x128xf32>
    %cst_343 = arith.constant -0.0255434643 : f32
    %1021 = vector.broadcast %cst_343 : f32 to vector<8x128xf32>
    %1022 = arith.mulf %1021, %1020 : vector<8x128xf32>
    %1023 = arith.addf %1014, %1022 : vector<8x128xf32>
    %c126_i32_344 = arith.constant 126 : i32
    %1024 = tpu.dynamic_rotate %944 by %c126_i32_344 dim 1 : vector<8x128xf32>, i32 -> vector<8x128xf32>
    %c126_i32_345 = arith.constant 126 : i32
    %1025 = vector.broadcast %c126_i32_345 : i32 to vector<8x128xi32>
    %1026 = arith.cmpi sge, %2, %1025 : vector<8x128xi32>
    %1027 = vector.shape_cast %946 : vector<8x1xf32> to vector<8x1xf32>
    %1028 = vector.broadcast %1027 : vector<8x1xf32> to vector<8x128xf32>
    %1029 = arith.select %1026, %1028, %1024 : vector<8x128xi1>, vector<8x128xf32>
    %cst_346 = arith.constant 0.00938946381 : f32
    %1030 = vector.broadcast %cst_346 : f32 to vector<8x128xf32>
    %1031 = arith.mulf %1030, %1029 : vector<8x128xf32>
    %1032 = arith.addf %1023, %1031 : vector<8x128xf32>
    %c125_i32_347 = arith.constant 125 : i32
    %1033 = tpu.dynamic_rotate %937 by %c125_i32_347 dim 1 : vector<8x128xf32>, i32 -> vector<8x128xf32>
    %c125_i32_348 = arith.constant 125 : i32
    %1034 = vector.broadcast %c125_i32_348 : i32 to vector<8x128xi32>
    %1035 = arith.cmpi sge, %2, %1034 : vector<8x128xi32>
    %1036 = vector.shape_cast %946 : vector<8x1xf32> to vector<8x1xf32>
    %1037 = vector.broadcast %1036 : vector<8x1xf32> to vector<8x128xf32>
    %1038 = arith.select %1035, %1037, %1033 : vector<8x128xi1>, vector<8x128xf32>
    %cst_349 = arith.constant 0.00202896656 : f32
    %1039 = vector.broadcast %cst_349 : f32 to vector<8x128xf32>
    %1040 = arith.mulf %1039, %1038 : vector<8x128xf32>
    %1041 = arith.addf %1032, %1040 : vector<8x128xf32>
    %c2_350 = arith.constant 2 : index
    %c0_351 = arith.constant 0 : index
    %c0_352 = arith.constant 0 : index
    %1042 = vector.load %arg2[%c2_350, %c0_351, %c0_352] : memref<3x24x8xbf16, #tpu.memory_space<vmem>>, vector<1x24x8xbf16>
    %1043 = vector.shape_cast %1042 : vector<1x24x8xbf16> to vector<24x8xbf16>
    %c2_353 = arith.constant 2 : index
    %c0_354 = arith.constant 0 : index
    %c0_355 = arith.constant 0 : index
    %1044 = vector.load %arg3[%c2_353, %c0_354, %c0_355] : memref<3x8x1xf32, #tpu.memory_space<vmem>>, vector<1x8x1xf32>
    %1045 = vector.shape_cast %1044 : vector<1x8x1xf32> to vector<8x1xf32>
    %1046 = arith.truncf %1041 : vector<8x128xf32> to vector<8x128xbf16>
    %cst_356 = arith.constant dense<0.000000e+00> : vector<24x128xf32>
    %1047 = tpu.matmul %1043, %1046, %cst_356 {dimension_numbers = #tpu.dot_dimension_numbers<[1], [0], [0], [1], [0, 0, 1, 1], [], []>} : vector<24x8xbf16>, vector<8x128xbf16>, vector<24x128xf32> -> vector<24x128xf32>
    %1048 = vector.extract_strided_slice %1047 {offsets = [0, 0], sizes = [8, 128], strides = [1, 1]} : vector<24x128xf32> to vector<8x128xf32>
    %c5_i32 = arith.constant 5 : i32
    %1049 = tpu.dynamic_rotate %1048 by %c5_i32 dim 1 : vector<8x128xf32>, i32 -> vector<8x128xf32>
    %c5_i32_357 = arith.constant 5 : i32
    %1050 = vector.broadcast %c5_i32_357 : i32 to vector<8x128xi32>
    %1051 = arith.cmpi slt, %2, %1050 : vector<8x128xi32>
    %cst_358 = arith.constant 0.000000e+00 : f32
    %1052 = vector.broadcast %cst_358 : f32 to vector<8x128xf32>
    %1053 = arith.select %1051, %1052, %1049 : vector<8x128xi1>, vector<8x128xf32>
    %1054 = vector.extract_strided_slice %1047 {offsets = [8, 0], sizes = [8, 128], strides = [1, 1]} : vector<24x128xf32> to vector<8x128xf32>
    %1055 = arith.addf %1053, %1054 : vector<8x128xf32>
    %1056 = vector.extract_strided_slice %1047 {offsets = [16, 0], sizes = [8, 128], strides = [1, 1]} : vector<24x128xf32> to vector<8x128xf32>
    %c123_i32 = arith.constant 123 : i32
    %1057 = tpu.dynamic_rotate %1056 by %c123_i32 dim 1 : vector<8x128xf32>, i32 -> vector<8x128xf32>
    %c123_i32_359 = arith.constant 123 : i32
    %1058 = vector.broadcast %c123_i32_359 : i32 to vector<8x128xi32>
    %1059 = arith.cmpi sge, %2, %1058 : vector<8x128xi32>
    %cst_360 = arith.constant 0.000000e+00 : f32
    %1060 = vector.broadcast %cst_360 : f32 to vector<8x128xf32>
    %1061 = arith.select %1059, %1060, %1057 : vector<8x128xi1>, vector<8x128xf32>
    %1062 = arith.addf %1055, %1061 : vector<8x128xf32>
    %1063 = vector.broadcast %1045 : vector<8x1xf32> to vector<8x128xf32>
    %1064 = arith.addf %1062, %1063 : vector<8x128xf32>
    %c2_361 = arith.constant 2 : index
    %c0_362 = arith.constant 0 : index
    %c0_363 = arith.constant 0 : index
    %1065 = vector.load %arg7[%c2_361, %c0_362, %c0_363] : memref<3x8x1xf32, #tpu.memory_space<vmem>>, vector<1x8x1xf32>
    %1066 = vector.shape_cast %1065 : vector<1x8x1xf32> to vector<8x1xf32>
    %cst_364 = arith.constant 9.99999971E-10 : f32
    %1067 = vector.broadcast %cst_364 : f32 to vector<8x1xf32>
    %1068 = arith.addf %1066, %1067 : vector<8x1xf32>
    %cst_365 = arith.constant 1.000000e+00 : f32
    %1069 = vector.broadcast %cst_365 : f32 to vector<8x1xf32>
    %1070 = arith.divf %1069, %1068 : vector<8x1xf32>
    %1071 = vector.extract_strided_slice %1064 {offsets = [0, 0], sizes = [8, 1], strides = [1, 1]} : vector<8x128xf32> to vector<8x1xf32>
    %1072 = vector.extract_strided_slice %1064 {offsets = [0, 127], sizes = [8, 1], strides = [1, 1]} : vector<8x128xf32> to vector<8x1xf32>
    %c3_i32_366 = arith.constant 3 : i32
    %1073 = tpu.dynamic_rotate %1064 by %c3_i32_366 dim 1 : vector<8x128xf32>, i32 -> vector<8x128xf32>
    %c3_i32_367 = arith.constant 3 : i32
    %1074 = vector.broadcast %c3_i32_367 : i32 to vector<8x128xi32>
    %1075 = arith.cmpi slt, %2, %1074 : vector<8x128xi32>
    %1076 = vector.shape_cast %1071 : vector<8x1xf32> to vector<8x1xf32>
    %1077 = vector.broadcast %1076 : vector<8x1xf32> to vector<8x128xf32>
    %1078 = arith.select %1075, %1077, %1073 : vector<8x128xi1>, vector<8x128xf32>
    %cst_368 = arith.constant 0.00405793311 : f32
    %1079 = vector.broadcast %cst_368 : f32 to vector<8x128xf32>
    %1080 = arith.mulf %1079, %1078 : vector<8x128xf32>
    %c2_i32_369 = arith.constant 2 : i32
    %1081 = tpu.dynamic_rotate %1064 by %c2_i32_369 dim 1 : vector<8x128xf32>, i32 -> vector<8x128xf32>
    %c2_i32_370 = arith.constant 2 : i32
    %1082 = vector.broadcast %c2_i32_370 : i32 to vector<8x128xi32>
    %1083 = arith.cmpi slt, %2, %1082 : vector<8x128xi32>
    %1084 = vector.shape_cast %1071 : vector<8x1xf32> to vector<8x1xf32>
    %1085 = vector.broadcast %1084 : vector<8x1xf32> to vector<8x128xf32>
    %1086 = arith.select %1083, %1085, %1081 : vector<8x128xi1>, vector<8x128xf32>
    %cst_371 = arith.constant -0.0510869287 : f32
    %1087 = vector.broadcast %cst_371 : f32 to vector<8x128xf32>
    %1088 = arith.mulf %1087, %1086 : vector<8x128xf32>
    %1089 = arith.addf %1080, %1088 : vector<8x128xf32>
    %cst_372 = arith.constant 0.0187789276 : f32
    %1090 = vector.broadcast %cst_372 : f32 to vector<8x128xf32>
    %1091 = arith.mulf %1090, %1086 : vector<8x128xf32>
    %c1_i32_373 = arith.constant 1 : i32
    %1092 = tpu.dynamic_rotate %1064 by %c1_i32_373 dim 1 : vector<8x128xf32>, i32 -> vector<8x128xf32>
    %c1_i32_374 = arith.constant 1 : i32
    %1093 = vector.broadcast %c1_i32_374 : i32 to vector<8x128xi32>
    %1094 = arith.cmpi slt, %2, %1093 : vector<8x128xi32>
    %1095 = vector.shape_cast %1071 : vector<8x1xf32> to vector<8x1xf32>
    %1096 = vector.broadcast %1095 : vector<8x1xf32> to vector<8x128xf32>
    %1097 = arith.select %1094, %1096, %1092 : vector<8x128xi1>, vector<8x128xf32>
    %cst_375 = arith.constant 0.257145226 : f32
    %1098 = vector.broadcast %cst_375 : f32 to vector<8x128xf32>
    %1099 = arith.mulf %1098, %1097 : vector<8x128xf32>
    %1100 = arith.addf %1089, %1099 : vector<8x128xf32>
    %cst_376 = arith.constant -0.115314752 : f32
    %1101 = vector.broadcast %cst_376 : f32 to vector<8x128xf32>
    %1102 = arith.mulf %1101, %1097 : vector<8x128xf32>
    %1103 = arith.addf %1091, %1102 : vector<8x128xf32>
    %cst_377 = arith.constant 0.886419594 : f32
    %1104 = vector.broadcast %cst_377 : f32 to vector<8x128xf32>
    %1105 = arith.mulf %1104, %1064 : vector<8x128xf32>
    %1106 = arith.addf %1100, %1105 : vector<8x128xf32>
    %cst_378 = arith.constant 0.886419594 : f32
    %1107 = vector.broadcast %cst_378 : f32 to vector<8x128xf32>
    %1108 = arith.mulf %1107, %1064 : vector<8x128xf32>
    %1109 = arith.addf %1103, %1108 : vector<8x128xf32>
    %c127_i32_379 = arith.constant 127 : i32
    %1110 = tpu.dynamic_rotate %1064 by %c127_i32_379 dim 1 : vector<8x128xf32>, i32 -> vector<8x128xf32>
    %c127_i32_380 = arith.constant 127 : i32
    %1111 = vector.broadcast %c127_i32_380 : i32 to vector<8x128xi32>
    %1112 = arith.cmpi sge, %2, %1111 : vector<8x128xi32>
    %1113 = vector.shape_cast %1072 : vector<8x1xf32> to vector<8x1xf32>
    %1114 = vector.broadcast %1113 : vector<8x1xf32> to vector<8x128xf32>
    %1115 = arith.select %1112, %1114, %1110 : vector<8x128xi1>, vector<8x128xf32>
    %cst_381 = arith.constant -0.115314752 : f32
    %1116 = vector.broadcast %cst_381 : f32 to vector<8x128xf32>
    %1117 = arith.mulf %1116, %1115 : vector<8x128xf32>
    %1118 = arith.addf %1106, %1117 : vector<8x128xf32>
    %cst_382 = arith.constant 0.257145226 : f32
    %1119 = vector.broadcast %cst_382 : f32 to vector<8x128xf32>
    %1120 = arith.mulf %1119, %1115 : vector<8x128xf32>
    %1121 = arith.addf %1109, %1120 : vector<8x128xf32>
    %c126_i32_383 = arith.constant 126 : i32
    %1122 = tpu.dynamic_rotate %1064 by %c126_i32_383 dim 1 : vector<8x128xf32>, i32 -> vector<8x128xf32>
    %c126_i32_384 = arith.constant 126 : i32
    %1123 = vector.broadcast %c126_i32_384 : i32 to vector<8x128xi32>
    %1124 = arith.cmpi sge, %2, %1123 : vector<8x128xi32>
    %1125 = vector.shape_cast %1072 : vector<8x1xf32> to vector<8x1xf32>
    %1126 = vector.broadcast %1125 : vector<8x1xf32> to vector<8x128xf32>
    %1127 = arith.select %1124, %1126, %1122 : vector<8x128xi1>, vector<8x128xf32>
    %cst_385 = arith.constant 0.0187789276 : f32
    %1128 = vector.broadcast %cst_385 : f32 to vector<8x128xf32>
    %1129 = arith.mulf %1128, %1127 : vector<8x128xf32>
    %1130 = arith.addf %1118, %1129 : vector<8x128xf32>
    %cst_386 = arith.constant -0.0510869287 : f32
    %1131 = vector.broadcast %cst_386 : f32 to vector<8x128xf32>
    %1132 = arith.mulf %1131, %1127 : vector<8x128xf32>
    %1133 = arith.addf %1121, %1132 : vector<8x128xf32>
    %c125_i32_387 = arith.constant 125 : i32
    %1134 = tpu.dynamic_rotate %1064 by %c125_i32_387 dim 1 : vector<8x128xf32>, i32 -> vector<8x128xf32>
    %c125_i32_388 = arith.constant 125 : i32
    %1135 = vector.broadcast %c125_i32_388 : i32 to vector<8x128xi32>
    %1136 = arith.cmpi sge, %2, %1135 : vector<8x128xi32>
    %1137 = vector.shape_cast %1072 : vector<8x1xf32> to vector<8x1xf32>
    %1138 = vector.broadcast %1137 : vector<8x1xf32> to vector<8x128xf32>
    %1139 = arith.select %1136, %1138, %1134 : vector<8x128xi1>, vector<8x128xf32>
    %cst_389 = arith.constant 0.00405793311 : f32
    %1140 = vector.broadcast %cst_389 : f32 to vector<8x128xf32>
    %1141 = arith.mulf %1140, %1139 : vector<8x128xf32>
    %1142 = arith.addf %1133, %1141 : vector<8x128xf32>
    %1143 = vector.broadcast %1066 : vector<8x1xf32> to vector<8x128xf32>
    %1144 = arith.mulf %1143, %1130 : vector<8x128xf32>
    %1145 = math.sin %1144 : vector<8x128xf32>
    %1146 = arith.mulf %1145, %1145 : vector<8x128xf32>
    %1147 = vector.broadcast %1070 : vector<8x1xf32> to vector<8x128xf32>
    %1148 = arith.mulf %1147, %1146 : vector<8x128xf32>
    %1149 = arith.addf %1130, %1148 : vector<8x128xf32>
    %1150 = vector.broadcast %1066 : vector<8x1xf32> to vector<8x128xf32>
    %1151 = arith.mulf %1150, %1142 : vector<8x128xf32>
    %1152 = math.sin %1151 : vector<8x128xf32>
    %1153 = arith.mulf %1152, %1152 : vector<8x128xf32>
    %1154 = vector.broadcast %1070 : vector<8x1xf32> to vector<8x128xf32>
    %1155 = arith.mulf %1154, %1153 : vector<8x128xf32>
    %1156 = arith.addf %1142, %1155 : vector<8x128xf32>
    %1157 = vector.extract_strided_slice %1149 {offsets = [0, 0], sizes = [8, 1], strides = [1, 1]} : vector<8x128xf32> to vector<8x1xf32>
    %1158 = vector.extract_strided_slice %1156 {offsets = [0, 127], sizes = [8, 1], strides = [1, 1]} : vector<8x128xf32> to vector<8x1xf32>
    %c3_i32_390 = arith.constant 3 : i32
    %1159 = tpu.dynamic_rotate %1156 by %c3_i32_390 dim 1 : vector<8x128xf32>, i32 -> vector<8x128xf32>
    %c3_i32_391 = arith.constant 3 : i32
    %1160 = vector.broadcast %c3_i32_391 : i32 to vector<8x128xi32>
    %1161 = arith.cmpi slt, %2, %1160 : vector<8x128xi32>
    %1162 = vector.shape_cast %1157 : vector<8x1xf32> to vector<8x1xf32>
    %1163 = vector.broadcast %1162 : vector<8x1xf32> to vector<8x128xf32>
    %1164 = arith.select %1161, %1163, %1159 : vector<8x128xi1>, vector<8x128xf32>
    %cst_392 = arith.constant 0.00202896656 : f32
    %1165 = vector.broadcast %cst_392 : f32 to vector<8x128xf32>
    %1166 = arith.mulf %1165, %1164 : vector<8x128xf32>
    %c2_i32_393 = arith.constant 2 : i32
    %1167 = tpu.dynamic_rotate %1149 by %c2_i32_393 dim 1 : vector<8x128xf32>, i32 -> vector<8x128xf32>
    %c2_i32_394 = arith.constant 2 : i32
    %1168 = vector.broadcast %c2_i32_394 : i32 to vector<8x128xi32>
    %1169 = arith.cmpi slt, %2, %1168 : vector<8x128xi32>
    %1170 = vector.shape_cast %1157 : vector<8x1xf32> to vector<8x1xf32>
    %1171 = vector.broadcast %1170 : vector<8x1xf32> to vector<8x128xf32>
    %1172 = arith.select %1169, %1171, %1167 : vector<8x128xi1>, vector<8x128xf32>
    %cst_395 = arith.constant 0.00938946381 : f32
    %1173 = vector.broadcast %cst_395 : f32 to vector<8x128xf32>
    %1174 = arith.mulf %1173, %1172 : vector<8x128xf32>
    %1175 = arith.addf %1166, %1174 : vector<8x128xf32>
    %c2_i32_396 = arith.constant 2 : i32
    %1176 = tpu.dynamic_rotate %1156 by %c2_i32_396 dim 1 : vector<8x128xf32>, i32 -> vector<8x128xf32>
    %c2_i32_397 = arith.constant 2 : i32
    %1177 = vector.broadcast %c2_i32_397 : i32 to vector<8x128xi32>
    %1178 = arith.cmpi slt, %2, %1177 : vector<8x128xi32>
    %1179 = vector.shape_cast %1157 : vector<8x1xf32> to vector<8x1xf32>
    %1180 = vector.broadcast %1179 : vector<8x1xf32> to vector<8x128xf32>
    %1181 = arith.select %1178, %1180, %1176 : vector<8x128xi1>, vector<8x128xf32>
    %cst_398 = arith.constant -0.0255434643 : f32
    %1182 = vector.broadcast %cst_398 : f32 to vector<8x128xf32>
    %1183 = arith.mulf %1182, %1181 : vector<8x128xf32>
    %1184 = arith.addf %1175, %1183 : vector<8x128xf32>
    %c1_i32_399 = arith.constant 1 : i32
    %1185 = tpu.dynamic_rotate %1149 by %c1_i32_399 dim 1 : vector<8x128xf32>, i32 -> vector<8x128xf32>
    %c1_i32_400 = arith.constant 1 : i32
    %1186 = vector.broadcast %c1_i32_400 : i32 to vector<8x128xi32>
    %1187 = arith.cmpi slt, %2, %1186 : vector<8x128xi32>
    %1188 = vector.shape_cast %1157 : vector<8x1xf32> to vector<8x1xf32>
    %1189 = vector.broadcast %1188 : vector<8x1xf32> to vector<8x128xf32>
    %1190 = arith.select %1187, %1189, %1185 : vector<8x128xi1>, vector<8x128xf32>
    %cst_401 = arith.constant -0.0576573759 : f32
    %1191 = vector.broadcast %cst_401 : f32 to vector<8x128xf32>
    %1192 = arith.mulf %1191, %1190 : vector<8x128xf32>
    %1193 = arith.addf %1184, %1192 : vector<8x128xf32>
    %c1_i32_402 = arith.constant 1 : i32
    %1194 = tpu.dynamic_rotate %1156 by %c1_i32_402 dim 1 : vector<8x128xf32>, i32 -> vector<8x128xf32>
    %c1_i32_403 = arith.constant 1 : i32
    %1195 = vector.broadcast %c1_i32_403 : i32 to vector<8x128xi32>
    %1196 = arith.cmpi slt, %2, %1195 : vector<8x128xi32>
    %1197 = vector.shape_cast %1157 : vector<8x1xf32> to vector<8x1xf32>
    %1198 = vector.broadcast %1197 : vector<8x1xf32> to vector<8x128xf32>
    %1199 = arith.select %1196, %1198, %1194 : vector<8x128xi1>, vector<8x128xf32>
    %cst_404 = arith.constant 0.128572613 : f32
    %1200 = vector.broadcast %cst_404 : f32 to vector<8x128xf32>
    %1201 = arith.mulf %1200, %1199 : vector<8x128xf32>
    %1202 = arith.addf %1193, %1201 : vector<8x128xf32>
    %cst_405 = arith.constant 0.443209797 : f32
    %1203 = vector.broadcast %cst_405 : f32 to vector<8x128xf32>
    %1204 = arith.mulf %1203, %1149 : vector<8x128xf32>
    %1205 = arith.addf %1202, %1204 : vector<8x128xf32>
    %cst_406 = arith.constant 0.443209797 : f32
    %1206 = vector.broadcast %cst_406 : f32 to vector<8x128xf32>
    %1207 = arith.mulf %1206, %1156 : vector<8x128xf32>
    %1208 = arith.addf %1205, %1207 : vector<8x128xf32>
    %c127_i32_407 = arith.constant 127 : i32
    %1209 = tpu.dynamic_rotate %1149 by %c127_i32_407 dim 1 : vector<8x128xf32>, i32 -> vector<8x128xf32>
    %c127_i32_408 = arith.constant 127 : i32
    %1210 = vector.broadcast %c127_i32_408 : i32 to vector<8x128xi32>
    %1211 = arith.cmpi sge, %2, %1210 : vector<8x128xi32>
    %1212 = vector.shape_cast %1158 : vector<8x1xf32> to vector<8x1xf32>
    %1213 = vector.broadcast %1212 : vector<8x1xf32> to vector<8x128xf32>
    %1214 = arith.select %1211, %1213, %1209 : vector<8x128xi1>, vector<8x128xf32>
    %cst_409 = arith.constant 0.128572613 : f32
    %1215 = vector.broadcast %cst_409 : f32 to vector<8x128xf32>
    %1216 = arith.mulf %1215, %1214 : vector<8x128xf32>
    %1217 = arith.addf %1208, %1216 : vector<8x128xf32>
    %c127_i32_410 = arith.constant 127 : i32
    %1218 = tpu.dynamic_rotate %1156 by %c127_i32_410 dim 1 : vector<8x128xf32>, i32 -> vector<8x128xf32>
    %c127_i32_411 = arith.constant 127 : i32
    %1219 = vector.broadcast %c127_i32_411 : i32 to vector<8x128xi32>
    %1220 = arith.cmpi sge, %2, %1219 : vector<8x128xi32>
    %1221 = vector.shape_cast %1158 : vector<8x1xf32> to vector<8x1xf32>
    %1222 = vector.broadcast %1221 : vector<8x1xf32> to vector<8x128xf32>
    %1223 = arith.select %1220, %1222, %1218 : vector<8x128xi1>, vector<8x128xf32>
    %cst_412 = arith.constant -0.0576573759 : f32
    %1224 = vector.broadcast %cst_412 : f32 to vector<8x128xf32>
    %1225 = arith.mulf %1224, %1223 : vector<8x128xf32>
    %1226 = arith.addf %1217, %1225 : vector<8x128xf32>
    %c126_i32_413 = arith.constant 126 : i32
    %1227 = tpu.dynamic_rotate %1149 by %c126_i32_413 dim 1 : vector<8x128xf32>, i32 -> vector<8x128xf32>
    %c126_i32_414 = arith.constant 126 : i32
    %1228 = vector.broadcast %c126_i32_414 : i32 to vector<8x128xi32>
    %1229 = arith.cmpi sge, %2, %1228 : vector<8x128xi32>
    %1230 = vector.shape_cast %1158 : vector<8x1xf32> to vector<8x1xf32>
    %1231 = vector.broadcast %1230 : vector<8x1xf32> to vector<8x128xf32>
    %1232 = arith.select %1229, %1231, %1227 : vector<8x128xi1>, vector<8x128xf32>
    %cst_415 = arith.constant -0.0255434643 : f32
    %1233 = vector.broadcast %cst_415 : f32 to vector<8x128xf32>
    %1234 = arith.mulf %1233, %1232 : vector<8x128xf32>
    %1235 = arith.addf %1226, %1234 : vector<8x128xf32>
    %c126_i32_416 = arith.constant 126 : i32
    %1236 = tpu.dynamic_rotate %1156 by %c126_i32_416 dim 1 : vector<8x128xf32>, i32 -> vector<8x128xf32>
    %c126_i32_417 = arith.constant 126 : i32
    %1237 = vector.broadcast %c126_i32_417 : i32 to vector<8x128xi32>
    %1238 = arith.cmpi sge, %2, %1237 : vector<8x128xi32>
    %1239 = vector.shape_cast %1158 : vector<8x1xf32> to vector<8x1xf32>
    %1240 = vector.broadcast %1239 : vector<8x1xf32> to vector<8x128xf32>
    %1241 = arith.select %1238, %1240, %1236 : vector<8x128xi1>, vector<8x128xf32>
    %cst_418 = arith.constant 0.00938946381 : f32
    %1242 = vector.broadcast %cst_418 : f32 to vector<8x128xf32>
    %1243 = arith.mulf %1242, %1241 : vector<8x128xf32>
    %1244 = arith.addf %1235, %1243 : vector<8x128xf32>
    %c125_i32_419 = arith.constant 125 : i32
    %1245 = tpu.dynamic_rotate %1149 by %c125_i32_419 dim 1 : vector<8x128xf32>, i32 -> vector<8x128xf32>
    %c125_i32_420 = arith.constant 125 : i32
    %1246 = vector.broadcast %c125_i32_420 : i32 to vector<8x128xi32>
    %1247 = arith.cmpi sge, %2, %1246 : vector<8x128xi32>
    %1248 = vector.shape_cast %1158 : vector<8x1xf32> to vector<8x1xf32>
    %1249 = vector.broadcast %1248 : vector<8x1xf32> to vector<8x128xf32>
    %1250 = arith.select %1247, %1249, %1245 : vector<8x128xi1>, vector<8x128xf32>
    %cst_421 = arith.constant 0.00202896656 : f32
    %1251 = vector.broadcast %cst_421 : f32 to vector<8x128xf32>
    %1252 = arith.mulf %1251, %1250 : vector<8x128xf32>
    %1253 = arith.addf %1244, %1252 : vector<8x128xf32>
    %c2_422 = arith.constant 2 : index
    %c0_423 = arith.constant 0 : index
    %c0_424 = arith.constant 0 : index
    %1254 = vector.load %arg4[%c2_422, %c0_423, %c0_424] : memref<3x24x8xbf16, #tpu.memory_space<vmem>>, vector<1x24x8xbf16>
    %1255 = vector.shape_cast %1254 : vector<1x24x8xbf16> to vector<24x8xbf16>
    %c2_425 = arith.constant 2 : index
    %c0_426 = arith.constant 0 : index
    %c0_427 = arith.constant 0 : index
    %1256 = vector.load %arg5[%c2_425, %c0_426, %c0_427] : memref<3x8x1xf32, #tpu.memory_space<vmem>>, vector<1x8x1xf32>
    %1257 = vector.shape_cast %1256 : vector<1x8x1xf32> to vector<8x1xf32>
    %1258 = arith.truncf %1253 : vector<8x128xf32> to vector<8x128xbf16>
    %cst_428 = arith.constant dense<0.000000e+00> : vector<24x128xf32>
    %1259 = tpu.matmul %1255, %1258, %cst_428 {dimension_numbers = #tpu.dot_dimension_numbers<[1], [0], [0], [1], [0, 0, 1, 1], [], []>} : vector<24x8xbf16>, vector<8x128xbf16>, vector<24x128xf32> -> vector<24x128xf32>
    %1260 = vector.extract_strided_slice %1259 {offsets = [0, 0], sizes = [8, 128], strides = [1, 1]} : vector<24x128xf32> to vector<8x128xf32>
    %c1_i32_429 = arith.constant 1 : i32
    %1261 = tpu.dynamic_rotate %1260 by %c1_i32_429 dim 1 : vector<8x128xf32>, i32 -> vector<8x128xf32>
    %c1_i32_430 = arith.constant 1 : i32
    %1262 = vector.broadcast %c1_i32_430 : i32 to vector<8x128xi32>
    %1263 = arith.cmpi slt, %2, %1262 : vector<8x128xi32>
    %cst_431 = arith.constant 0.000000e+00 : f32
    %1264 = vector.broadcast %cst_431 : f32 to vector<8x128xf32>
    %1265 = arith.select %1263, %1264, %1261 : vector<8x128xi1>, vector<8x128xf32>
    %1266 = vector.extract_strided_slice %1259 {offsets = [8, 0], sizes = [8, 128], strides = [1, 1]} : vector<24x128xf32> to vector<8x128xf32>
    %1267 = arith.addf %1265, %1266 : vector<8x128xf32>
    %1268 = vector.extract_strided_slice %1259 {offsets = [16, 0], sizes = [8, 128], strides = [1, 1]} : vector<24x128xf32> to vector<8x128xf32>
    %c127_i32_432 = arith.constant 127 : i32
    %1269 = tpu.dynamic_rotate %1268 by %c127_i32_432 dim 1 : vector<8x128xf32>, i32 -> vector<8x128xf32>
    %c127_i32_433 = arith.constant 127 : i32
    %1270 = vector.broadcast %c127_i32_433 : i32 to vector<8x128xi32>
    %1271 = arith.cmpi sge, %2, %1270 : vector<8x128xi32>
    %cst_434 = arith.constant 0.000000e+00 : f32
    %1272 = vector.broadcast %cst_434 : f32 to vector<8x128xf32>
    %1273 = arith.select %1271, %1272, %1269 : vector<8x128xi1>, vector<8x128xf32>
    %1274 = arith.addf %1267, %1273 : vector<8x128xf32>
    %1275 = vector.broadcast %1257 : vector<8x1xf32> to vector<8x128xf32>
    %1276 = arith.addf %1274, %1275 : vector<8x128xf32>
    %1277 = arith.addf %1276, %852 : vector<8x128xf32>
    %c0_435 = arith.constant 0 : index
    %c0_436 = arith.constant 0 : index
    %c0_437 = arith.constant 0 : index
    %1278 = vector.load %arg8[%c0_435, %c0_436, %c0_437] : memref<1x8x128xf32, #tpu.memory_space<vmem>>, vector<1x8x128xf32>
    %1279 = vector.shape_cast %1278 : vector<1x8x128xf32> to vector<8x128xf32>
    %1280 = vector.shape_cast %1277 : vector<8x128xf32> to vector<1x8x128xf32>
    tpu.vector_store %arg8[%c0_435, %c0_436, %c0_437], %1280 {strides = array<i32>} : memref<1x8x128xf32, #tpu.memory_space<vmem>>, vector<1x8x128xf32>,
    return
  }
  func.func @transform_0(%arg0: i32) -> (i32, i32, i32) {
    %c0_i32 = arith.constant 0 : i32
    %c0_i32_0 = arith.constant 0 : i32
    %c0_i32_1 = arith.constant 0 : i32
    return %arg0, %c0_i32, %c0_i32_0 : i32, i32, i32
  }
  func.func @transform_1(%arg0: i32) -> (i32, i32, i32) {
    %c0_i32 = arith.constant 0 : i32
    %c0_i32_0 = arith.constant 0 : i32
    %c0_i32_1 = arith.constant 0 : i32
    %c0_i32_2 = arith.constant 0 : i32
    return %c0_i32, %c0_i32_0, %c0_i32_1 : i32, i32, i32
  }
  func.func @transform_2(%arg0: i32) -> (i32, i32, i32) {
    %c0_i32 = arith.constant 0 : i32
    %c0_i32_0 = arith.constant 0 : i32
    %c0_i32_1 = arith.constant 0 : i32
    %c0_i32_2 = arith.constant 0 : i32
    return %c0_i32, %c0_i32_0, %c0_i32_1 : i32, i32, i32
  }
  func.func @transform_3(%arg0: i32) -> (i32, i32, i32) {
    %c0_i32 = arith.constant 0 : i32
    %c0_i32_0 = arith.constant 0 : i32
    %c0_i32_1 = arith.constant 0 : i32
    %c0_i32_2 = arith.constant 0 : i32
    return %c0_i32, %c0_i32_0, %c0_i32_1 : i32, i32, i32
  }
  func.func @transform_4(%arg0: i32) -> (i32, i32, i32) {
    %c0_i32 = arith.constant 0 : i32
    %c0_i32_0 = arith.constant 0 : i32
    %c0_i32_1 = arith.constant 0 : i32
    %c0_i32_2 = arith.constant 0 : i32
    return %c0_i32, %c0_i32_0, %c0_i32_1 : i32, i32, i32
  }
  func.func @transform_5(%arg0: i32) -> (i32, i32, i32) {
    %c0_i32 = arith.constant 0 : i32
    %c0_i32_0 = arith.constant 0 : i32
    %c0_i32_1 = arith.constant 0 : i32
    %c0_i32_2 = arith.constant 0 : i32
    return %c0_i32, %c0_i32_0, %c0_i32_1 : i32, i32, i32
  }
  func.func @transform_6(%arg0: i32) -> (i32, i32, i32) {
    %c0_i32 = arith.constant 0 : i32
    %c0_i32_0 = arith.constant 0 : i32
    %c0_i32_1 = arith.constant 0 : i32
    %c0_i32_2 = arith.constant 0 : i32
    return %c0_i32, %c0_i32_0, %c0_i32_1 : i32, i32, i32
  }
  func.func @transform_7(%arg0: i32) -> (i32, i32, i32) {
    %c0_i32 = arith.constant 0 : i32
    %c0_i32_0 = arith.constant 0 : i32
    %c0_i32_1 = arith.constant 0 : i32
    return %arg0, %c0_i32, %c0_i32_0 : i32, i32, i32
  }
}

</mosaic_0001>

<llo_original>
// kernel: amp_block1_forward.1
$region0: #{amp_block1_forward.1}
  #allocation0 [shape = 'u32[]', space=smem, size = 0x4, offset = 0x4, fixed_abs, tag = 'smem constant byte address 0x4 - core index']
  #allocation1 [shape = 'u32[144,128]{1,0:T(1,128)}', space=vmem, size = 0x12000, scoped, tag = 'internal scratch']
  %s0 = inlined_call_operand.vmem [shape: f32[2,8,128], index: 0, kind: input, shape index: {}]
  %s1 = inlined_call_operand.vmem [shape: bf16[3,24,8], index: 1, kind: input, shape index: {}]
  %s2 = inlined_call_operand.vmem [shape: f32[3,8,1], index: 2, kind: input, shape index: {}]
  %s3 = inlined_call_operand.vmem [shape: bf16[3,24,8], index: 3, kind: input, shape index: {}]
  %s4 = inlined_call_operand.vmem [shape: f32[3,8,1], index: 4, kind: input, shape index: {}]
  %s5 = inlined_call_operand.vmem [shape: f32[3,8,1], index: 5, kind: input, shape index: {}]
  %s6 = inlined_call_operand.vmem [shape: f32[3,8,1], index: 6, kind: input, shape index: {}]
  %s7 = inlined_call_operand.hbm [shape: f32[2,8,128], index: 7, kind: output, shape index: {}]
  %s8 = sld [smem:[#allocation0]]
  $region61: #{amp_block1_forward.1} parent=0
    _
  %s10 = ssub.s32 1, %s8
  %s11 = scalar_select 0, %s10, %s8
  $region1: #{amp_block1_forward.1} parent=0
    #allocation2 [shape = 'u8[8192]{0}', space=vmem, size = 0x2000, scoped, tag = 'output window, operand 0']
    #allocation3 [shape = 's32[2]{0}', space=sflag, size = 0x8, scoped, tag = 'scoped memory for amp_block1_forward.1']
    %12 = vsyncpa [#allocation3], 0
    %s13 = scalar_lea.sflag [#allocation3], 1
    %14 = vsyncpa %s13, 0
    loop: start=0, step=1, limit=4
    $region2: #{amp_block1_forward.1} parent=1 // loop_pre_header
      _
    $region3: #{amp_block1_forward.1} parent=1 // loop_header
      %s16 = sphi 0, %s20
      %p17 = scmp.ge.s32.totalorder %s16, 4
      %s26 = sphi 0, %s28
      %s29 = sphi 0, %s26
      %s30 = sphi 0, %s29
      %s46 = sphi 0, %s30
      %s50 = sphi 0, %s50
      %s52 = sphi 0, %s50
      %s53 = sphi 0, %s52
      %s67 = sphi 0, %s53
      %s71 = sphi 0, %s71
      %s73 = sphi 0, %s71
      %s74 = sphi 0, %s73
      %s88 = sphi 0, %s74
      %s92 = sphi 0, %s92
      %s94 = sphi 0, %s92
      %s95 = sphi 0, %s94
      %s109 = sphi 0, %s95
      %s113 = sphi 0, %s113
      %s115 = sphi 0, %s113
      %s116 = sphi 0, %s115
      %s130 = sphi 0, %s116
      %s134 = sphi 0, %s134
      %s136 = sphi 0, %s134
      %s137 = sphi 0, %s136
      %s151 = sphi 0, %s137
      %s155 = sphi 0, %s155
      %s157 = sphi 0, %s155
      %s158 = sphi 0, %s157
      %s172 = sphi 0, %s158
      %s178 = sphi 0, %s180
      %s181 = sphi 0, %s178
      %s182 = sphi 0, %s181
      %s198 = sphi 0, %s182
    $region4: #{amp_block1_forward.1} parent=1 // loop_header_branch
      %19 = sbr.rel (%p17) target = $region8
    $region5: #{amp_block1_forward.1} parent=1 // loop_body
      %s21 = ssub.s32 %s16, 1
      %s22 = ssub.s32 %s16, 2
      %s23 = sadd.s32 %s16, 1
      %s24 = ssub.s32 %s16, %s23
      %p25 = scmp.eq.s32.totalorder %s24, 0
      %s27 = sadd.s32 %s26, 1
      %s28 = scalar_select %p25, %s26, %s27
      %p31 = pneg %p25
      %p32 = scmp.eq.s32.totalorder %s16, 1
      %p33 = por %p31, %p32
      %p34 = scmp.ne.s32.totalorder %s26, %s29
      %p35 = scmp.eq.s32.totalorder %s16, 0
      %p36 = por %p34, %p35
      %p37 = scmp.ne.s32.totalorder %s26, %s29
      %p38 = scmp.eq.s32.totalorder %s21, 1
      %p39 = por %p37, %p38
      %p40 = scmp.ne.s32.totalorder %s29, %s30
      %p41 = scmp.eq.s32.totalorder %s21, 0
      %p42 = por %p40, %p41
      %p43 = scmp.ne.s32.totalorder %s29, %s30
      %p44 = scmp.eq.s32.totalorder %s22, 1
      %p45 = por %p43, %p44
      %p47 = scmp.ne.s32.totalorder %s30, %s46
      %p48 = scmp.eq.s32.totalorder %s22, 0
      %p49 = por %p47, %p48
      %s51 = sadd.s32 %s50, 1
      %p54 = scmp.eq.s32.totalorder %s16, 1
      %p55 = scmp.ne.s32.totalorder %s50, %s52
      %p56 = scmp.eq.s32.totalorder %s16, 0
      %p57 = por %p55, %p56
      %p58 = scmp.ne.s32.totalorder %s50, %s52
      %p59 = scmp.eq.s32.totalorder %s21, 1
      %p60 = por %p58, %p59
      %p61 = scmp.ne.s32.totalorder %s52, %s53
      %p62 = scmp.eq.s32.totalorder %s21, 0
      %p63 = por %p61, %p62
      %p64 = scmp.ne.s32.totalorder %s52, %s53
      %p65 = scmp.eq.s32.totalorder %s22, 1
      %p66 = por %p64, %p65
      %p68 = scmp.ne.s32.totalorder %s53, %s67
      %p69 = scmp.eq.s32.totalorder %s22, 0
      %p70 = por %p68, %p69
      %s72 = sadd.s32 %s71, 1
      %p75 = scmp.eq.s32.totalorder %s16, 1
      %p76 = scmp.ne.s32.totalorder %s71, %s73
      %p77 = scmp.eq.s32.totalorder %s16, 0
      %p78 = por %p76, %p77
      %p79 = scmp.ne.s32.totalorder %s71, %s73
      %p80 = scmp.eq.s32.totalorder %s21, 1
      %p81 = por %p79, %p80
      %p82 = scmp.ne.s32.totalorder %s73, %s74
      %p83 = scmp.eq.s32.totalorder %s21, 0
      %p84 = por %p82, %p83
      %p85 = scmp.ne.s32.totalorder %s73, %s74
      %p86 = scmp.eq.s32.totalorder %s22, 1
      %p87 = por %p85, %p86
      %p89 = scmp.ne.s32.totalorder %s74, %s88
      %p90 = scmp.eq.s32.totalorder %s22, 0
      %p91 = por %p89, %p90
      %s93 = sadd.s32 %s92, 1
      %p96 = scmp.eq.s32.totalorder %s16, 1
      %p97 = scmp.ne.s32.totalorder %s92, %s94
      %p98 = scmp.eq.s32.totalorder %s16, 0
      %p99 = por %p97, %p98
      %p100 = scmp.ne.s32.totalorder %s92, %s94
      %p101 = scmp.eq.s32.totalorder %s21, 1
      %p102 = por %p100, %p101
      %p103 = scmp.ne.s32.totalorder %s94, %s95
      %p104 = scmp.eq.s32.totalorder %s21, 0
      %p105 = por %p103, %p104
      %p106 = scmp.ne.s32.totalorder %s94, %s95
      %p107 = scmp.eq.s32.totalorder %s22, 1
      %p108 = por %p106, %p107
      %p110 = scmp.ne.s32.totalorder %s95, %s109
      %p111 = scmp.eq.s32.totalorder %s22, 0
      %p112 = por %p110, %p111
      %s114 = sadd.s32 %s113, 1
      %p117 = scmp.eq.s32.totalorder %s16, 1
      %p118 = scmp.ne.s32.totalorder %s113, %s115
      %p119 = scmp.eq.s32.totalorder %s16, 0
      %p120 = por %p118, %p119
      %p121 = scmp.ne.s32.totalorder %s113, %s115
      %p122 = scmp.eq.s32.totalorder %s21, 1
      %p123 = por %p121, %p122
      %p124 = scmp.ne.s32.totalorder %s115, %s116
      %p125 = scmp.eq.s32.totalorder %s21, 0
      %p126 = por %p124, %p125
      %p127 = scmp.ne.s32.totalorder %s115, %s116
      %p128 = scmp.eq.s32.totalorder %s22, 1
      %p129 = por %p127, %p128
      %p131 = scmp.ne.s32.totalorder %s116, %s130
      %p132 = scmp.eq.s32.totalorder %s22, 0
      %p133 = por %p131, %p132
      %s135 = sadd.s32 %s134, 1
      %p138 = scmp.eq.s32.totalorder %s16, 1
      %p139 = scmp.ne.s32.totalorder %s134, %s136
      %p140 = scmp.eq.s32.totalorder %s16, 0
      %p141 = por %p139, %p140
      %p142 = scmp.ne.s32.totalorder %s134, %s136
      %p143 = scmp.eq.s32.totalorder %s21, 1
      %p144 = por %p142, %p143
      %p145 = scmp.ne.s32.totalorder %s136, %s137
      %p146 = scmp.eq.s32.totalorder %s21, 0
      %p147 = por %p145, %p146
      %p148 = scmp.ne.s32.totalorder %s136, %s137
      %p149 = scmp.eq.s32.totalorder %s22, 1
      %p150 = por %p148, %p149
      %p152 = scmp.ne.s32.totalorder %s137, %s151
      %p153 = scmp.eq.s32.totalorder %s22, 0
      %p154 = por %p152, %p153
      %s156 = sadd.s32 %s155, 1
      %p159 = scmp.eq.s32.totalorder %s16, 1
      %p160 = scmp.ne.s32.totalorder %s155, %s157
      %p161 = scmp.eq.s32.totalorder %s16, 0
      %p162 = por %p160, %p161
      %p163 = scmp.ne.s32.totalorder %s155, %s157
      %p164 = scmp.eq.s32.totalorder %s21, 1
      %p165 = por %p163, %p164
      %p166 = scmp.ne.s32.totalorder %s157, %s158
      %p167 = scmp.eq.s32.totalorder %s21, 0
      %p168 = por %p166, %p167
      %p169 = scmp.ne.s32.totalorder %s157, %s158
      %p170 = scmp.eq.s32.totalorder %s22, 1
      %p171 = por %p169, %p170
      %p173 = scmp.ne.s32.totalorder %s158, %s172
      %p174 = scmp.eq.s32.totalorder %s22, 0
      %p175 = por %p173, %p174
      %s176 = ssub.s32 %s16, %s23
      %p177 = scmp.eq.s32.totalorder %s176, 0
      %s179 = sadd.s32 %s178, 1
      %s180 = scalar_select %p177, %s178, %s179
      %p183 = pneg %p177
      %p184 = scmp.eq.s32.totalorder %s16, 1
      %p185 = por %p183, %p184
      %p186 = scmp.ne.s32.totalorder %s178, %s181
      %p187 = scmp.eq.s32.totalorder %s16, 0
      %p188 = por %p186, %p187
      %p189 = scmp.ne.s32.totalorder %s178, %s181
      %p190 = scmp.eq.s32.totalorder %s21, 1
      %p191 = por %p189, %p190
      %p192 = scmp.ne.s32.totalorder %s181, %s182
      %p193 = scmp.eq.s32.totalorder %s21, 0
      %p194 = por %p192, %p193
      %p195 = scmp.ne.s32.totalorder %s181, %s182
      %p196 = scmp.eq.s32.totalorder %s22, 1
      %p197 = por %p195, %p196
      %p199 = scmp.ne.s32.totalorder %s182, %s198
      %p200 = scmp.eq.s32.totalorder %s22, 0
      %p201 = por %p199, %p200
      %p202 = scmp.le.s32.totalorder 1, %s16
      %p203 = scmp.lt.s32.totalorder %s16, 3
      %p204 = pnand %p202, %p203
      %p205 = pneg %p204
      // Predicated region
      $region9: #{amp_block1_forward.1} parent=5 // pred_check
        _
      $region10: #{amp_block1_forward.1} parent=5 // pred_check_branch
        %207 = sbr.rel (%p204) target = $region12
      $region11: #{amp_block1_forward.1} parent=5 // pred_region
        %s208 = ssub.s32 %s16, 1
        // Predicated region
        $region13: #{amp_block1_forward.1} parent=11 // pred_check
          %p209 = pneg %p63
        $region14: #{amp_block1_forward.1} parent=11 // pred_check_branch
          %211 = sbr.rel (%p209) target = $region16
        $region15: #{amp_block1_forward.1} parent=11 // pred_region
          _
        $region16: #{amp_block1_forward.1} parent=11 // pred_fallthru
          _
        // Predicated region
        $region17: #{amp_block1_forward.1} parent=11 // pred_check
          %p212 = pneg %p84
        $region18: #{amp_block1_forward.1} parent=11 // pred_check_branch
          %214 = sbr.rel (%p212) target = $region20
        $region19: #{amp_block1_forward.1} parent=11 // pred_region
          _
        $region20: #{amp_block1_forward.1} parent=11 // pred_fallthru
          _
        // Predicated region
        $region21: #{amp_block1_forward.1} parent=11 // pred_check
          %p215 = pneg %p105
        $region22: #{amp_block1_forward.1} parent=11 // pred_check_branch
          %217 = sbr.rel (%p215) target = $region24
        $region23: #{amp_block1_forward.1} parent=11 // pred_region
          _
        $region24: #{amp_block1_forward.1} parent=11 // pred_fallthru
          _
        // Predicated region
        $region25: #{amp_block1_forward.1} parent=11 // pred_check
          %p218 = pneg %p126
        $region26: #{amp_block1_forward.1} parent=11 // pred_check_branch
          %220 = sbr.rel (%p218) target = $region28
        $region27: #{amp_block1_forward.1} parent=11 // pred_region
          _
        $region28: #{amp_block1_forward.1} parent=11 // pred_fallthru
          _
        // Predicated region
        $region29: #{amp_block1_forward.1} parent=11 // pred_check
          %p221 = pneg %p147
        $region30: #{amp_block1_forward.1} parent=11 // pred_check_branch
          %223 = sbr.rel (%p221) target = $region32
        $region31: #{amp_block1_forward.1} parent=11 // pred_region
          _
        $region32: #{amp_block1_forward.1} parent=11 // pred_fallthru
          _
        // Predicated region
        $region33: #{amp_block1_forward.1} parent=11 // pred_check
          %p224 = pneg %p168
        $region34: #{amp_block1_forward.1} parent=11 // pred_check_branch
          %226 = sbr.rel (%p224) target = $region36
        $region35: #{amp_block1_forward.1} parent=11 // pred_region
          _
        $region36: #{amp_block1_forward.1} parent=11 // pred_fallthru
          _
      $region12: #{amp_block1_forward.1} parent=5 // pred_fallthru
        _
      %p227 = scmp.lt.s32.totalorder %s16, 2
      // Predicated region
      $region37: #{amp_block1_forward.1} parent=5 // pred_check
        %p228 = pneg %p227
      $region38: #{amp_block1_forward.1} parent=5 // pred_check_branch
        %230 = sbr.rel (%p228) target = $region40
      $region39: #{amp_block1_forward.1} parent=5 // pred_region
        // Predicated region
        $region41: #{amp_block1_forward.1} parent=39 // pred_check
          %p231 = pneg %p36
        $region42: #{amp_block1_forward.1} parent=39 // pred_check_branch
          %233 = sbr.rel (%p231) target = $region44
        $region43: #{amp_block1_forward.1} parent=39 // pred_region
          %p234 = scmp.lt.s32.totalorder %s16, 1
          %s235 = scalar_select %p234, %s16, 1
          %s236 = smul.addr %s235, 8
          %s237 = scalar_lea.vmem %s0, %s236
        $region44: #{amp_block1_forward.1} parent=39 // pred_fallthru
          _
      $region40: #{amp_block1_forward.1} parent=5 // pred_fallthru
        _
      %p238 = scmp.le.s32.totalorder 1, %s16
      %p239 = scmp.lt.s32.totalorder %s16, 3
      %p240 = pnand %p238, %p239
      %p241 = pneg %p240
      // Predicated region
      $region45: #{amp_block1_forward.1} parent=5 // pred_check
        _
      $region46: #{amp_block1_forward.1} parent=5 // pred_check_branch
        %243 = sbr.rel (%p240) target = $region48
      $region47: #{amp_block1_forward.1} parent=5 // pred_region
        %s244 = ssub.s32 %s16, 1
        %p245 = scmp.lt.s32.totalorder %s21, 1
        %s246 = scalar_select %p245, %s21, 1
        %s247 = smul.addr %s246, 8
        %s248 = scalar_lea.vmem %s0, %s247
        %p249 = pneg %p42
        %p250 = pneg %p39
        %p251 = pneg %p63
        %p252 = pneg %p60
        %p253 = pneg %p84
        %p254 = pneg %p81
        %p255 = pneg %p105
        %p256 = pneg %p102
        %p257 = pneg %p126
        %p258 = pneg %p123
        %p259 = pneg %p147
        %p260 = pneg %p144
        %p261 = pneg %p168
        %p262 = pneg %p165
        %p263 = pneg %p194
        %p264 = pneg %p191
        %s265 = sand.u32 %s181, 1
        %s266 = scalar_lea.sflag [#allocation3], %s265
        %s267 = sand.u32 %s181, 1
        %s268 = smul.addr %s267, 8
        %s269 = scalar_lea.vmem [#allocation2], %s268
        %p270 = scmp.lt.s32.totalorder %s21, 1
        %s271 = scalar_select %p270, %s21, 1
        %s272 = smul.addr %s271, 8
        %s273 = scalar_lea.vmem %s0, %s272
        %v275 = vld [vmem:[%s273] sm:$0xff]
        %v276 = vlaneseq
        %v277 = vand.u32 %v276, 127
        %v278 = vld [vmem:[%s5] sm:$0xff]
        %v279 = vadd.f32 %v278, 1e-09
        %v280 = vrcp.pop %v279
        %v281 = vmul.f32 1.0, %v280
        %282 = vrot.lane.b32.xlu0 %v275, 3
        %v283 = vpop.permute.xlu0 %282
        %vm284 = vcmp.lt.s32.totalorder %v277, 3
        %286 = vset.pattern.permute.xlu0 0
        %287 = vperm.xlu0 %286, %v275
        %v288 = vpop.permute.xlu0 %287
        %v290 = vsel %vm284, %v288, %v283
        %v291 = vmul.f32 %v290, 0.004057933
        %292 = vrot.lane.b32.xlu0 %v275, 2
        %v293 = vpop.permute.xlu0 %292
        %vm294 = vcmp.lt.s32.totalorder %v277, 2
        %v295 = vsel %vm294, %v288, %v293
        %v296 = vmul.f32 %v295, -0.05108693
        %v297 = vadd.f32 %v291, %v296
        %v298 = vmul.f32 %v295, 0.018778928
        %299 = vrot.lane.b32.xlu0 %v275, 1
        %v300 = vpop.permute.xlu0 %299
        %vm301 = vcmp.lt.s32.totalorder %v277, 1
        %v302 = vsel %vm301, %v288, %v300
        %v303 = vmul.f32 %v302, 0.25714523
        %v304 = vadd.f32 %v297, %v303
        %v305 = vmul.f32 %v302, -0.11531475
        %v306 = vadd.f32 %v298, %v305
        %v307 = vmul.f32 %v275, 0.8864196
        %v308 = vadd.f32 %v304, %v307
        %v309 = vadd.f32 %v306, %v307
        %310 = vrot.lane.b32.xlu0 %v275, 127
        %v311 = vpop.permute.xlu0 %310
        %vm312 = vcmp.ge.s32.totalorder %v277, 127
        %313 = vset.pattern.permute.xlu0 127
        %314 = vperm.xlu0 %313, %v275
        %v315 = vpop.permute.xlu0 %314
        %v317 = vsel %vm312, %v315, %v311
        %v318 = vmul.f32 %v317, -0.11531475
        %v319 = vadd.f32 %v308, %v318
        %v320 = vmul.f32 %v317, 0.25714523
        %v321 = vadd.f32 %v309, %v320
        %322 = vrot.lane.b32.xlu0 %v275, 126
        %v323 = vpop.permute.xlu0 %322
        %vm324 = vcmp.ge.s32.totalorder %v277, 126
        %v325 = vsel %vm324, %v315, %v323
        %v326 = vmul.f32 %v325, 0.018778928
        %v327 = vadd.f32 %v319, %v326
        %v328 = vmul.f32 %v325, -0.05108693
        %v329 = vadd.f32 %v321, %v328
        %330 = vrot.lane.b32.xlu0 %v275, 125
        %v331 = vpop.permute.xlu0 %330
        %vm332 = vcmp.ge.s32.totalorder %v277, 125
        %v333 = vsel %vm332, %v315, %v331
        %v334 = vmul.f32 %v333, 0.004057933
        %v335 = vadd.f32 %v329, %v334
        %337 = vset.pattern.permute.xlu0 0
        %338 = vperm.xlu0 %337, %v278
        %v339 = vpop.permute.xlu0 %338
        %v341 = vmul.f32 %v339, %v327
        %v342 = vand.u32 2147483647, %v341
        %vm343 = vcmp.le.f32.partialorder %v342, 0.7853982
        %vm344 = vcmp.lt.s32.totalorder %v341, 0
        %v345 = vand.u32 %v341, 2139095040
        %v346 = vshrl.u32 %v345, 23
        %v347 = vsub.s32 %v346, 127
        %v348 = vand.u32 2147483647, %v341
        %v349 = vand.u32 %v348, 8388607
        %v350 = vor.u32 %v349, 8388608
        %v351 = vsub.s32 0, %v350
        %v352 = vadd.s32 %v347, 1
        %vm353 = vcmp.gt.s32.totalorder %v352, 0
        %v354 = vsel %vm353, %v352, 0
        %v355 = vshrl.u32 %v354, 5
        %v356 = vand.u32 %v354, 31
        %v357 = vsub.s32 32, %v356
        %v358 = vshrl.u32 683565275, %v357
        %v359 = vshll.u32 683565275, %v356
        %v360 = vshrl.u32 2475754826, %v357
        %v361 = vor.u32 %v359, %v360
        %v362 = vshll.u32 2475754826, %v356
        %v363 = vshrl.u32 2131351028, %v357
        %v364 = vor.u32 %v362, %v363
        %v365 = vshll.u32 2131351028, %v356
        %v366 = vshrl.u32 2102212464, %v357
        %v367 = vor.u32 %v365, %v366
        %v368 = vshll.u32 2102212464, %v356
        %v369 = vshrl.u32 920167782, %v357
        %v370 = vor.u32 %v368, %v369
        %v371 = vshll.u32 920167782, %v356
        %v372 = vshrl.u32 1326507024, %v357
        %v373 = vor.u32 %v371, %v372
        %vm374 = vcmp.lt.s32.totalorder %v355, 1
        %vm375 = vcmp.lt.s32.totalorder %v355, 2
        %vm376 = vcmp.lt.s32.totalorder %v355, 3
        %vm377 = vcmp.lt.s32.totalorder %v355, 4
        %v378 = vsel %vm374, %v358, %v361
        %v379 = vsel %vm377, %v367, 2102212464
        %v380 = vsel %vm376, %v364, %v379
        %v381 = vsel %vm375, %v378, %v380
        %v382 = vsel %vm374, %v361, %v364
        %v383 = vsel %vm377, %v370, 920167782
        %v384 = vsel %vm376, %v367, %v383
        %v385 = vsel %vm375, %v382, %v384
        %v386 = vsel %vm374, %v364, %v367
        %v387 = vsel %vm377, %v373, 1326507024
        %v388 = vsel %vm376, %v370, %v387
        %v389 = vsel %vm375, %v386, %v388
        %v390 = vshll.u32 %v350, 8
        %v391 = vmul.u32.u64.compose %v390, %v389
        %v392 = vextract.low.u32 %v391
        %v393 = vextract.high.u32 %v391
        %v394 = vmul.u32.u64.compose %v390, %v385
        %v395 = vextract.low.u32 %v394
        %v396 = vextract.high.u32 %v394
        %v397 = vmul.u32 %v390, %v381
        %v398 = vadd.s32 %v393, %v395
        %vm399 = vc.u32 %v393, %v395
        %v400 = vadd.s32 %v396, 1
        %v401 = vsel %vm399, %v400, %v396
        %v402 = vadd.s32 %v397, %v401
        %v403 = vadd.s32 %v402, 536870912
        %v404 = vshrl.u32 %v403, 30
        %v405 = vshll.u32 %v404, 30
        %v406 = vsub.s32 %v402, %v405
        %vm407 = vcmp.lt.s32.totalorder %v406, 0
        %v408 = vsub.s32 0, %v406
        %v409 = vsel %vm407, %v408, %v406
        %v410 = vclz %v409
        %v411 = vsub.s32 %v410, 2
        %vm412 = vcmp.gt.s32.totalorder 0, %v411
        %v413 = vsel %vm412, 0, %v411
        %v414 = vsub.s32 32, %v413
        %v415 = vshll.u32 %v406, %v413
        %v416 = vshrl.u32 %v398, %v414
        %v417 = vor.u32 %v415, %v416
        %v418 = vsub.s32 4294967266, %v413
        %v419 = vadd.s32 %v418, 127
        %v420 = vshll.u32 %v419, 23
        %v421 = vor.u32 4788187, %v420
        %v422 = vand.u32 2147483647, %v421
        %v424 = vcvt.s32.f32 %v417
        %v425 = vmul.f32 %v424, %v422
        %v426 = vxor.u32 %v425, 2147483648
        %v427 = vsel %vm344, %v426, %v425
        %v428 = vsub.s32 4, %v404
        %v429 = vsel %vm344, %v428, %v404
        %v430 = vsel %vm343, %v341, %v427
        %v431 = vsel %vm343, 0, %v429
        %v432 = vcosq.f32.pop %v430
        %v433 = vsinq.f32.pop %v430
        %vm434 = vweird.f32 %v341
        %v435 = vadd.s32 %v431, 3
        %v436 = vand.u32 %v435, 3
        %vm437 = vcmp.lt.s32.totalorder %v436, 2
        %vm438 = vcmp.eq.s32.totalorder %v436, 0
        %v439 = vxor.u32 %v433, 2147483648
        %v440 = vsel %vm438, %v432, %v439
        %vm441 = vcmp.eq.s32.totalorder %v436, 2
        %v442 = vxor.u32 %v432, 2147483648
        %v443 = vsel %vm441, %v442, %v433
        %v444 = vsel %vm437, %v440, %v443
        %v445 = vsel %vm434, nan, %v444
        %v446 = vmul.f32 %v445, %v445
        %448 = vset.pattern.permute.xlu0 0
        %449 = vperm.xlu0 %448, %v281
        %v450 = vpop.permute.xlu0 %449
        %v452 = vmul.f32 %v450, %v446
        %v453 = vadd.f32 %v327, %v452
        %v454 = vmul.f32 %v339, %v335
        %v455 = vand.u32 2147483647, %v454
        %vm456 = vcmp.le.f32.partialorder %v455, 0.7853982
        %vm457 = vcmp.lt.s32.totalorder %v454, 0
        %v458 = vand.u32 %v454, 2139095040
        %v459 = vshrl.u32 %v458, 23
        %v460 = vsub.s32 %v459, 127
        %v461 = vand.u32 2147483647, %v454
        %v462 = vand.u32 %v461, 8388607
        %v463 = vor.u32 %v462, 8388608
        %v464 = vsub.s32 0, %v463
        %v465 = vadd.s32 %v460, 1
        %vm466 = vcmp.gt.s32.totalorder %v465, 0
        %v467 = vsel %vm466, %v465, 0
        %v468 = vshrl.u32 %v467, 5
        %v469 = vand.u32 %v467, 31
        %v470 = vsub.s32 32, %v469
        %v471 = vshrl.u32 683565275, %v470
        %v472 = vshll.u32 683565275, %v469
        %v473 = vshrl.u32 2475754826, %v470
        %v474 = vor.u32 %v472, %v473
        %v475 = vshll.u32 2475754826, %v469
        %v476 = vshrl.u32 2131351028, %v470
        %v477 = vor.u32 %v475, %v476
        %v478 = vshll.u32 2131351028, %v469
        %v479 = vshrl.u32 2102212464, %v470
        %v480 = vor.u32 %v478, %v479
        %v481 = vshll.u32 2102212464, %v469
        %v482 = vshrl.u32 920167782, %v470
        %v483 = vor.u32 %v481, %v482
        %v484 = vshll.u32 920167782, %v469
        %v485 = vshrl.u32 1326507024, %v470
        %v486 = vor.u32 %v484, %v485
        %vm487 = vcmp.lt.s32.totalorder %v468, 1
        %vm488 = vcmp.lt.s32.totalorder %v468, 2
        %vm489 = vcmp.lt.s32.totalorder %v468, 3
        %vm490 = vcmp.lt.s32.totalorder %v468, 4
        %v491 = vsel %vm487, %v471, %v474
        %v492 = vsel %vm490, %v480, 2102212464
        %v493 = vsel %vm489, %v477, %v492
        %v494 = vsel %vm488, %v491, %v493
        %v495 = vsel %vm487, %v474, %v477
        %v496 = vsel %vm490, %v483, 920167782
        %v497 = vsel %vm489, %v480, %v496
        %v498 = vsel %vm488, %v495, %v497
        %v499 = vsel %vm487, %v477, %v480
        %v500 = vsel %vm490, %v486, 1326507024
        %v501 = vsel %vm489, %v483, %v500
        %v502 = vsel %vm488, %v499, %v501
        %v503 = vshll.u32 %v463, 8
        %v504 = vmul.u32.u64.compose %v503, %v502
        %v505 = vextract.low.u32 %v504
        %v506 = vextract.high.u32 %v504
        %v507 = vmul.u32.u64.compose %v503, %v498
        %v508 = vextract.low.u32 %v507
        %v509 = vextract.high.u32 %v507
        %v510 = vmul.u32 %v503, %v494
        %v511 = vadd.s32 %v506, %v508
        %vm512 = vc.u32 %v506, %v508
        %v513 = vadd.s32 %v509, 1
        %v514 = vsel %vm512, %v513, %v509
        %v515 = vadd.s32 %v510, %v514
        %v516 = vadd.s32 %v515, 536870912
        %v517 = vshrl.u32 %v516, 30
        %v518 = vshll.u32 %v517, 30
        %v519 = vsub.s32 %v515, %v518
        %vm520 = vcmp.lt.s32.totalorder %v519, 0
        %v521 = vsub.s32 0, %v519
        %v522 = vsel %vm520, %v521, %v519
        %v523 = vclz %v522
        %v524 = vsub.s32 %v523, 2
        %vm525 = vcmp.gt.s32.totalorder 0, %v524
        %v526 = vsel %vm525, 0, %v524
        %v527 = vsub.s32 32, %v526
        %v528 = vshll.u32 %v519, %v526
        %v529 = vshrl.u32 %v511, %v527
        %v530 = vor.u32 %v528, %v529
        %v531 = vsub.s32 4294967266, %v526
        %v532 = vadd.s32 %v531, 127
        %v533 = vshll.u32 %v532, 23
        %v534 = vor.u32 4788187, %v533
        %v535 = vand.u32 2147483647, %v534
        %v537 = vcvt.s32.f32 %v530
        %v538 = vmul.f32 %v537, %v535
        %v539 = vxor.u32 %v538, 2147483648
        %v540 = vsel %vm457, %v539, %v538
        %v541 = vsub.s32 4, %v517
        %v542 = vsel %vm457, %v541, %v517
        %v543 = vsel %vm456, %v454, %v540
        %v544 = vsel %vm456, 0, %v542
        %v545 = vcosq.f32.pop %v543
        %v546 = vsinq.f32.pop %v543
        %vm547 = vweird.f32 %v454
        %v548 = vadd.s32 %v544, 3
        %v549 = vand.u32 %v548, 3
        %vm550 = vcmp.lt.s32.totalorder %v549, 2
        %vm551 = vcmp.eq.s32.totalorder %v549, 0
        %v552 = vxor.u32 %v546, 2147483648
        %v553 = vsel %vm551, %v545, %v552
        %vm554 = vcmp.eq.s32.totalorder %v549, 2
        %v555 = vxor.u32 %v545, 2147483648
        %v556 = vsel %vm554, %v555, %v546
        %v557 = vsel %vm550, %v553, %v556
        %v558 = vsel %vm547, nan, %v557
        %v559 = vmul.f32 %v558, %v558
        %v560 = vmul.f32 %v450, %v559
        %v561 = vadd.f32 %v335, %v560
        %562 = vrot.lane.b32.xlu0 %v561, 3
        %v563 = vpop.permute.xlu0 %562
        %565 = vset.pattern.permute.xlu0 0
        %566 = vperm.xlu0 %565, %v453
        %v567 = vpop.permute.xlu0 %566
        %v569 = vsel %vm284, %v567, %v563
        %v570 = vmul.f32 %v569, 0.0020289666
        %571 = vrot.lane.b32.xlu0 %v453, 2
        %v572 = vpop.permute.xlu0 %571
        %v573 = vsel %vm294, %v567, %v572
        %v574 = vmul.f32 %v573, 0.009389464
        %v575 = vadd.f32 %v570, %v574
        %576 = vrot.lane.b32.xlu0 %v561, 2
        %v577 = vpop.permute.xlu0 %576
        %v578 = vsel %vm294, %v567, %v577
        %v579 = vmul.f32 %v578, -0.025543464
        %v580 = vadd.f32 %v575, %v579
        %581 = vrot.lane.b32.xlu0 %v453, 1
        %v582 = vpop.permute.xlu0 %581
        %v583 = vsel %vm301, %v567, %v582
        %v584 = vmul.f32 %v583, -0.057657376
        %v585 = vadd.f32 %v580, %v584
        %586 = vrot.lane.b32.xlu0 %v561, 1
        %v587 = vpop.permute.xlu0 %586
        %v588 = vsel %vm301, %v567, %v587
        %v589 = vmul.f32 %v588, 0.12857261
        %v590 = vadd.f32 %v585, %v589
        %v591 = vmul.f32 %v453, 0.4432098
        %v592 = vadd.f32 %v590, %v591
        %v593 = vmul.f32 %v561, 0.4432098
        %v594 = vadd.f32 %v592, %v593
        %595 = vrot.lane.b32.xlu0 %v453, 127
        %v596 = vpop.permute.xlu0 %595
        %598 = vset.pattern.permute.xlu0 127
        %599 = vperm.xlu0 %598, %v561
        %v600 = vpop.permute.xlu0 %599
        %v602 = vsel %vm312, %v600, %v596
        %v603 = vmul.f32 %v602, 0.12857261
        %v604 = vadd.f32 %v594, %v603
        %605 = vrot.lane.b32.xlu0 %v561, 127
        %v606 = vpop.permute.xlu0 %605
        %v607 = vsel %vm312, %v600, %v606
        %v608 = vmul.f32 %v607, -0.057657376
        %v609 = vadd.f32 %v604, %v608
        %610 = vrot.lane.b32.xlu0 %v453, 126
        %v611 = vpop.permute.xlu0 %610
        %v612 = vsel %vm324, %v600, %v611
        %v613 = vmul.f32 %v612, -0.025543464
        %v614 = vadd.f32 %v609, %v613
        %615 = vrot.lane.b32.xlu0 %v561, 126
        %v616 = vpop.permute.xlu0 %615
        %v617 = vsel %vm324, %v600, %v616
        %v618 = vmul.f32 %v617, 0.009389464
        %v619 = vadd.f32 %v614, %v618
        %620 = vrot.lane.b32.xlu0 %v453, 125
        %v621 = vpop.permute.xlu0 %620
        %v622 = vsel %vm332, %v600, %v621
        %v623 = vmul.f32 %v622, 0.0020289666
        %v624 = vadd.f32 %v619, %v623
        %v625 = vld [vmem:[%s1] sm:$0xf]
        %v626 = vld [vmem:[%s1 + $0x4] sm:$0xf]
        %v627 = vld [vmem:[%s1 + $0x8] sm:$0xf]
        %v628 = vld [vmem:[%s2] sm:$0xff]
        %v629 = vpack.c.bf16 %v624, %v624
        %v633 = vunpack.c.l.b16 %v625
        %v634 = vunpack.c.l.b16 %v626
        %v635 = vunpack.c.l.b16 %v627
        %v636 = vpack.c.b16 %v634, %v633
        %v637 = vpack.c.b16 %v635, %v635
        %vm638 = vcmask 64512
        %v640 = vsel %vm638, %v636, 0
        %v643 = vsel %vm638, %v637, 0
        %vm645 = vcmask 1043456
        %v647 = vsel %vm645, %v629, 0
        %649 = vmatprep.subr.bf16.mxu0 0
        %650 = vmatpush1.bf16.msra.mxu0 0
        %651 = vmatprep.subr.bf16.mxu0 0
        %652 = vmatpush1.bf16.msra.mxu0 0
        %653 = vmatprep.subr.bf16.mxu0 0
        %654 = vmatpush1.bf16.msra.mxu0 0
        %655 = vmatprep.subr.bf16.mxu0 0
        %656 = vmatpush1.bf16.msra.mxu0 0
        %657 = vmatprep.subr.bf16.mxu0 0
        %658 = vmatpush1.bf16.msra.mxu0 0
        %659 = vmatprep.subr.bf16.mxu0 0
        %660 = vmatpush1.bf16.msra.mxu0 0
        %661 = vmatprep.subr.bf16.mxu0 0
        %662 = vmatpush1.bf16.msra.mxu0 0
        %663 = vmatprep.subr.bf16.mxu0 0
        %664 = vmatpush1.bf16.msra.mxu0 %v647
        %665 = vmatprep.subr.bf16.mxu0 0
        %666 = vmatpush2.bf16.msra.mxu0 0
        %667 = vmatprep.subr.bf16.mxu0 0
        %668 = vmatpush2.bf16.msra.mxu0 0
        %669 = vmatprep.subr.bf16.mxu0 0
        %670 = vmatpush2.bf16.msra.mxu0 0
        %671 = vmatprep.subr.bf16.mxu0 0
        %672 = vmatpush2.bf16.msra.mxu0 0
        %673 = vmatprep.subr.bf16.mxu0 0
        %674 = vmatpush2.bf16.msra.mxu0 0
        %675 = vmatprep.subr.bf16.mxu0 0
        %676 = vmatpush2.bf16.msra.mxu0 0
        %677 = vmatprep.subr.bf16.mxu0 0
        %678 = vmatpush2.bf16.msra.mxu0 0
        %679 = vmatprep.subr.bf16.mxu0 0
        %680 = vmatpush2.bf16.msra.mxu0 0
        %681 = vmatprep.mubr.bf16.mxu0 0
        %682 = vmatmul.mubr.bf16.gmra.mxu0 %v640
        %v683 = vpop.f32.mrf.mxu0
        %v684 = vadd.f32 0.0, %v683
        %v685 = vpop.f32.mrf.mxu0
        %v686 = vpop.f32.mrf.mxu0
        %v687 = vadd.f32 0.0, %v686
        %v688 = vpop.f32.mrf.mxu0
        %689 = vmatprep.mubr.bf16.mxu0 0
        %690 = vmatmul.mubr.bf16.gmra.mxu0 %v643
        %v691 = vpop.f32.mrf.mxu0
        %v692 = vadd.f32 0.0, %v691
        %v693 = vpop.f32.mrf.mxu0
        %v694 = vpop.f32.mrf.mxu0
        %v695 = vpop.f32.mrf.mxu0
        %696 = vdwg.mxu0
        %697 = vrot.lane.b32.xlu0 %v684, 1
        %v698 = vpop.permute.xlu0 %697
        %v699 = vsel %vm301, 0.0, %v698
        %v700 = vadd.f32 %v699, %v687
        %701 = vrot.lane.b32.xlu0 %v692, 127
        %v702 = vpop.permute.xlu0 %701
        %v703 = vsel %vm312, 0.0, %v702
        %v704 = vadd.f32 %v700, %v703
        %706 = vset.pattern.permute.xlu0 0
        %707 = vperm.xlu0 %706, %v628
        %v708 = vpop.permute.xlu0 %707
        %v710 = vadd.f32 %v704, %v708
        %v711 = vld [vmem:[%s6] sm:$0xff]
        %v712 = vadd.f32 %v711, 1e-09
        %v713 = vrcp.pop %v712
        %v714 = vmul.f32 1.0, %v713
        %715 = vrot.lane.b32.xlu0 %v710, 3
        %v716 = vpop.permute.xlu0 %715
        %718 = vset.pattern.permute.xlu0 0
        %719 = vperm.xlu0 %718, %v710
        %v720 = vpop.permute.xlu0 %719
        %v722 = vsel %vm284, %v720, %v716
        %v723 = vmul.f32 %v722, 0.004057933
        %724 = vrot.lane.b32.xlu0 %v710, 2
        %v725 = vpop.permute.xlu0 %724
        %v726 = vsel %vm294, %v720, %v725
        %v727 = vmul.f32 %v726, -0.05108693
        %v728 = vadd.f32 %v723, %v727
        %v729 = vmul.f32 %v726, 0.018778928
        %730 = vrot.lane.b32.xlu0 %v710, 1
        %v731 = vpop.permute.xlu0 %730
        %v732 = vsel %vm301, %v720, %v731
        %v733 = vmul.f32 %v732, 0.25714523
        %v734 = vadd.f32 %v728, %v733
        %v735 = vmul.f32 %v732, -0.11531475
        %v736 = vadd.f32 %v729, %v735
        %v737 = vmul.f32 %v710, 0.8864196
        %v738 = vadd.f32 %v734, %v737
        %v739 = vadd.f32 %v736, %v737
        %740 = vrot.lane.b32.xlu0 %v710, 127
        %v741 = vpop.permute.xlu0 %740
        %742 = vset.pattern.permute.xlu0 127
        %743 = vperm.xlu0 %742, %v710
        %v744 = vpop.permute.xlu0 %743
        %v746 = vsel %vm312, %v744, %v741
        %v747 = vmul.f32 %v746, -0.11531475
        %v748 = vadd.f32 %v738, %v747
        %v749 = vmul.f32 %v746, 0.25714523
        %v750 = vadd.f32 %v739, %v749
        %751 = vrot.lane.b32.xlu0 %v710, 126
        %v752 = vpop.permute.xlu0 %751
        %v753 = vsel %vm324, %v744, %v752
        %v754 = vmul.f32 %v753, 0.018778928
        %v755 = vadd.f32 %v748, %v754
        %v756 = vmul.f32 %v753, -0.05108693
        %v757 = vadd.f32 %v750, %v756
        %758 = vrot.lane.b32.xlu0 %v710, 125
        %v759 = vpop.permute.xlu0 %758
        %v760 = vsel %vm332, %v744, %v759
        %v761 = vmul.f32 %v760, 0.004057933
        %v762 = vadd.f32 %v757, %v761
        %764 = vset.pattern.permute.xlu0 0
        %765 = vperm.xlu0 %764, %v711
        %v766 = vpop.permute.xlu0 %765
        %v768 = vmul.f32 %v766, %v755
        %v769 = vand.u32 2147483647, %v768
        %vm770 = vcmp.le.f32.partialorder %v769, 0.7853982
        %vm771 = vcmp.lt.s32.totalorder %v768, 0
        %v772 = vand.u32 %v768, 2139095040
        %v773 = vshrl.u32 %v772, 23
        %v774 = vsub.s32 %v773, 127
        %v775 = vand.u32 2147483647, %v768
        %v776 = vand.u32 %v775, 8388607
        %v777 = vor.u32 %v776, 8388608
        %v778 = vsub.s32 0, %v777
        %v779 = vadd.s32 %v774, 1
        %vm780 = vcmp.gt.s32.totalorder %v779, 0
        %v781 = vsel %vm780, %v779, 0
        %v782 = vshrl.u32 %v781, 5
        %v783 = vand.u32 %v781, 31
        %v784 = vsub.s32 32, %v783
        %v785 = vshrl.u32 683565275, %v784
        %v786 = vshll.u32 683565275, %v783
        %v787 = vshrl.u32 2475754826, %v784
        %v788 = vor.u32 %v786, %v787
        %v789 = vshll.u32 2475754826, %v783
        %v790 = vshrl.u32 2131351028, %v784
        %v791 = vor.u32 %v789, %v790
        %v792 = vshll.u32 2131351028, %v783
        %v793 = vshrl.u32 2102212464, %v784
        %v794 = vor.u32 %v792, %v793
        %v795 = vshll.u32 2102212464, %v783
        %v796 = vshrl.u32 920167782, %v784
        %v797 = vor.u32 %v795, %v796
        %v798 = vshll.u32 920167782, %v783
        %v799 = vshrl.u32 1326507024, %v784
        %v800 = vor.u32 %v798, %v799
        %vm801 = vcmp.lt.s32.totalorder %v782, 1
        %vm802 = vcmp.lt.s32.totalorder %v782, 2
        %vm803 = vcmp.lt.s32.totalorder %v782, 3
        %vm804 = vcmp.lt.s32.totalorder %v782, 4
        %v805 = vsel %vm801, %v785, %v788
        %v806 = vsel %vm804, %v794, 2102212464
        %v807 = vsel %vm803, %v791, %v806
        %v808 = vsel %vm802, %v805, %v807
        %v809 = vsel %vm801, %v788, %v791
        %v810 = vsel %vm804, %v797, 920167782
        %v811 = vsel %vm803, %v794, %v810
        %v812 = vsel %vm802, %v809, %v811
        %v813 = vsel %vm801, %v791, %v794
        %v814 = vsel %vm804, %v800, 1326507024
        %v815 = vsel %vm803, %v797, %v814
        %v816 = vsel %vm802, %v813, %v815
        %v817 = vshll.u32 %v777, 8
        %v818 = vmul.u32.u64.compose %v817, %v816
        %v819 = vextract.low.u32 %v818
        %v820 = vextract.high.u32 %v818
        %v821 = vmul.u32.u64.compose %v817, %v812
        %v822 = vextract.low.u32 %v821
        %v823 = vextract.high.u32 %v821
        %v824 = vmul.u32 %v817, %v808
        %v825 = vadd.s32 %v820, %v822
        %vm826 = vc.u32 %v820, %v822
        %v827 = vadd.s32 %v823, 1
        %v828 = vsel %vm826, %v827, %v823
        %v829 = vadd.s32 %v824, %v828
        %v830 = vadd.s32 %v829, 536870912
        %v831 = vshrl.u32 %v830, 30
        %v832 = vshll.u32 %v831, 30
        %v833 = vsub.s32 %v829, %v832
        %vm834 = vcmp.lt.s32.totalorder %v833, 0
        %v835 = vsub.s32 0, %v833
        %v836 = vsel %vm834, %v835, %v833
        %v837 = vclz %v836
        %v838 = vsub.s32 %v837, 2
        %vm839 = vcmp.gt.s32.totalorder 0, %v838
        %v840 = vsel %vm839, 0, %v838
        %v841 = vsub.s32 32, %v840
        %v842 = vshll.u32 %v833, %v840
        %v843 = vshrl.u32 %v825, %v841
        %v844 = vor.u32 %v842, %v843
        %v845 = vsub.s32 4294967266, %v840
        %v846 = vadd.s32 %v845, 127
        %v847 = vshll.u32 %v846, 23
        %v848 = vor.u32 4788187, %v847
        %v849 = vand.u32 2147483647, %v848
        %v851 = vcvt.s32.f32 %v844
        %v852 = vmul.f32 %v851, %v849
        %v853 = vxor.u32 %v852, 2147483648
        %v854 = vsel %vm771, %v853, %v852
        %v855 = vsub.s32 4, %v831
        %v856 = vsel %vm771, %v855, %v831
        %v857 = vsel %vm770, %v768, %v854
        %v858 = vsel %vm770, 0, %v856
        %v859 = vcosq.f32.pop %v857
        %v860 = vsinq.f32.pop %v857
        %vm861 = vweird.f32 %v768
        %v862 = vadd.s32 %v858, 3
        %v863 = vand.u32 %v862, 3
        %vm864 = vcmp.lt.s32.totalorder %v863, 2
        %vm865 = vcmp.eq.s32.totalorder %v863, 0
        %v866 = vxor.u32 %v860, 2147483648
        %v867 = vsel %vm865, %v859, %v866
        %vm868 = vcmp.eq.s32.totalorder %v863, 2
        %v869 = vxor.u32 %v859, 2147483648
        %v870 = vsel %vm868, %v869, %v860
        %v871 = vsel %vm864, %v867, %v870
        %v872 = vsel %vm861, nan, %v871
        %v873 = vmul.f32 %v872, %v872
        %875 = vset.pattern.permute.xlu0 0
        %876 = vperm.xlu0 %875, %v714
        %v877 = vpop.permute.xlu0 %876
        %v879 = vmul.f32 %v877, %v873
        %v880 = vadd.f32 %v755, %v879
        %v881 = vmul.f32 %v766, %v762
        %v882 = vand.u32 2147483647, %v881
        %vm883 = vcmp.le.f32.partialorder %v882, 0.7853982
        %vm884 = vcmp.lt.s32.totalorder %v881, 0
        %v885 = vand.u32 %v881, 2139095040
        %v886 = vshrl.u32 %v885, 23
        %v887 = vsub.s32 %v886, 127
        %v888 = vand.u32 2147483647, %v881
        %v889 = vand.u32 %v888, 8388607
        %v890 = vor.u32 %v889, 8388608
        %v891 = vsub.s32 0, %v890
        %v892 = vadd.s32 %v887, 1
        %vm893 = vcmp.gt.s32.totalorder %v892, 0
        %v894 = vsel %vm893, %v892, 0
        %v895 = vshrl.u32 %v894, 5
        %v896 = vand.u32 %v894, 31
        %v897 = vsub.s32 32, %v896
        %v898 = vshrl.u32 683565275, %v897
        %v899 = vshll.u32 683565275, %v896
        %v900 = vshrl.u32 2475754826, %v897
        %v901 = vor.u32 %v899, %v900
        %v902 = vshll.u32 2475754826, %v896
        %v903 = vshrl.u32 2131351028, %v897
        %v904 = vor.u32 %v902, %v903
        %v905 = vshll.u32 2131351028, %v896
        %v906 = vshrl.u32 2102212464, %v897
        %v907 = vor.u32 %v905, %v906
        %v908 = vshll.u32 2102212464, %v896
        %v909 = vshrl.u32 920167782, %v897
        %v910 = vor.u32 %v908, %v909
        %v911 = vshll.u32 920167782, %v896
        %v912 = vshrl.u32 1326507024, %v897
        %v913 = vor.u32 %v911, %v912
        %vm914 = vcmp.lt.s32.totalorder %v895, 1
        %vm915 = vcmp.lt.s32.totalorder %v895, 2
        %vm916 = vcmp.lt.s32.totalorder %v895, 3
        %vm917 = vcmp.lt.s32.totalorder %v895, 4
        %v918 = vsel %vm914, %v898, %v901
        %v919 = vsel %vm917, %v907, 2102212464
        %v920 = vsel %vm916, %v904, %v919
        %v921 = vsel %vm915, %v918, %v920
        %v922 = vsel %vm914, %v901, %v904
        %v923 = vsel %vm917, %v910, 920167782
        %v924 = vsel %vm916, %v907, %v923
        %v925 = vsel %vm915, %v922, %v924
        %v926 = vsel %vm914, %v904, %v907
        %v927 = vsel %vm917, %v913, 1326507024
        %v928 = vsel %vm916, %v910, %v927
        %v929 = vsel %vm915, %v926, %v928
        %v930 = vshll.u32 %v890, 8
        %v931 = vmul.u32.u64.compose %v930, %v929
        %v932 = vextract.low.u32 %v931
        %v933 = vextract.high.u32 %v931
        %v934 = vmul.u32.u64.compose %v930, %v925
        %v935 = vextract.low.u32 %v934
        %v936 = vextract.high.u32 %v934
        %v937 = vmul.u32 %v930, %v921
        %v938 = vadd.s32 %v933, %v935
        %vm939 = vc.u32 %v933, %v935
        %v940 = vadd.s32 %v936, 1
        %v941 = vsel %vm939, %v940, %v936
        %v942 = vadd.s32 %v937, %v941
        %v943 = vadd.s32 %v942, 536870912
        %v944 = vshrl.u32 %v943, 30
        %v945 = vshll.u32 %v944, 30
        %v946 = vsub.s32 %v942, %v945
        %vm947 = vcmp.lt.s32.totalorder %v946, 0
        %v948 = vsub.s32 0, %v946
        %v949 = vsel %vm947, %v948, %v946
        %v950 = vclz %v949
        %v951 = vsub.s32 %v950, 2
        %vm952 = vcmp.gt.s32.totalorder 0, %v951
        %v953 = vsel %vm952, 0, %v951
        %v954 = vsub.s32 32, %v953
        %v955 = vshll.u32 %v946, %v953
        %v956 = vshrl.u32 %v938, %v954
        %v957 = vor.u32 %v955, %v956
        %v958 = vsub.s32 4294967266, %v953
        %v959 = vadd.s32 %v958, 127
        %v960 = vshll.u32 %v959, 23
        %v961 = vor.u32 4788187, %v960
        %v962 = vand.u32 2147483647, %v961
        %v964 = vcvt.s32.f32 %v957
        %v965 = vmul.f32 %v964, %v962
        %v966 = vxor.u32 %v965, 2147483648
        %v967 = vsel %vm884, %v966, %v965
        %v968 = vsub.s32 4, %v944
        %v969 = vsel %vm884, %v968, %v944
        %v970 = vsel %vm883, %v881, %v967
        %v971 = vsel %vm883, 0, %v969
        %v972 = vcosq.f32.pop %v970
        %v973 = vsinq.f32.pop %v970
        %vm974 = vweird.f32 %v881
        %v975 = vadd.s32 %v971, 3
        %v976 = vand.u32 %v975, 3
        %vm977 = vcmp.lt.s32.totalorder %v976, 2
        %vm978 = vcmp.eq.s32.totalorder %v976, 0
        %v979 = vxor.u32 %v973, 2147483648
        %v980 = vsel %vm978, %v972, %v979
        %vm981 = vcmp.eq.s32.totalorder %v976, 2
        %v982 = vxor.u32 %v972, 2147483648
        %v983 = vsel %vm981, %v982, %v973
        %v984 = vsel %vm977, %v980, %v983
        %v985 = vsel %vm974, nan, %v984
        %v986 = vmul.f32 %v985, %v985
        %v987 = vmul.f32 %v877, %v986
        %v988 = vadd.f32 %v762, %v987
        %989 = vrot.lane.b32.xlu0 %v988, 3
        %v990 = vpop.permute.xlu0 %989
        %992 = vset.pattern.permute.xlu0 0
        %993 = vperm.xlu0 %992, %v880
        %v994 = vpop.permute.xlu0 %993
        %v996 = vsel %vm284, %v994, %v990
        %v997 = vmul.f32 %v996, 0.0020289666
        %998 = vrot.lane.b32.xlu0 %v880, 2
        %v999 = vpop.permute.xlu0 %998
        %v1000 = vsel %vm294, %v994, %v999
        %v1001 = vmul.f32 %v1000, 0.009389464
        %v1002 = vadd.f32 %v997, %v1001
        %1003 = vrot.lane.b32.xlu0 %v988, 2
        %v1004 = vpop.permute.xlu0 %1003
        %v1005 = vsel %vm294, %v994, %v1004
        %v1006 = vmul.f32 %v1005, -0.025543464
        %v1007 = vadd.f32 %v1002, %v1006
        %1008 = vrot.lane.b32.xlu0 %v880, 1
        %v1009 = vpop.permute.xlu0 %1008
        %v1010 = vsel %vm301, %v994, %v1009
        %v1011 = vmul.f32 %v1010, -0.057657376
        %v1012 = vadd.f32 %v1007, %v1011
        %1013 = vrot.lane.b32.xlu0 %v988, 1
        %v1014 = vpop.permute.xlu0 %1013
        %v1015 = vsel %vm301, %v994, %v1014
        %v1016 = vmul.f32 %v1015, 0.12857261
        %v1017 = vadd.f32 %v1012, %v1016
        %v1018 = vmul.f32 %v880, 0.4432098
        %v1019 = vadd.f32 %v1017, %v1018
        %v1020 = vmul.f32 %v988, 0.4432098
        %v1021 = vadd.f32 %v1019, %v1020
        %1022 = vrot.lane.b32.xlu0 %v880, 127
        %v1023 = vpop.permute.xlu0 %1022
        %1025 = vset.pattern.permute.xlu0 127
        %1026 = vperm.xlu0 %1025, %v988
        %v1027 = vpop.permute.xlu0 %1026
        %v1029 = vsel %vm312, %v1027, %v1023
        %v1030 = vmul.f32 %v1029, 0.12857261
        %v1031 = vadd.f32 %v1021, %v1030
        %1032 = vrot.lane.b32.xlu0 %v988, 127
        %v1033 = vpop.permute.xlu0 %1032
        %v1034 = vsel %vm312, %v1027, %v1033
        %v1035 = vmul.f32 %v1034, -0.057657376
        %v1036 = vadd.f32 %v1031, %v1035
        %1037 = vrot.lane.b32.xlu0 %v880, 126
        %v1038 = vpop.permute.xlu0 %1037
        %v1039 = vsel %vm324, %v1027, %v1038
        %v1040 = vmul.f32 %v1039, -0.025543464
        %v1041 = vadd.f32 %v1036, %v1040
        %1042 = vrot.lane.b32.xlu0 %v988, 126
        %v1043 = vpop.permute.xlu0 %1042
        %v1044 = vsel %vm324, %v1027, %v1043
        %v1045 = vmul.f32 %v1044, 0.009389464
        %v1046 = vadd.f32 %v1041, %v1045
        %1047 = vrot.lane.b32.xlu0 %v880, 125
        %v1048 = vpop.permute.xlu0 %1047
        %v1049 = vsel %vm332, %v1027, %v1048
        %v1050 = vmul.f32 %v1049, 0.0020289666
        %v1051 = vadd.f32 %v1046, %v1050
        %v1052 = vld [vmem:[%s3] sm:$0xf]
        %v1053 = vld [vmem:[%s3 + $0x4] sm:$0xf]
        %v1054 = vld [vmem:[%s3 + $0x8] sm:$0xf]
        %v1055 = vld [vmem:[%s4] sm:$0xff]
        %v1056 = vpack.c.bf16 %v1051, %v1051
        %v1060 = vunpack.c.l.b16 %v1052
        %v1061 = vunpack.c.l.b16 %v1053
        %v1062 = vunpack.c.l.b16 %v1054
        %v1063 = vpack.c.b16 %v1061, %v1060
        %v1064 = vpack.c.b16 %v1062, %v1062
        %v1066 = vsel %vm638, %v1063, 0
        %v1069 = vsel %vm638, %v1064, 0
        %v1072 = vsel %vm645, %v1056, 0
        %1074 = vmatprep.subr.bf16.mxu0 0
        %1075 = vmatpush1.bf16.msra.mxu0 0
        %1076 = vmatprep.subr.bf16.mxu0 0
        %1077 = vmatpush1.bf16.msra.mxu0 0
        %1078 = vmatprep.subr.bf16.mxu0 0
        %1079 = vmatpush1.bf16.msra.mxu0 0
        %1080 = vmatprep.subr.bf16.mxu0 0
        %1081 = vmatpush1.bf16.msra.mxu0 0
        %1082 = vmatprep.subr.bf16.mxu0 0
        %1083 = vmatpush1.bf16.msra.mxu0 0
        %1084 = vmatprep.subr.bf16.mxu0 0
        %1085 = vmatpush1.bf16.msra.mxu0 0
        %1086 = vmatprep.subr.bf16.mxu0 0
        %1087 = vmatpush1.bf16.msra.mxu0 0
        %1088 = vmatprep.subr.bf16.mxu0 0
        %1089 = vmatpush1.bf16.msra.mxu0 %v1072
        %1090 = vmatprep.subr.bf16.mxu0 0
        %1091 = vmatpush2.bf16.msra.mxu0 0
        %1092 = vmatprep.subr.bf16.mxu0 0
        %1093 = vmatpush2.bf16.msra.mxu0 0
        %1094 = vmatprep.subr.bf16.mxu0 0
        %1095 = vmatpush2.bf16.msra.mxu0 0
        %1096 = vmatprep.subr.bf16.mxu0 0
        %1097 = vmatpush2.bf16.msra.mxu0 0
        %1098 = vmatprep.subr.bf16.mxu0 0
        %1099 = vmatpush2.bf16.msra.mxu0 0
        %1100 = vmatprep.subr.bf16.mxu0 0
        %1101 = vmatpush2.bf16.msra.mxu0 0
        %1102 = vmatprep.subr.bf16.mxu0 0
        %1103 = vmatpush2.bf16.msra.mxu0 0
        %1104 = vmatprep.subr.bf16.mxu0 0
        %1105 = vmatpush2.bf16.msra.mxu0 0
        %1106 = vmatprep.mubr.bf16.mxu0 0
        %1107 = vmatmul.mubr.bf16.gmra.mxu0 %v1066
        %v1108 = vpop.f32.mrf.mxu0
        %v1109 = vadd.f32 0.0, %v1108
        %v1110 = vpop.f32.mrf.mxu0
        %v1111 = vpop.f32.mrf.mxu0
        %v1112 = vadd.f32 0.0, %v1111
        %v1113 = vpop.f32.mrf.mxu0
        %1114 = vmatprep.mubr.bf16.mxu0 0
        %1115 = vmatmul.mubr.bf16.gmra.mxu0 %v1069
        %v1116 = vpop.f32.mrf.mxu0
        %v1117 = vadd.f32 0.0, %v1116
        %v1118 = vpop.f32.mrf.mxu0
        %v1119 = vpop.f32.mrf.mxu0
        %v1120 = vpop.f32.mrf.mxu0
        %1121 = vdwg.mxu0
        %1122 = vrot.lane.b32.xlu0 %v1109, 1
        %v1123 = vpop.permute.xlu0 %1122
        %v1124 = vsel %vm301, 0.0, %v1123
        %v1125 = vadd.f32 %v1124, %v1112
        %1126 = vrot.lane.b32.xlu0 %v1117, 127
        %v1127 = vpop.permute.xlu0 %1126
        %v1128 = vsel %vm312, 0.0, %v1127
        %v1129 = vadd.f32 %v1125, %v1128
        %1131 = vset.pattern.permute.xlu0 0
        %1132 = vperm.xlu0 %1131, %v1055
        %v1133 = vpop.permute.xlu0 %1132
        %v1135 = vadd.f32 %v1129, %v1133
        %v1136 = vadd.f32 %v1135, %v275
        %s1137 = scalar_lea.vmem %s5, 8
        %v1138 = vld [vmem:[%s1137] sm:$0xff]
        %v1139 = vadd.f32 %v1138, 1e-09
        %v1140 = vrcp.pop %v1139
        %v1141 = vmul.f32 1.0, %v1140
        %1142 = vrot.lane.b32.xlu0 %v1136, 3
        %v1143 = vpop.permute.xlu0 %1142
        %1145 = vset.pattern.permute.xlu0 0
        %1146 = vperm.xlu0 %1145, %v1136
        %v1147 = vpop.permute.xlu0 %1146
        %v1149 = vsel %vm284, %v1147, %v1143
        %v1150 = vmul.f32 %v1149, 0.004057933
        %1151 = vrot.lane.b32.xlu0 %v1136, 2
        %v1152 = vpop.permute.xlu0 %1151
        %v1153 = vsel %vm294, %v1147, %v1152
        %v1154 = vmul.f32 %v1153, -0.05108693
        %v1155 = vadd.f32 %v1150, %v1154
        %v1156 = vmul.f32 %v1153, 0.018778928
        %1157 = vrot.lane.b32.xlu0 %v1136, 1
        %v1158 = vpop.permute.xlu0 %1157
        %v1159 = vsel %vm301, %v1147, %v1158
        %v1160 = vmul.f32 %v1159, 0.25714523
        %v1161 = vadd.f32 %v1155, %v1160
        %v1162 = vmul.f32 %v1159, -0.11531475
        %v1163 = vadd.f32 %v1156, %v1162
        %v1164 = vmul.f32 %v1136, 0.8864196
        %v1165 = vadd.f32 %v1161, %v1164
        %v1166 = vadd.f32 %v1163, %v1164
        %1167 = vrot.lane.b32.xlu0 %v1136, 127
        %v1168 = vpop.permute.xlu0 %1167
        %1169 = vset.pattern.permute.xlu0 127
        %1170 = vperm.xlu0 %1169, %v1136
        %v1171 = vpop.permute.xlu0 %1170
        %v1173 = vsel %vm312, %v1171, %v1168
        %v1174 = vmul.f32 %v1173, -0.11531475
        %v1175 = vadd.f32 %v1165, %v1174
        %v1176 = vmul.f32 %v1173, 0.25714523
        %v1177 = vadd.f32 %v1166, %v1176
        %1178 = vrot.lane.b32.xlu0 %v1136, 126
        %v1179 = vpop.permute.xlu0 %1178
        %v1180 = vsel %vm324, %v1171, %v1179
        %v1181 = vmul.f32 %v1180, 0.018778928
        %v1182 = vadd.f32 %v1175, %v1181
        %v1183 = vmul.f32 %v1180, -0.05108693
        %v1184 = vadd.f32 %v1177, %v1183
        %1185 = vrot.lane.b32.xlu0 %v1136, 125
        %v1186 = vpop.permute.xlu0 %1185
        %v1187 = vsel %vm332, %v1171, %v1186
        %v1188 = vmul.f32 %v1187, 0.004057933
        %v1189 = vadd.f32 %v1184, %v1188
        %1191 = vset.pattern.permute.xlu0 0
        %1192 = vperm.xlu0 %1191, %v1138
        %v1193 = vpop.permute.xlu0 %1192
        %v1195 = vmul.f32 %v1193, %v1182
        %v1196 = vand.u32 2147483647, %v1195
        %vm1197 = vcmp.le.f32.partialorder %v1196, 0.7853982
        %vm1198 = vcmp.lt.s32.totalorder %v1195, 0
        %v1199 = vand.u32 %v1195, 2139095040
        %v1200 = vshrl.u32 %v1199, 23
        %v1201 = vsub.s32 %v1200, 127
        %v1202 = vand.u32 2147483647, %v1195
        %v1203 = vand.u32 %v1202, 8388607
        %v1204 = vor.u32 %v1203, 8388608
        %v1205 = vsub.s32 0, %v1204
        %v1206 = vadd.s32 %v1201, 1
        %vm1207 = vcmp.gt.s32.totalorder %v1206, 0
        %v1208 = vsel %vm1207, %v1206, 0
        %v1209 = vshrl.u32 %v1208, 5
        %v1210 = vand.u32 %v1208, 31
        %v1211 = vsub.s32 32, %v1210
        %v1212 = vshrl.u32 683565275, %v1211
        %v1213 = vshll.u32 683565275, %v1210
        %v1214 = vshrl.u32 2475754826, %v1211
        %v1215 = vor.u32 %v1213, %v1214
        %v1216 = vshll.u32 2475754826, %v1210
        %v1217 = vshrl.u32 2131351028, %v1211
        %v1218 = vor.u32 %v1216, %v1217
        %v1219 = vshll.u32 2131351028, %v1210
        %v1220 = vshrl.u32 2102212464, %v1211
        %v1221 = vor.u32 %v1219, %v1220
        %v1222 = vshll.u32 2102212464, %v1210
        %v1223 = vshrl.u32 920167782, %v1211
        %v1224 = vor.u32 %v1222, %v1223
        %v1225 = vshll.u32 920167782, %v1210
        %v1226 = vshrl.u32 1326507024, %v1211
        %v1227 = vor.u32 %v1225, %v1226
        %vm1228 = vcmp.lt.s32.totalorder %v1209, 1
        %vm1229 = vcmp.lt.s32.totalorder %v1209, 2
        %vm1230 = vcmp.lt.s32.totalorder %v1209, 3
        %vm1231 = vcmp.lt.s32.totalorder %v1209, 4
        %v1232 = vsel %vm1228, %v1212, %v1215
        %v1233 = vsel %vm1231, %v1221, 2102212464
        %v1234 = vsel %vm1230, %v1218, %v1233
        %v1235 = vsel %vm1229, %v1232, %v1234
        %v1236 = vsel %vm1228, %v1215, %v1218
        %v1237 = vsel %vm1231, %v1224, 920167782
        %v1238 = vsel %vm1230, %v1221, %v1237
        %v1239 = vsel %vm1229, %v1236, %v1238
        %v1240 = vsel %vm1228, %v1218, %v1221
        %v1241 = vsel %vm1231, %v1227, 1326507024
        %v1242 = vsel %vm1230, %v1224, %v1241
        %v1243 = vsel %vm1229, %v1240, %v1242
        %v1244 = vshll.u32 %v1204, 8
        %v1245 = vmul.u32.u64.compose %v1244, %v1243
        %v1246 = vextract.low.u32 %v1245
        %v1247 = vextract.high.u32 %v1245
        %v1248 = vmul.u32.u64.compose %v1244, %v1239
        %v1249 = vextract.low.u32 %v1248
        %v1250 = vextract.high.u32 %v1248
        %v1251 = vmul.u32 %v1244, %v1235
        %v1252 = vadd.s32 %v1247, %v1249
        %vm1253 = vc.u32 %v1247, %v1249
        %v1254 = vadd.s32 %v1250, 1
        %v1255 = vsel %vm1253, %v1254, %v1250
        %v1256 = vadd.s32 %v1251, %v1255
        %v1257 = vadd.s32 %v1256, 536870912
        %v1258 = vshrl.u32 %v1257, 30
        %v1259 = vshll.u32 %v1258, 30
        %v1260 = vsub.s32 %v1256, %v1259
        %vm1261 = vcmp.lt.s32.totalorder %v1260, 0
        %v1262 = vsub.s32 0, %v1260
        %v1263 = vsel %vm1261, %v1262, %v1260
        %v1264 = vclz %v1263
        %v1265 = vsub.s32 %v1264, 2
        %vm1266 = vcmp.gt.s32.totalorder 0, %v1265
        %v1267 = vsel %vm1266, 0, %v1265
        %v1268 = vsub.s32 32, %v1267
        %v1269 = vshll.u32 %v1260, %v1267
        %v1270 = vshrl.u32 %v1252, %v1268
        %v1271 = vor.u32 %v1269, %v1270
        %v1272 = vsub.s32 4294967266, %v1267
        %v1273 = vadd.s32 %v1272, 127
        %v1274 = vshll.u32 %v1273, 23
        %v1275 = vor.u32 4788187, %v1274
        %v1276 = vand.u32 2147483647, %v1275
        %v1278 = vcvt.s32.f32 %v1271
        %v1279 = vmul.f32 %v1278, %v1276
        %v1280 = vxor.u32 %v1279, 2147483648
        %v1281 = vsel %vm1198, %v1280, %v1279
        %v1282 = vsub.s32 4, %v1258
        %v1283 = vsel %vm1198, %v1282, %v1258
        %v1284 = vsel %vm1197, %v1195, %v1281
        %v1285 = vsel %vm1197, 0, %v1283
        %v1286 = vcosq.f32.pop %v1284
        %v1287 = vsinq.f32.pop %v1284
        %vm1288 = vweird.f32 %v1195
        %v1289 = vadd.s32 %v1285, 3
        %v1290 = vand.u32 %v1289, 3
        %vm1291 = vcmp.lt.s32.totalorder %v1290, 2
        %vm1292 = vcmp.eq.s32.totalorder %v1290, 0
        %v1293 = vxor.u32 %v1287, 2147483648
        %v1294 = vsel %vm1292, %v1286, %v1293
        %vm1295 = vcmp.eq.s32.totalorder %v1290, 2
        %v1296 = vxor.u32 %v1286, 2147483648
        %v1297 = vsel %vm1295, %v1296, %v1287
        %v1298 = vsel %vm1291, %v1294, %v1297
        %v1299 = vsel %vm1288, nan, %v1298
        %v1300 = vmul.f32 %v1299, %v1299
        %1302 = vset.pattern.permute.xlu0 0
        %1303 = vperm.xlu0 %1302, %v1141
        %v1304 = vpop.permute.xlu0 %1303
        %v1306 = vmul.f32 %v1304, %v1300
        %v1307 = vadd.f32 %v1182, %v1306
        %v1308 = vmul.f32 %v1193, %v1189
        %v1309 = vand.u32 2147483647, %v1308
        %vm1310 = vcmp.le.f32.partialorder %v1309, 0.7853982
        %vm1311 = vcmp.lt.s32.totalorder %v1308, 0
        %v1312 = vand.u32 %v1308, 2139095040
        %v1313 = vshrl.u32 %v1312, 23
        %v1314 = vsub.s32 %v1313, 127
        %v1315 = vand.u32 2147483647, %v1308
        %v1316 = vand.u32 %v1315, 8388607
        %v1317 = vor.u32 %v1316, 8388608
        %v1318 = vsub.s32 0, %v1317
        %v1319 = vadd.s32 %v1314, 1
        %vm1320 = vcmp.gt.s32.totalorder %v1319, 0
        %v1321 = vsel %vm1320, %v1319, 0
        %v1322 = vshrl.u32 %v1321, 5
        %v1323 = vand.u32 %v1321, 31
        %v1324 = vsub.s32 32, %v1323
        %v1325 = vshrl.u32 683565275, %v1324
        %v1326 = vshll.u32 683565275, %v1323
        %v1327 = vshrl.u32 2475754826, %v1324
        %v1328 = vor.u32 %v1326, %v1327
        %v1329 = vshll.u32 2475754826, %v1323
        %v1330 = vshrl.u32 2131351028, %v1324
        %v1331 = vor.u32 %v1329, %v1330
        %v1332 = vshll.u32 2131351028, %v1323
        %v1333 = vshrl.u32 2102212464, %v1324
        %v1334 = vor.u32 %v1332, %v1333
        %v1335 = vshll.u32 2102212464, %v1323
        %v1336 = vshrl.u32 920167782, %v1324
        %v1337 = vor.u32 %v1335, %v1336
        %v1338 = vshll.u32 920167782, %v1323
        %v1339 = vshrl.u32 1326507024, %v1324
        %v1340 = vor.u32 %v1338, %v1339
        %vm1341 = vcmp.lt.s32.totalorder %v1322, 1
        %vm1342 = vcmp.lt.s32.totalorder %v1322, 2
        %vm1343 = vcmp.lt.s32.totalorder %v1322, 3
        %vm1344 = vcmp.lt.s32.totalorder %v1322, 4
        %v1345 = vsel %vm1341, %v1325, %v1328
        %v1346 = vsel %vm1344, %v1334, 2102212464
        %v1347 = vsel %vm1343, %v1331, %v1346
        %v1348 = vsel %vm1342, %v1345, %v1347
        %v1349 = vsel %vm1341, %v1328, %v1331
        %v1350 = vsel %vm1344, %v1337, 920167782
        %v1351 = vsel %vm1343, %v1334, %v1350
        %v1352 = vsel %vm1342, %v1349, %v1351
        %v1353 = vsel %vm1341, %v1331, %v1334
        %v1354 = vsel %vm1344, %v1340, 1326507024
        %v1355 = vsel %vm1343, %v1337, %v1354
        %v1356 = vsel %vm1342, %v1353, %v1355
        %v1357 = vshll.u32 %v1317, 8
        %v1358 = vmul.u32.u64.compose %v1357, %v1356
        %v1359 = vextract.low.u32 %v1358
        %v1360 = vextract.high.u32 %v1358
        %v1361 = vmul.u32.u64.compose %v1357, %v1352
        %v1362 = vextract.low.u32 %v1361
        %v1363 = vextract.high.u32 %v1361
        %v1364 = vmul.u32 %v1357, %v1348
        %v1365 = vadd.s32 %v1360, %v1362
        %vm1366 = vc.u32 %v1360, %v1362
        %v1367 = vadd.s32 %v1363, 1
        %v1368 = vsel %vm1366, %v1367, %v1363
        %v1369 = vadd.s32 %v1364, %v1368
        %v1370 = vadd.s32 %v1369, 536870912
        %v1371 = vshrl.u32 %v1370, 30
        %v1372 = vshll.u32 %v1371, 30
        %v1373 = vsub.s32 %v1369, %v1372
        %vm1374 = vcmp.lt.s32.totalorder %v1373, 0
        %v1375 = vsub.s32 0, %v1373
        %v1376 = vsel %vm1374, %v1375, %v1373
        %v1377 = vclz %v1376
        %v1378 = vsub.s32 %v1377, 2
        %vm1379 = vcmp.gt.s32.totalorder 0, %v1378
        %v1380 = vsel %vm1379, 0, %v1378
        %v1381 = vsub.s32 32, %v1380
        %v1382 = vshll.u32 %v1373, %v1380
        %v1383 = vshrl.u32 %v1365, %v1381
        %v1384 = vor.u32 %v1382, %v1383
        %v1385 = vsub.s32 4294967266, %v1380
        %v1386 = vadd.s32 %v1385, 127
        %v1387 = vshll.u32 %v1386, 23
        %v1388 = vor.u32 4788187, %v1387
        %v1389 = vand.u32 2147483647, %v1388
        %v1391 = vcvt.s32.f32 %v1384
        %v1392 = vmul.f32 %v1391, %v1389
        %v1393 = vxor.u32 %v1392, 2147483648
        %v1394 = vsel %vm1311, %v1393, %v1392
        %v1395 = vsub.s32 4, %v1371
        %v1396 = vsel %vm1311, %v1395, %v1371
        %v1397 = vsel %vm1310, %v1308, %v1394
        %v1398 = vsel %vm1310, 0, %v1396
        %v1399 = vcosq.f32.pop %v1397
        %v1400 = vsinq.f32.pop %v1397
        %vm1401 = vweird.f32 %v1308
        %v1402 = vadd.s32 %v1398, 3
        %v1403 = vand.u32 %v1402, 3
        %vm1404 = vcmp.lt.s32.totalorder %v1403, 2
        %vm1405 = vcmp.eq.s32.totalorder %v1403, 0
        %v1406 = vxor.u32 %v1400, 2147483648
        %v1407 = vsel %vm1405, %v1399, %v1406
        %vm1408 = vcmp.eq.s32.totalorder %v1403, 2
        %v1409 = vxor.u32 %v1399, 2147483648
        %v1410 = vsel %vm1408, %v1409, %v1400
        %v1411 = vsel %vm1404, %v1407, %v1410
        %v1412 = vsel %vm1401, nan, %v1411
        %v1413 = vmul.f32 %v1412, %v1412
        %v1414 = vmul.f32 %v1304, %v1413
        %v1415 = vadd.f32 %v1189, %v1414
        %1416 = vrot.lane.b32.xlu0 %v1415, 3
        %v1417 = vpop.permute.xlu0 %1416
        %1419 = vset.pattern.permute.xlu0 0
        %1420 = vperm.xlu0 %1419, %v1307
        %v1421 = vpop.permute.xlu0 %1420
        %v1423 = vsel %vm284, %v1421, %v1417
        %v1424 = vmul.f32 %v1423, 0.0020289666
        %1425 = vrot.lane.b32.xlu0 %v1307, 2
        %v1426 = vpop.permute.xlu0 %1425
        %v1427 = vsel %vm294, %v1421, %v1426
        %v1428 = vmul.f32 %v1427, 0.009389464
        %v1429 = vadd.f32 %v1424, %v1428
        %1430 = vrot.lane.b32.xlu0 %v1415, 2
        %v1431 = vpop.permute.xlu0 %1430
        %v1432 = vsel %vm294, %v1421, %v1431
        %v1433 = vmul.f32 %v1432, -0.025543464
        %v1434 = vadd.f32 %v1429, %v1433
        %1435 = vrot.lane.b32.xlu0 %v1307, 1
        %v1436 = vpop.permute.xlu0 %1435
        %v1437 = vsel %vm301, %v1421, %v1436
        %v1438 = vmul.f32 %v1437, -0.057657376
        %v1439 = vadd.f32 %v1434, %v1438
        %1440 = vrot.lane.b32.xlu0 %v1415, 1
        %v1441 = vpop.permute.xlu0 %1440
        %v1442 = vsel %vm301, %v1421, %v1441
        %v1443 = vmul.f32 %v1442, 0.12857261
        %v1444 = vadd.f32 %v1439, %v1443
        %v1445 = vmul.f32 %v1307, 0.4432098
        %v1446 = vadd.f32 %v1444, %v1445
        %v1447 = vmul.f32 %v1415, 0.4432098
        %v1448 = vadd.f32 %v1446, %v1447
        %1449 = vrot.lane.b32.xlu0 %v1307, 127
        %v1450 = vpop.permute.xlu0 %1449
        %1452 = vset.pattern.permute.xlu0 127
        %1453 = vperm.xlu0 %1452, %v1415
        %v1454 = vpop.permute.xlu0 %1453
        %v1456 = vsel %vm312, %v1454, %v1450
        %v1457 = vmul.f32 %v1456, 0.12857261
        %v1458 = vadd.f32 %v1448, %v1457
        %1459 = vrot.lane.b32.xlu0 %v1415, 127
        %v1460 = vpop.permute.xlu0 %1459
        %v1461 = vsel %vm312, %v1454, %v1460
        %v1462 = vmul.f32 %v1461, -0.057657376
        %v1463 = vadd.f32 %v1458, %v1462
        %1464 = vrot.lane.b32.xlu0 %v1307, 126
        %v1465 = vpop.permute.xlu0 %1464
        %v1466 = vsel %vm324, %v1454, %v1465
        %v1467 = vmul.f32 %v1466, -0.025543464
        %v1468 = vadd.f32 %v1463, %v1467
        %1469 = vrot.lane.b32.xlu0 %v1415, 126
        %v1470 = vpop.permute.xlu0 %1469
        %v1471 = vsel %vm324, %v1454, %v1470
        %v1472 = vmul.f32 %v1471, 0.009389464
        %v1473 = vadd.f32 %v1468, %v1472
        %1474 = vrot.lane.b32.xlu0 %v1307, 125
        %v1475 = vpop.permute.xlu0 %1474
        %v1476 = vsel %vm332, %v1454, %v1475
        %v1477 = vmul.f32 %v1476, 0.0020289666
        %v1478 = vadd.f32 %v1473, %v1477
        %s1479 = scalar_lea.vmem %s1, 12
        %v1480 = vld [vmem:[%s1479] sm:$0xf]
        %v1481 = vld [vmem:[%s1479 + $0x4] sm:$0xf]
        %v1482 = vld [vmem:[%s1479 + $0x8] sm:$0xf]
        %s1483 = scalar_lea.vmem %s2, 8
        %v1484 = vld [vmem:[%s1483] sm:$0xff]
        %v1485 = vpack.c.bf16 %v1478, %v1478
        %v1489 = vunpack.c.l.b16 %v1480
        %v1490 = vunpack.c.l.b16 %v1481
        %v1491 = vunpack.c.l.b16 %v1482
        %v1492 = vpack.c.b16 %v1490, %v1489
        %v1493 = vpack.c.b16 %v1491, %v1491
        %v1495 = vsel %vm638, %v1492, 0
        %v1498 = vsel %vm638, %v1493, 0
        %v1501 = vsel %vm645, %v1485, 0
        %1503 = vmatprep.subr.bf16.mxu0 0
        %1504 = vmatpush1.bf16.msra.mxu0 0
        %1505 = vmatprep.subr.bf16.mxu0 0
        %1506 = vmatpush1.bf16.msra.mxu0 0
        %1507 = vmatprep.subr.bf16.mxu0 0
        %1508 = vmatpush1.bf16.msra.mxu0 0
        %1509 = vmatprep.subr.bf16.mxu0 0
        %1510 = vmatpush1.bf16.msra.mxu0 0
        %1511 = vmatprep.subr.bf16.mxu0 0
        %1512 = vmatpush1.bf16.msra.mxu0 0
        %1513 = vmatprep.subr.bf16.mxu0 0
        %1514 = vmatpush1.bf16.msra.mxu0 0
        %1515 = vmatprep.subr.bf16.mxu0 0
        %1516 = vmatpush1.bf16.msra.mxu0 0
        %1517 = vmatprep.subr.bf16.mxu0 0
        %1518 = vmatpush1.bf16.msra.mxu0 %v1501
        %1519 = vmatprep.subr.bf16.mxu0 0
        %1520 = vmatpush2.bf16.msra.mxu0 0
        %1521 = vmatprep.subr.bf16.mxu0 0
        %1522 = vmatpush2.bf16.msra.mxu0 0
        %1523 = vmatprep.subr.bf16.mxu0 0
        %1524 = vmatpush2.bf16.msra.mxu0 0
        %1525 = vmatprep.subr.bf16.mxu0 0
        %1526 = vmatpush2.bf16.msra.mxu0 0
        %1527 = vmatprep.subr.bf16.mxu0 0
        %1528 = vmatpush2.bf16.msra.mxu0 0
        %1529 = vmatprep.subr.bf16.mxu0 0
        %1530 = vmatpush2.bf16.msra.mxu0 0
        %1531 = vmatprep.subr.bf16.mxu0 0
        %1532 = vmatpush2.bf16.msra.mxu0 0
        %1533 = vmatprep.subr.bf16.mxu0 0
        %1534 = vmatpush2.bf16.msra.mxu0 0
        %1535 = vmatprep.mubr.bf16.mxu0 0
        %1536 = vmatmul.mubr.bf16.gmra.mxu0 %v1495
        %v1537 = vpop.f32.mrf.mxu0
        %v1538 = vadd.f32 0.0, %v1537
        %v1539 = vpop.f32.mrf.mxu0
        %v1540 = vpop.f32.mrf.mxu0
        %v1541 = vadd.f32 0.0, %v1540
        %v1542 = vpop.f32.mrf.mxu0
        %1543 = vmatprep.mubr.bf16.mxu0 0
        %1544 = vmatmul.mubr.bf16.gmra.mxu0 %v1498
        %v1545 = vpop.f32.mrf.mxu0
        %v1546 = vadd.f32 0.0, %v1545
        %v1547 = vpop.f32.mrf.mxu0
        %v1548 = vpop.f32.mrf.mxu0
        %v1549 = vpop.f32.mrf.mxu0
        %1550 = vdwg.mxu0
        %1551 = vrot.lane.b32.xlu0 %v1538, 3
        %v1552 = vpop.permute.xlu0 %1551
        %v1553 = vsel %vm284, 0.0, %v1552
        %v1554 = vadd.f32 %v1553, %v1541
        %1555 = vrot.lane.b32.xlu0 %v1546, 125
        %v1556 = vpop.permute.xlu0 %1555
        %v1557 = vsel %vm332, 0.0, %v1556
        %v1558 = vadd.f32 %v1554, %v1557
        %1560 = vset.pattern.permute.xlu0 0
        %1561 = vperm.xlu0 %1560, %v1484
        %v1562 = vpop.permute.xlu0 %1561
        %v1564 = vadd.f32 %v1558, %v1562
        %s1565 = scalar_lea.vmem %s6, 8
        %v1566 = vld [vmem:[%s1565] sm:$0xff]
        %v1567 = vadd.f32 %v1566, 1e-09
        %v1568 = vrcp.pop %v1567
        %v1569 = vmul.f32 1.0, %v1568
        %1570 = vrot.lane.b32.xlu0 %v1564, 3
        %v1571 = vpop.permute.xlu0 %1570
        %1573 = vset.pattern.permute.xlu0 0
        %1574 = vperm.xlu0 %1573, %v1564
        %v1575 = vpop.permute.xlu0 %1574
        %v1577 = vsel %vm284, %v1575, %v1571
        %v1578 = vmul.f32 %v1577, 0.004057933
        %1579 = vrot.lane.b32.xlu0 %v1564, 2
        %v1580 = vpop.permute.xlu0 %1579
        %v1581 = vsel %vm294, %v1575, %v1580
        %v1582 = vmul.f32 %v1581, -0.05108693
        %v1583 = vadd.f32 %v1578, %v1582
        %v1584 = vmul.f32 %v1581, 0.018778928
        %1585 = vrot.lane.b32.xlu0 %v1564, 1
        %v1586 = vpop.permute.xlu0 %1585
        %v1587 = vsel %vm301, %v1575, %v1586
        %v1588 = vmul.f32 %v1587, 0.25714523
        %v1589 = vadd.f32 %v1583, %v1588
        %v1590 = vmul.f32 %v1587, -0.11531475
        %v1591 = vadd.f32 %v1584, %v1590
        %v1592 = vmul.f32 %v1564, 0.8864196
        %v1593 = vadd.f32 %v1589, %v1592
        %v1594 = vadd.f32 %v1591, %v1592
        %1595 = vrot.lane.b32.xlu0 %v1564, 127
        %v1596 = vpop.permute.xlu0 %1595
        %1597 = vset.pattern.permute.xlu0 127
        %1598 = vperm.xlu0 %1597, %v1564
        %v1599 = vpop.permute.xlu0 %1598
        %v1601 = vsel %vm312, %v1599, %v1596
        %v1602 = vmul.f32 %v1601, -0.11531475
        %v1603 = vadd.f32 %v1593, %v1602
        %v1604 = vmul.f32 %v1601, 0.25714523
        %v1605 = vadd.f32 %v1594, %v1604
        %1606 = vrot.lane.b32.xlu0 %v1564, 126
        %v1607 = vpop.permute.xlu0 %1606
        %v1608 = vsel %vm324, %v1599, %v1607
        %v1609 = vmul.f32 %v1608, 0.018778928
        %v1610 = vadd.f32 %v1603, %v1609
        %v1611 = vmul.f32 %v1608, -0.05108693
        %v1612 = vadd.f32 %v1605, %v1611
        %1613 = vrot.lane.b32.xlu0 %v1564, 125
        %v1614 = vpop.permute.xlu0 %1613
        %v1615 = vsel %vm332, %v1599, %v1614
        %v1616 = vmul.f32 %v1615, 0.004057933
        %v1617 = vadd.f32 %v1612, %v1616
        %1619 = vset.pattern.permute.xlu0 0
        %1620 = vperm.xlu0 %1619, %v1566
        %v1621 = vpop.permute.xlu0 %1620
        %v1623 = vmul.f32 %v1621, %v1610
        %v1624 = vand.u32 2147483647, %v1623
        %vm1625 = vcmp.le.f32.partialorder %v1624, 0.7853982
        %vm1626 = vcmp.lt.s32.totalorder %v1623, 0
        %v1627 = vand.u32 %v1623, 2139095040
        %v1628 = vshrl.u32 %v1627, 23
        %v1629 = vsub.s32 %v1628, 127
        %v1630 = vand.u32 2147483647, %v1623
        %v1631 = vand.u32 %v1630, 8388607
        %v1632 = vor.u32 %v1631, 8388608
        %v1633 = vsub.s32 0, %v1632
        %v1634 = vadd.s32 %v1629, 1
        %vm1635 = vcmp.gt.s32.totalorder %v1634, 0
        %v1636 = vsel %vm1635, %v1634, 0
        %v1637 = vshrl.u32 %v1636, 5
        %v1638 = vand.u32 %v1636, 31
        %v1639 = vsub.s32 32, %v1638
        %v1640 = vshrl.u32 683565275, %v1639
        %v1641 = vshll.u32 683565275, %v1638
        %v1642 = vshrl.u32 2475754826, %v1639
        %v1643 = vor.u32 %v1641, %v1642
        %v1644 = vshll.u32 2475754826, %v1638
        %v1645 = vshrl.u32 2131351028, %v1639
        %v1646 = vor.u32 %v1644, %v1645
        %v1647 = vshll.u32 2131351028, %v1638
        %v1648 = vshrl.u32 2102212464, %v1639
        %v1649 = vor.u32 %v1647, %v1648
        %v1650 = vshll.u32 2102212464, %v1638
        %v1651 = vshrl.u32 920167782, %v1639
        %v1652 = vor.u32 %v1650, %v1651
        %v1653 = vshll.u32 920167782, %v1638
        %v1654 = vshrl.u32 1326507024, %v1639
        %v1655 = vor.u32 %v1653, %v1654
        %vm1656 = vcmp.lt.s32.totalorder %v1637, 1
        %vm1657 = vcmp.lt.s32.totalorder %v1637, 2
        %vm1658 = vcmp.lt.s32.totalorder %v1637, 3
        %vm1659 = vcmp.lt.s32.totalorder %v1637, 4
        %v1660 = vsel %vm1656, %v1640, %v1643
        %v1661 = vsel %vm1659, %v1649, 2102212464
        %v1662 = vsel %vm1658, %v1646, %v1661
        %v1663 = vsel %vm1657, %v1660, %v1662
        %v1664 = vsel %vm1656, %v1643, %v1646
        %v1665 = vsel %vm1659, %v1652, 920167782
        %v1666 = vsel %vm1658, %v1649, %v1665
        %v1667 = vsel %vm1657, %v1664, %v1666
        %v1668 = vsel %vm1656, %v1646, %v1649
        %v1669 = vsel %vm1659, %v1655, 1326507024
        %v1670 = vsel %vm1658, %v1652, %v1669
        %v1671 = vsel %vm1657, %v1668, %v1670
        %v1672 = vshll.u32 %v1632, 8
        %v1673 = vmul.u32.u64.compose %v1672, %v1671
        %v1674 = vextract.low.u32 %v1673
        %v1675 = vextract.high.u32 %v1673
        %v1676 = vmul.u32.u64.compose %v1672, %v1667
        %v1677 = vextract.low.u32 %v1676
        %v1678 = vextract.high.u32 %v1676
        %v1679 = vmul.u32 %v1672, %v1663
        %v1680 = vadd.s32 %v1675, %v1677
        %vm1681 = vc.u32 %v1675, %v1677
        %v1682 = vadd.s32 %v1678, 1
        %v1683 = vsel %vm1681, %v1682, %v1678
        %v1684 = vadd.s32 %v1679, %v1683
        %v1685 = vadd.s32 %v1684, 536870912
        %v1686 = vshrl.u32 %v1685, 30
        %v1687 = vshll.u32 %v1686, 30
        %v1688 = vsub.s32 %v1684, %v1687
        %vm1689 = vcmp.lt.s32.totalorder %v1688, 0
        %v1690 = vsub.s32 0, %v1688
        %v1691 = vsel %vm1689, %v1690, %v1688
        %v1692 = vclz %v1691
        %v1693 = vsub.s32 %v1692, 2
        %vm1694 = vcmp.gt.s32.totalorder 0, %v1693
        %v1695 = vsel %vm1694, 0, %v1693
        %v1696 = vsub.s32 32, %v1695
        %v1697 = vshll.u32 %v1688, %v1695
        %v1698 = vshrl.u32 %v1680, %v1696
        %v1699 = vor.u32 %v1697, %v1698
        %v1700 = vsub.s32 4294967266, %v1695
        %v1701 = vadd.s32 %v1700, 127
        %v1702 = vshll.u32 %v1701, 23
        %v1703 = vor.u32 4788187, %v1702
        %v1704 = vand.u32 2147483647, %v1703
        %v1706 = vcvt.s32.f32 %v1699
        %v1707 = vmul.f32 %v1706, %v1704
        %v1708 = vxor.u32 %v1707, 2147483648
        %v1709 = vsel %vm1626, %v1708, %v1707
        %v1710 = vsub.s32 4, %v1686
        %v1711 = vsel %vm1626, %v1710, %v1686
        %v1712 = vsel %vm1625, %v1623, %v1709
        %v1713 = vsel %vm1625, 0, %v1711
        %v1714 = vcosq.f32.pop %v1712
        %v1715 = vsinq.f32.pop %v1712
        %vm1716 = vweird.f32 %v1623
        %v1717 = vadd.s32 %v1713, 3
        %v1718 = vand.u32 %v1717, 3
        %vm1719 = vcmp.lt.s32.totalorder %v1718, 2
        %vm1720 = vcmp.eq.s32.totalorder %v1718, 0
        %v1721 = vxor.u32 %v1715, 2147483648
        %v1722 = vsel %vm1720, %v1714, %v1721
        %vm1723 = vcmp.eq.s32.totalorder %v1718, 2
        %v1724 = vxor.u32 %v1714, 2147483648
        %v1725 = vsel %vm1723, %v1724, %v1715
        %v1726 = vsel %vm1719, %v1722, %v1725
        %v1727 = vsel %vm1716, nan, %v1726
        %v1728 = vmul.f32 %v1727, %v1727
        %1730 = vset.pattern.permute.xlu0 0
        %1731 = vperm.xlu0 %1730, %v1569
        %v1732 = vpop.permute.xlu0 %1731
        %v1734 = vmul.f32 %v1732, %v1728
        %v1735 = vadd.f32 %v1610, %v1734
        %v1736 = vmul.f32 %v1621, %v1617
        %v1737 = vand.u32 2147483647, %v1736
        %vm1738 = vcmp.le.f32.partialorder %v1737, 0.7853982
        %vm1739 = vcmp.lt.s32.totalorder %v1736, 0
        %v1740 = vand.u32 %v1736, 2139095040
        %v1741 = vshrl.u32 %v1740, 23
        %v1742 = vsub.s32 %v1741, 127
        %v1743 = vand.u32 2147483647, %v1736
        %v1744 = vand.u32 %v1743, 8388607
        %v1745 = vor.u32 %v1744, 8388608
        %v1746 = vsub.s32 0, %v1745
        %v1747 = vadd.s32 %v1742, 1
        %vm1748 = vcmp.gt.s32.totalorder %v1747, 0
        %v1749 = vsel %vm1748, %v1747, 0
        %v1750 = vshrl.u32 %v1749, 5
        %v1751 = vand.u32 %v1749, 31
        %v1752 = vsub.s32 32, %v1751
        %v1753 = vshrl.u32 683565275, %v1752
        %v1754 = vshll.u32 683565275, %v1751
        %v1755 = vshrl.u32 2475754826, %v1752
        %v1756 = vor.u32 %v1754, %v1755
        %v1757 = vshll.u32 2475754826, %v1751
        %v1758 = vshrl.u32 2131351028, %v1752
        %v1759 = vor.u32 %v1757, %v1758
        %v1760 = vshll.u32 2131351028, %v1751
        %v1761 = vshrl.u32 2102212464, %v1752
        %v1762 = vor.u32 %v1760, %v1761
        %v1763 = vshll.u32 2102212464, %v1751
        %v1764 = vshrl.u32 920167782, %v1752
        %v1765 = vor.u32 %v1763, %v1764
        %v1766 = vshll.u32 920167782, %v1751
        %v1767 = vshrl.u32 1326507024, %v1752
        %v1768 = vor.u32 %v1766, %v1767
        %vm1769 = vcmp.lt.s32.totalorder %v1750, 1
        %vm1770 = vcmp.lt.s32.totalorder %v1750, 2
        %vm1771 = vcmp.lt.s32.totalorder %v1750, 3
        %vm1772 = vcmp.lt.s32.totalorder %v1750, 4
        %v1773 = vsel %vm1769, %v1753, %v1756
        %v1774 = vsel %vm1772, %v1762, 2102212464
        %v1775 = vsel %vm1771, %v1759, %v1774
        %v1776 = vsel %vm1770, %v1773, %v1775
        %v1777 = vsel %vm1769, %v1756, %v1759
        %v1778 = vsel %vm1772, %v1765, 920167782
        %v1779 = vsel %vm1771, %v1762, %v1778
        %v1780 = vsel %vm1770, %v1777, %v1779
        %v1781 = vsel %vm1769, %v1759, %v1762
        %v1782 = vsel %vm1772, %v1768, 1326507024
        %v1783 = vsel %vm1771, %v1765, %v1782
        %v1784 = vsel %vm1770, %v1781, %v1783
        %v1785 = vshll.u32 %v1745, 8
        %v1786 = vmul.u32.u64.compose %v1785, %v1784
        %v1787 = vextract.low.u32 %v1786
        %v1788 = vextract.high.u32 %v1786
        %v1789 = vmul.u32.u64.compose %v1785, %v1780
        %v1790 = vextract.low.u32 %v1789
        %v1791 = vextract.high.u32 %v1789
        %v1792 = vmul.u32 %v1785, %v1776
        %v1793 = vadd.s32 %v1788, %v1790
        %vm1794 = vc.u32 %v1788, %v1790
        %v1795 = vadd.s32 %v1791, 1
        %v1796 = vsel %vm1794, %v1795, %v1791
        %v1797 = vadd.s32 %v1792, %v1796
        %v1798 = vadd.s32 %v1797, 536870912
        %v1799 = vshrl.u32 %v1798, 30
        %v1800 = vshll.u32 %v1799, 30
        %v1801 = vsub.s32 %v1797, %v1800
        %vm1802 = vcmp.lt.s32.totalorder %v1801, 0
        %v1803 = vsub.s32 0, %v1801
        %v1804 = vsel %vm1802, %v1803, %v1801
        %v1805 = vclz %v1804
        %v1806 = vsub.s32 %v1805, 2
        %vm1807 = vcmp.gt.s32.totalorder 0, %v1806
        %v1808 = vsel %vm1807, 0, %v1806
        %v1809 = vsub.s32 32, %v1808
        %v1810 = vshll.u32 %v1801, %v1808
        %v1811 = vshrl.u32 %v1793, %v1809
        %v1812 = vor.u32 %v1810, %v1811
        %v1813 = vsub.s32 4294967266, %v1808
        %v1814 = vadd.s32 %v1813, 127
        %v1815 = vshll.u32 %v1814, 23
        %v1816 = vor.u32 4788187, %v1815
        %v1817 = vand.u32 2147483647, %v1816
        %v1819 = vcvt.s32.f32 %v1812
        %v1820 = vmul.f32 %v1819, %v1817
        %v1821 = vxor.u32 %v1820, 2147483648
        %v1822 = vsel %vm1739, %v1821, %v1820
        %v1823 = vsub.s32 4, %v1799
        %v1824 = vsel %vm1739, %v1823, %v1799
        %v1825 = vsel %vm1738, %v1736, %v1822
        %v1826 = vsel %vm1738, 0, %v1824
        %v1827 = vcosq.f32.pop %v1825
        %v1828 = vsinq.f32.pop %v1825
        %vm1829 = vweird.f32 %v1736
        %v1830 = vadd.s32 %v1826, 3
        %v1831 = vand.u32 %v1830, 3
        %vm1832 = vcmp.lt.s32.totalorder %v1831, 2
        %vm1833 = vcmp.eq.s32.totalorder %v1831, 0
        %v1834 = vxor.u32 %v1828, 2147483648
        %v1835 = vsel %vm1833, %v1827, %v1834
        %vm1836 = vcmp.eq.s32.totalorder %v1831, 2
        %v1837 = vxor.u32 %v1827, 2147483648
        %v1838 = vsel %vm1836, %v1837, %v1828
        %v1839 = vsel %vm1832, %v1835, %v1838
        %v1840 = vsel %vm1829, nan, %v1839
        %v1841 = vmul.f32 %v1840, %v1840
        %v1842 = vmul.f32 %v1732, %v1841
        %v1843 = vadd.f32 %v1617, %v1842
        %1844 = vrot.lane.b32.xlu0 %v1843, 3
        %v1845 = vpop.permute.xlu0 %1844
        %1847 = vset.pattern.permute.xlu0 0
        %1848 = vperm.xlu0 %1847, %v1735
        %v1849 = vpop.permute.xlu0 %1848
        %v1851 = vsel %vm284, %v1849, %v1845
        %v1852 = vmul.f32 %v1851, 0.0020289666
        %1853 = vrot.lane.b32.xlu0 %v1735, 2
        %v1854 = vpop.permute.xlu0 %1853
        %v1855 = vsel %vm294, %v1849, %v1854
        %v1856 = vmul.f32 %v1855, 0.009389464
        %v1857 = vadd.f32 %v1852, %v1856
        %1858 = vrot.lane.b32.xlu0 %v1843, 2
        %v1859 = vpop.permute.xlu0 %1858
        %v1860 = vsel %vm294, %v1849, %v1859
        %v1861 = vmul.f32 %v1860, -0.025543464
        %v1862 = vadd.f32 %v1857, %v1861
        %1863 = vrot.lane.b32.xlu0 %v1735, 1
        %v1864 = vpop.permute.xlu0 %1863
        %v1865 = vsel %vm301, %v1849, %v1864
        %v1866 = vmul.f32 %v1865, -0.057657376
        %v1867 = vadd.f32 %v1862, %v1866
        %1868 = vrot.lane.b32.xlu0 %v1843, 1
        %v1869 = vpop.permute.xlu0 %1868
        %v1870 = vsel %vm301, %v1849, %v1869
        %v1871 = vmul.f32 %v1870, 0.12857261
        %v1872 = vadd.f32 %v1867, %v1871
        %v1873 = vmul.f32 %v1735, 0.4432098
        %v1874 = vadd.f32 %v1872, %v1873
        %v1875 = vmul.f32 %v1843, 0.4432098
        %v1876 = vadd.f32 %v1874, %v1875
        %1877 = vrot.lane.b32.xlu0 %v1735, 127
        %v1878 = vpop.permute.xlu0 %1877
        %1880 = vset.pattern.permute.xlu0 127
        %1881 = vperm.xlu0 %1880, %v1843
        %v1882 = vpop.permute.xlu0 %1881
        %v1884 = vsel %vm312, %v1882, %v1878
        %v1885 = vmul.f32 %v1884, 0.12857261
        %v1886 = vadd.f32 %v1876, %v1885
        %1887 = vrot.lane.b32.xlu0 %v1843, 127
        %v1888 = vpop.permute.xlu0 %1887
        %v1889 = vsel %vm312, %v1882, %v1888
        %v1890 = vmul.f32 %v1889, -0.057657376
        %v1891 = vadd.f32 %v1886, %v1890
        %1892 = vrot.lane.b32.xlu0 %v1735, 126
        %v1893 = vpop.permute.xlu0 %1892
        %v1894 = vsel %vm324, %v1882, %v1893
        %v1895 = vmul.f32 %v1894, -0.025543464
        %v1896 = vadd.f32 %v1891, %v1895
        %1897 = vrot.lane.b32.xlu0 %v1843, 126
        %v1898 = vpop.permute.xlu0 %1897
        %v1899 = vsel %vm324, %v1882, %v1898
        %v1900 = vmul.f32 %v1899, 0.009389464
        %v1901 = vadd.f32 %v1896, %v1900
        %1902 = vrot.lane.b32.xlu0 %v1735, 125
        %v1903 = vpop.permute.xlu0 %1902
        %v1904 = vsel %vm332, %v1882, %v1903
        %v1905 = vmul.f32 %v1904, 0.0020289666
        %v1906 = vadd.f32 %v1901, %v1905
        %s1907 = scalar_lea.vmem %s3, 12
        %v1908 = vld [vmem:[%s1907] sm:$0xf]
        %v1909 = vld [vmem:[%s1907 + $0x4] sm:$0xf]
        %v1910 = vld [vmem:[%s1907 + $0x8] sm:$0xf]
        %s1911 = scalar_lea.vmem %s4, 8
        %v1912 = vld [vmem:[%s1911] sm:$0xff]
        %v1913 = vpack.c.bf16 %v1906, %v1906
        %v1917 = vunpack.c.l.b16 %v1908
        %v1918 = vunpack.c.l.b16 %v1909
        %v1919 = vunpack.c.l.b16 %v1910
        %v1920 = vpack.c.b16 %v1918, %v1917
        %v1921 = vpack.c.b16 %v1919, %v1919
        %v1923 = vsel %vm638, %v1920, 0
        %v1926 = vsel %vm638, %v1921, 0
        %v1929 = vsel %vm645, %v1913, 0
        %1931 = vmatprep.subr.bf16.mxu0 0
        %1932 = vmatpush1.bf16.msra.mxu0 0
        %1933 = vmatprep.subr.bf16.mxu0 0
        %1934 = vmatpush1.bf16.msra.mxu0 0
        %1935 = vmatprep.subr.bf16.mxu0 0
        %1936 = vmatpush1.bf16.msra.mxu0 0
        %1937 = vmatprep.subr.bf16.mxu0 0
        %1938 = vmatpush1.bf16.msra.mxu0 0
        %1939 = vmatprep.subr.bf16.mxu0 0
        %1940 = vmatpush1.bf16.msra.mxu0 0
        %1941 = vmatprep.subr.bf16.mxu0 0
        %1942 = vmatpush1.bf16.msra.mxu0 0
        %1943 = vmatprep.subr.bf16.mxu0 0
        %1944 = vmatpush1.bf16.msra.mxu0 0
        %1945 = vmatprep.subr.bf16.mxu0 0
        %1946 = vmatpush1.bf16.msra.mxu0 %v1929
        %1947 = vmatprep.subr.bf16.mxu0 0
        %1948 = vmatpush2.bf16.msra.mxu0 0
        %1949 = vmatprep.subr.bf16.mxu0 0
        %1950 = vmatpush2.bf16.msra.mxu0 0
        %1951 = vmatprep.subr.bf16.mxu0 0
        %1952 = vmatpush2.bf16.msra.mxu0 0
        %1953 = vmatprep.subr.bf16.mxu0 0
        %1954 = vmatpush2.bf16.msra.mxu0 0
        %1955 = vmatprep.subr.bf16.mxu0 0
        %1956 = vmatpush2.bf16.msra.mxu0 0
        %1957 = vmatprep.subr.bf16.mxu0 0
        %1958 = vmatpush2.bf16.msra.mxu0 0
        %1959 = vmatprep.subr.bf16.mxu0 0
        %1960 = vmatpush2.bf16.msra.mxu0 0
        %1961 = vmatprep.subr.bf16.mxu0 0
        %1962 = vmatpush2.bf16.msra.mxu0 0
        %1963 = vmatprep.mubr.bf16.mxu0 0
        %1964 = vmatmul.mubr.bf16.gmra.mxu0 %v1923
        %v1965 = vpop.f32.mrf.mxu0
        %v1966 = vadd.f32 0.0, %v1965
        %v1967 = vpop.f32.mrf.mxu0
        %v1968 = vpop.f32.mrf.mxu0
        %v1969 = vadd.f32 0.0, %v1968
        %v1970 = vpop.f32.mrf.mxu0
        %1971 = vmatprep.mubr.bf16.mxu0 0
        %1972 = vmatmul.mubr.bf16.gmra.mxu0 %v1926
        %v1973 = vpop.f32.mrf.mxu0
        %v1974 = vadd.f32 0.0, %v1973
        %v1975 = vpop.f32.mrf.mxu0
        %v1976 = vpop.f32.mrf.mxu0
        %v1977 = vpop.f32.mrf.mxu0
        %1978 = vdwg.mxu0
        %1979 = vrot.lane.b32.xlu0 %v1966, 1
        %v1980 = vpop.permute.xlu0 %1979
        %v1981 = vsel %vm301, 0.0, %v1980
        %v1982 = vadd.f32 %v1981, %v1969
        %1983 = vrot.lane.b32.xlu0 %v1974, 127
        %v1984 = vpop.permute.xlu0 %1983
        %v1985 = vsel %vm312, 0.0, %v1984
        %v1986 = vadd.f32 %v1982, %v1985
        %1988 = vset.pattern.permute.xlu0 0
        %1989 = vperm.xlu0 %1988, %v1912
        %v1990 = vpop.permute.xlu0 %1989
        %v1992 = vadd.f32 %v1986, %v1990
        %v1993 = vadd.f32 %v1992, %v1136
        %s1994 = scalar_lea.vmem %s5, 16
        %v1995 = vld [vmem:[%s1994] sm:$0xff]
        %v1996 = vadd.f32 %v1995, 1e-09
        %v1997 = vrcp.pop %v1996
        %v1998 = vmul.f32 1.0, %v1997
        %1999 = vrot.lane.b32.xlu0 %v1993, 3
        %v2000 = vpop.permute.xlu0 %1999
        %2002 = vset.pattern.permute.xlu0 0
        %2003 = vperm.xlu0 %2002, %v1993
        %v2004 = vpop.permute.xlu0 %2003
        %v2006 = vsel %vm284, %v2004, %v2000
        %v2007 = vmul.f32 %v2006, 0.004057933
        %2008 = vrot.lane.b32.xlu0 %v1993, 2
        %v2009 = vpop.permute.xlu0 %2008
        %v2010 = vsel %vm294, %v2004, %v2009
        %v2011 = vmul.f32 %v2010, -0.05108693
        %v2012 = vadd.f32 %v2007, %v2011
        %v2013 = vmul.f32 %v2010, 0.018778928
        %2014 = vrot.lane.b32.xlu0 %v1993, 1
        %v2015 = vpop.permute.xlu0 %2014
        %v2016 = vsel %vm301, %v2004, %v2015
        %v2017 = vmul.f32 %v2016, 0.25714523
        %v2018 = vadd.f32 %v2012, %v2017
        %v2019 = vmul.f32 %v2016, -0.11531475
        %v2020 = vadd.f32 %v2013, %v2019
        %v2021 = vmul.f32 %v1993, 0.8864196
        %v2022 = vadd.f32 %v2018, %v2021
        %v2023 = vadd.f32 %v2020, %v2021
        %2024 = vrot.lane.b32.xlu0 %v1993, 127
        %v2025 = vpop.permute.xlu0 %2024
        %2026 = vset.pattern.permute.xlu0 127
        %2027 = vperm.xlu0 %2026, %v1993
        %v2028 = vpop.permute.xlu0 %2027
        %v2030 = vsel %vm312, %v2028, %v2025
        %v2031 = vmul.f32 %v2030, -0.11531475
        %v2032 = vadd.f32 %v2022, %v2031
        %v2033 = vmul.f32 %v2030, 0.25714523
        %v2034 = vadd.f32 %v2023, %v2033
        %2035 = vrot.lane.b32.xlu0 %v1993, 126
        %v2036 = vpop.permute.xlu0 %2035
        %v2037 = vsel %vm324, %v2028, %v2036
        %v2038 = vmul.f32 %v2037, 0.018778928
        %v2039 = vadd.f32 %v2032, %v2038
        %v2040 = vmul.f32 %v2037, -0.05108693
        %v2041 = vadd.f32 %v2034, %v2040
        %2042 = vrot.lane.b32.xlu0 %v1993, 125
        %v2043 = vpop.permute.xlu0 %2042
        %v2044 = vsel %vm332, %v2028, %v2043
        %v2045 = vmul.f32 %v2044, 0.004057933
        %v2046 = vadd.f32 %v2041, %v2045
        %2048 = vset.pattern.permute.xlu0 0
        %2049 = vperm.xlu0 %2048, %v1995
        %v2050 = vpop.permute.xlu0 %2049
        %v2052 = vmul.f32 %v2050, %v2039
        %v2053 = vand.u32 2147483647, %v2052
        %vm2054 = vcmp.le.f32.partialorder %v2053, 0.7853982
        %vm2055 = vcmp.lt.s32.totalorder %v2052, 0
        %v2056 = vand.u32 %v2052, 2139095040
        %v2057 = vshrl.u32 %v2056, 23
        %v2058 = vsub.s32 %v2057, 127
        %v2059 = vand.u32 2147483647, %v2052
        %v2060 = vand.u32 %v2059, 8388607
        %v2061 = vor.u32 %v2060, 8388608
        %v2062 = vsub.s32 0, %v2061
        %v2063 = vadd.s32 %v2058, 1
        %vm2064 = vcmp.gt.s32.totalorder %v2063, 0
        %v2065 = vsel %vm2064, %v2063, 0
        %v2066 = vshrl.u32 %v2065, 5
        %v2067 = vand.u32 %v2065, 31
        %v2068 = vsub.s32 32, %v2067
        %v2069 = vshrl.u32 683565275, %v2068
        %v2070 = vshll.u32 683565275, %v2067
        %v2071 = vshrl.u32 2475754826, %v2068
        %v2072 = vor.u32 %v2070, %v2071
        %v2073 = vshll.u32 2475754826, %v2067
        %v2074 = vshrl.u32 2131351028, %v2068
        %v2075 = vor.u32 %v2073, %v2074
        %v2076 = vshll.u32 2131351028, %v2067
        %v2077 = vshrl.u32 2102212464, %v2068
        %v2078 = vor.u32 %v2076, %v2077
        %v2079 = vshll.u32 2102212464, %v2067
        %v2080 = vshrl.u32 920167782, %v2068
        %v2081 = vor.u32 %v2079, %v2080
        %v2082 = vshll.u32 920167782, %v2067
        %v2083 = vshrl.u32 1326507024, %v2068
        %v2084 = vor.u32 %v2082, %v2083
        %vm2085 = vcmp.lt.s32.totalorder %v2066, 1
        %vm2086 = vcmp.lt.s32.totalorder %v2066, 2
        %vm2087 = vcmp.lt.s32.totalorder %v2066, 3
        %vm2088 = vcmp.lt.s32.totalorder %v2066, 4
        %v2089 = vsel %vm2085, %v2069, %v2072
        %v2090 = vsel %vm2088, %v2078, 2102212464
        %v2091 = vsel %vm2087, %v2075, %v2090
        %v2092 = vsel %vm2086, %v2089, %v2091
        %v2093 = vsel %vm2085, %v2072, %v2075
        %v2094 = vsel %vm2088, %v2081, 920167782
        %v2095 = vsel %vm2087, %v2078, %v2094
        %v2096 = vsel %vm2086, %v2093, %v2095
        %v2097 = vsel %vm2085, %v2075, %v2078
        %v2098 = vsel %vm2088, %v2084, 1326507024
        %v2099 = vsel %vm2087, %v2081, %v2098
        %v2100 = vsel %vm2086, %v2097, %v2099
        %v2101 = vshll.u32 %v2061, 8
        %v2102 = vmul.u32.u64.compose %v2101, %v2100
        %v2103 = vextract.low.u32 %v2102
        %v2104 = vextract.high.u32 %v2102
        %v2105 = vmul.u32.u64.compose %v2101, %v2096
        %v2106 = vextract.low.u32 %v2105
        %v2107 = vextract.high.u32 %v2105
        %v2108 = vmul.u32 %v2101, %v2092
        %v2109 = vadd.s32 %v2104, %v2106
        %vm2110 = vc.u32 %v2104, %v2106
        %v2111 = vadd.s32 %v2107, 1
        %v2112 = vsel %vm2110, %v2111, %v2107
        %v2113 = vadd.s32 %v2108, %v2112
        %v2114 = vadd.s32 %v2113, 536870912
        %v2115 = vshrl.u32 %v2114, 30
        %v2116 = vshll.u32 %v2115, 30
        %v2117 = vsub.s32 %v2113, %v2116
        %vm2118 = vcmp.lt.s32.totalorder %v2117, 0
        %v2119 = vsub.s32 0, %v2117
        %v2120 = vsel %vm2118, %v2119, %v2117
        %v2121 = vclz %v2120
        %v2122 = vsub.s32 %v2121, 2
        %vm2123 = vcmp.gt.s32.totalorder 0, %v2122
        %v2124 = vsel %vm2123, 0, %v2122
        %v2125 = vsub.s32 32, %v2124
        %v2126 = vshll.u32 %v2117, %v2124
        %v2127 = vshrl.u32 %v2109, %v2125
        %v2128 = vor.u32 %v2126, %v2127
        %v2129 = vsub.s32 4294967266, %v2124
        %v2130 = vadd.s32 %v2129, 127
        %v2131 = vshll.u32 %v2130, 23
        %v2132 = vor.u32 4788187, %v2131
        %v2133 = vand.u32 2147483647, %v2132
        %v2135 = vcvt.s32.f32 %v2128
        %v2136 = vmul.f32 %v2135, %v2133
        %v2137 = vxor.u32 %v2136, 2147483648
        %v2138 = vsel %vm2055, %v2137, %v2136
        %v2139 = vsub.s32 4, %v2115
        %v2140 = vsel %vm2055, %v2139, %v2115
        %v2141 = vsel %vm2054, %v2052, %v2138
        %v2142 = vsel %vm2054, 0, %v2140
        %v2143 = vcosq.f32.pop %v2141
        %v2144 = vsinq.f32.pop %v2141
        %vm2145 = vweird.f32 %v2052
        %v2146 = vadd.s32 %v2142, 3
        %v2147 = vand.u32 %v2146, 3
        %vm2148 = vcmp.lt.s32.totalorder %v2147, 2
        %vm2149 = vcmp.eq.s32.totalorder %v2147, 0
        %v2150 = vxor.u32 %v2144, 2147483648
        %v2151 = vsel %vm2149, %v2143, %v2150
        %vm2152 = vcmp.eq.s32.totalorder %v2147, 2
        %v2153 = vxor.u32 %v2143, 2147483648
        %v2154 = vsel %vm2152, %v2153, %v2144
        %v2155 = vsel %vm2148, %v2151, %v2154
        %v2156 = vsel %vm2145, nan, %v2155
        %v2157 = vmul.f32 %v2156, %v2156
        %2159 = vset.pattern.permute.xlu0 0
        %2160 = vperm.xlu0 %2159, %v1998
        %v2161 = vpop.permute.xlu0 %2160
        %v2163 = vmul.f32 %v2161, %v2157
        %v2164 = vadd.f32 %v2039, %v2163
        %v2165 = vmul.f32 %v2050, %v2046
        %v2166 = vand.u32 2147483647, %v2165
        %vm2167 = vcmp.le.f32.partialorder %v2166, 0.7853982
        %vm2168 = vcmp.lt.s32.totalorder %v2165, 0
        %v2169 = vand.u32 %v2165, 2139095040
        %v2170 = vshrl.u32 %v2169, 23
        %v2171 = vsub.s32 %v2170, 127
        %v2172 = vand.u32 2147483647, %v2165
        %v2173 = vand.u32 %v2172, 8388607
        %v2174 = vor.u32 %v2173, 8388608
        %v2175 = vsub.s32 0, %v2174
        %v2176 = vadd.s32 %v2171, 1
        %vm2177 = vcmp.gt.s32.totalorder %v2176, 0
        %v2178 = vsel %vm2177, %v2176, 0
        %v2179 = vshrl.u32 %v2178, 5
        %v2180 = vand.u32 %v2178, 31
        %v2181 = vsub.s32 32, %v2180
        %v2182 = vshrl.u32 683565275, %v2181
        %v2183 = vshll.u32 683565275, %v2180
        %v2184 = vshrl.u32 2475754826, %v2181
        %v2185 = vor.u32 %v2183, %v2184
        %v2186 = vshll.u32 2475754826, %v2180
        %v2187 = vshrl.u32 2131351028, %v2181
        %v2188 = vor.u32 %v2186, %v2187
        %v2189 = vshll.u32 2131351028, %v2180
        %v2190 = vshrl.u32 2102212464, %v2181
        %v2191 = vor.u32 %v2189, %v2190
        %v2192 = vshll.u32 2102212464, %v2180
        %v2193 = vshrl.u32 920167782, %v2181
        %v2194 = vor.u32 %v2192, %v2193
        %v2195 = vshll.u32 920167782, %v2180
        %v2196 = vshrl.u32 1326507024, %v2181
        %v2197 = vor.u32 %v2195, %v2196
        %vm2198 = vcmp.lt.s32.totalorder %v2179, 1
        %vm2199 = vcmp.lt.s32.totalorder %v2179, 2
        %vm2200 = vcmp.lt.s32.totalorder %v2179, 3
        %vm2201 = vcmp.lt.s32.totalorder %v2179, 4
        %v2202 = vsel %vm2198, %v2182, %v2185
        %v2203 = vsel %vm2201, %v2191, 2102212464
        %v2204 = vsel %vm2200, %v2188, %v2203
        %v2205 = vsel %vm2199, %v2202, %v2204
        %v2206 = vsel %vm2198, %v2185, %v2188
        %v2207 = vsel %vm2201, %v2194, 920167782
        %v2208 = vsel %vm2200, %v2191, %v2207
        %v2209 = vsel %vm2199, %v2206, %v2208
        %v2210 = vsel %vm2198, %v2188, %v2191
        %v2211 = vsel %vm2201, %v2197, 1326507024
        %v2212 = vsel %vm2200, %v2194, %v2211
        %v2213 = vsel %vm2199, %v2210, %v2212
        %v2214 = vshll.u32 %v2174, 8
        %v2215 = vmul.u32.u64.compose %v2214, %v2213
        %v2216 = vextract.low.u32 %v2215
        %v2217 = vextract.high.u32 %v2215
        %v2218 = vmul.u32.u64.compose %v2214, %v2209
        %v2219 = vextract.low.u32 %v2218
        %v2220 = vextract.high.u32 %v2218
        %v2221 = vmul.u32 %v2214, %v2205
        %v2222 = vadd.s32 %v2217, %v2219
        %vm2223 = vc.u32 %v2217, %v2219
        %v2224 = vadd.s32 %v2220, 1
        %v2225 = vsel %vm2223, %v2224, %v2220
        %v2226 = vadd.s32 %v2221, %v2225
        %v2227 = vadd.s32 %v2226, 536870912
        %v2228 = vshrl.u32 %v2227, 30
        %v2229 = vshll.u32 %v2228, 30
        %v2230 = vsub.s32 %v2226, %v2229
        %vm2231 = vcmp.lt.s32.totalorder %v2230, 0
        %v2232 = vsub.s32 0, %v2230
        %v2233 = vsel %vm2231, %v2232, %v2230
        %v2234 = vclz %v2233
        %v2235 = vsub.s32 %v2234, 2
        %vm2236 = vcmp.gt.s32.totalorder 0, %v2235
        %v2237 = vsel %vm2236, 0, %v2235
        %v2238 = vsub.s32 32, %v2237
        %v2239 = vshll.u32 %v2230, %v2237
        %v2240 = vshrl.u32 %v2222, %v2238
        %v2241 = vor.u32 %v2239, %v2240
        %v2242 = vsub.s32 4294967266, %v2237
        %v2243 = vadd.s32 %v2242, 127
        %v2244 = vshll.u32 %v2243, 23
        %v2245 = vor.u32 4788187, %v2244
        %v2246 = vand.u32 2147483647, %v2245
        %v2248 = vcvt.s32.f32 %v2241
        %v2249 = vmul.f32 %v2248, %v2246
        %v2250 = vxor.u32 %v2249, 2147483648
        %v2251 = vsel %vm2168, %v2250, %v2249
        %v2252 = vsub.s32 4, %v2228
        %v2253 = vsel %vm2168, %v2252, %v2228
        %v2254 = vsel %vm2167, %v2165, %v2251
        %v2255 = vsel %vm2167, 0, %v2253
        %v2256 = vcosq.f32.pop %v2254
        %v2257 = vsinq.f32.pop %v2254
        %vm2258 = vweird.f32 %v2165
        %v2259 = vadd.s32 %v2255, 3
        %v2260 = vand.u32 %v2259, 3
        %vm2261 = vcmp.lt.s32.totalorder %v2260, 2
        %vm2262 = vcmp.eq.s32.totalorder %v2260, 0
        %v2263 = vxor.u32 %v2257, 2147483648
        %v2264 = vsel %vm2262, %v2256, %v2263
        %vm2265 = vcmp.eq.s32.totalorder %v2260, 2
        %v2266 = vxor.u32 %v2256, 2147483648
        %v2267 = vsel %vm2265, %v2266, %v2257
        %v2268 = vsel %vm2261, %v2264, %v2267
        %v2269 = vsel %vm2258, nan, %v2268
        %v2270 = vmul.f32 %v2269, %v2269
        %v2271 = vmul.f32 %v2161, %v2270
        %v2272 = vadd.f32 %v2046, %v2271
        %2273 = vrot.lane.b32.xlu0 %v2272, 3
        %v2274 = vpop.permute.xlu0 %2273
        %2276 = vset.pattern.permute.xlu0 0
        %2277 = vperm.xlu0 %2276, %v2164
        %v2278 = vpop.permute.xlu0 %2277
        %v2280 = vsel %vm284, %v2278, %v2274
        %v2281 = vmul.f32 %v2280, 0.0020289666
        %2282 = vrot.lane.b32.xlu0 %v2164, 2
        %v2283 = vpop.permute.xlu0 %2282
        %v2284 = vsel %vm294, %v2278, %v2283
        %v2285 = vmul.f32 %v2284, 0.009389464
        %v2286 = vadd.f32 %v2281, %v2285
        %2287 = vrot.lane.b32.xlu0 %v2272, 2
        %v2288 = vpop.permute.xlu0 %2287
        %v2289 = vsel %vm294, %v2278, %v2288
        %v2290 = vmul.f32 %v2289, -0.025543464
        %v2291 = vadd.f32 %v2286, %v2290
        %2292 = vrot.lane.b32.xlu0 %v2164, 1
        %v2293 = vpop.permute.xlu0 %2292
        %v2294 = vsel %vm301, %v2278, %v2293
        %v2295 = vmul.f32 %v2294, -0.057657376
        %v2296 = vadd.f32 %v2291, %v2295
        %2297 = vrot.lane.b32.xlu0 %v2272, 1
        %v2298 = vpop.permute.xlu0 %2297
        %v2299 = vsel %vm301, %v2278, %v2298
        %v2300 = vmul.f32 %v2299, 0.12857261
        %v2301 = vadd.f32 %v2296, %v2300
        %v2302 = vmul.f32 %v2164, 0.4432098
        %v2303 = vadd.f32 %v2301, %v2302
        %v2304 = vmul.f32 %v2272, 0.4432098
        %v2305 = vadd.f32 %v2303, %v2304
        %2306 = vrot.lane.b32.xlu0 %v2164, 127
        %v2307 = vpop.permute.xlu0 %2306
        %2309 = vset.pattern.permute.xlu0 127
        %2310 = vperm.xlu0 %2309, %v2272
        %v2311 = vpop.permute.xlu0 %2310
        %v2313 = vsel %vm312, %v2311, %v2307
        %v2314 = vmul.f32 %v2313, 0.12857261
        %v2315 = vadd.f32 %v2305, %v2314
        %2316 = vrot.lane.b32.xlu0 %v2272, 127
        %v2317 = vpop.permute.xlu0 %2316
        %v2318 = vsel %vm312, %v2311, %v2317
        %v2319 = vmul.f32 %v2318, -0.057657376
        %v2320 = vadd.f32 %v2315, %v2319
        %2321 = vrot.lane.b32.xlu0 %v2164, 126
        %v2322 = vpop.permute.xlu0 %2321
        %v2323 = vsel %vm324, %v2311, %v2322
        %v2324 = vmul.f32 %v2323, -0.025543464
        %v2325 = vadd.f32 %v2320, %v2324
        %2326 = vrot.lane.b32.xlu0 %v2272, 126
        %v2327 = vpop.permute.xlu0 %2326
        %v2328 = vsel %vm324, %v2311, %v2327
        %v2329 = vmul.f32 %v2328, 0.009389464
        %v2330 = vadd.f32 %v2325, %v2329
        %2331 = vrot.lane.b32.xlu0 %v2164, 125
        %v2332 = vpop.permute.xlu0 %2331
        %v2333 = vsel %vm332, %v2311, %v2332
        %v2334 = vmul.f32 %v2333, 0.0020289666
        %v2335 = vadd.f32 %v2330, %v2334
        %s2336 = scalar_lea.vmem %s1, 24
        %v2337 = vld [vmem:[%s2336] sm:$0xf]
        %v2338 = vld [vmem:[%s2336 + $0x4] sm:$0xf]
        %v2339 = vld [vmem:[%s2336 + $0x8] sm:$0xf]
        %s2340 = scalar_lea.vmem %s2, 16
        %v2341 = vld [vmem:[%s2340] sm:$0xff]
        %v2342 = vpack.c.bf16 %v2335, %v2335
        %v2346 = vunpack.c.l.b16 %v2337
        %v2347 = vunpack.c.l.b16 %v2338
        %v2348 = vunpack.c.l.b16 %v2339
        %v2349 = vpack.c.b16 %v2347, %v2346
        %v2350 = vpack.c.b16 %v2348, %v2348
        %v2352 = vsel %vm638, %v2349, 0
        %v2355 = vsel %vm638, %v2350, 0
        %v2358 = vsel %vm645, %v2342, 0
        %2360 = vmatprep.subr.bf16.mxu0 0
        %2361 = vmatpush1.bf16.msra.mxu0 0
        %2362 = vmatprep.subr.bf16.mxu0 0
        %2363 = vmatpush1.bf16.msra.mxu0 0
        %2364 = vmatprep.subr.bf16.mxu0 0
        %2365 = vmatpush1.bf16.msra.mxu0 0
        %2366 = vmatprep.subr.bf16.mxu0 0
        %2367 = vmatpush1.bf16.msra.mxu0 0
        %2368 = vmatprep.subr.bf16.mxu0 0
        %2369 = vmatpush1.bf16.msra.mxu0 0
        %2370 = vmatprep.subr.bf16.mxu0 0
        %2371 = vmatpush1.bf16.msra.mxu0 0
        %2372 = vmatprep.subr.bf16.mxu0 0
        %2373 = vmatpush1.bf16.msra.mxu0 0
        %2374 = vmatprep.subr.bf16.mxu0 0
        %2375 = vmatpush1.bf16.msra.mxu0 %v2358
        %2376 = vmatprep.subr.bf16.mxu0 0
        %2377 = vmatpush2.bf16.msra.mxu0 0
        %2378 = vmatprep.subr.bf16.mxu0 0
        %2379 = vmatpush2.bf16.msra.mxu0 0
        %2380 = vmatprep.subr.bf16.mxu0 0
        %2381 = vmatpush2.bf16.msra.mxu0 0
        %2382 = vmatprep.subr.bf16.mxu0 0
        %2383 = vmatpush2.bf16.msra.mxu0 0
        %2384 = vmatprep.subr.bf16.mxu0 0
        %2385 = vmatpush2.bf16.msra.mxu0 0
        %2386 = vmatprep.subr.bf16.mxu0 0
        %2387 = vmatpush2.bf16.msra.mxu0 0
        %2388 = vmatprep.subr.bf16.mxu0 0
        %2389 = vmatpush2.bf16.msra.mxu0 0
        %2390 = vmatprep.subr.bf16.mxu0 0
        %2391 = vmatpush2.bf16.msra.mxu0 0
        %2392 = vmatprep.mubr.bf16.mxu0 0
        %2393 = vmatmul.mubr.bf16.gmra.mxu0 %v2352
        %v2394 = vpop.f32.mrf.mxu0
        %v2395 = vadd.f32 0.0, %v2394
        %v2396 = vpop.f32.mrf.mxu0
        %v2397 = vpop.f32.mrf.mxu0
        %v2398 = vadd.f32 0.0, %v2397
        %v2399 = vpop.f32.mrf.mxu0
        %2400 = vmatprep.mubr.bf16.mxu0 0
        %2401 = vmatmul.mubr.bf16.gmra.mxu0 %v2355
        %v2402 = vpop.f32.mrf.mxu0
        %v2403 = vadd.f32 0.0, %v2402
        %v2404 = vpop.f32.mrf.mxu0
        %v2405 = vpop.f32.mrf.mxu0
        %v2406 = vpop.f32.mrf.mxu0
        %2407 = vdwg.mxu0
        %2408 = vrot.lane.b32.xlu0 %v2395, 5
        %v2409 = vpop.permute.xlu0 %2408
        %vm2410 = vcmp.lt.s32.totalorder %v277, 5
        %v2411 = vsel %vm2410, 0.0, %v2409
        %v2412 = vadd.f32 %v2411, %v2398
        %2413 = vrot.lane.b32.xlu0 %v2403, 123
        %v2414 = vpop.permute.xlu0 %2413
        %vm2415 = vcmp.ge.s32.totalorder %v277, 123
        %v2416 = vsel %vm2415, 0.0, %v2414
        %v2417 = vadd.f32 %v2412, %v2416
        %2419 = vset.pattern.permute.xlu0 0
        %2420 = vperm.xlu0 %2419, %v2341
        %v2421 = vpop.permute.xlu0 %2420
        %v2423 = vadd.f32 %v2417, %v2421
        %s2424 = scalar_lea.vmem %s6, 16
        %v2425 = vld [vmem:[%s2424] sm:$0xff]
        %v2426 = vadd.f32 %v2425, 1e-09
        %v2427 = vrcp.pop %v2426
        %v2428 = vmul.f32 1.0, %v2427
        %2429 = vrot.lane.b32.xlu0 %v2423, 3
        %v2430 = vpop.permute.xlu0 %2429
        %2432 = vset.pattern.permute.xlu0 0
        %2433 = vperm.xlu0 %2432, %v2423
        %v2434 = vpop.permute.xlu0 %2433
        %v2436 = vsel %vm284, %v2434, %v2430
        %v2437 = vmul.f32 %v2436, 0.004057933
        %2438 = vrot.lane.b32.xlu0 %v2423, 2
        %v2439 = vpop.permute.xlu0 %2438
        %v2440 = vsel %vm294, %v2434, %v2439
        %v2441 = vmul.f32 %v2440, -0.05108693
        %v2442 = vadd.f32 %v2437, %v2441
        %v2443 = vmul.f32 %v2440, 0.018778928
        %2444 = vrot.lane.b32.xlu0 %v2423, 1
        %v2445 = vpop.permute.xlu0 %2444
        %v2446 = vsel %vm301, %v2434, %v2445
        %v2447 = vmul.f32 %v2446, 0.25714523
        %v2448 = vadd.f32 %v2442, %v2447
        %v2449 = vmul.f32 %v2446, -0.11531475
        %v2450 = vadd.f32 %v2443, %v2449
        %v2451 = vmul.f32 %v2423, 0.8864196
        %v2452 = vadd.f32 %v2448, %v2451
        %v2453 = vadd.f32 %v2450, %v2451
        %2454 = vrot.lane.b32.xlu0 %v2423, 127
        %v2455 = vpop.permute.xlu0 %2454
        %2456 = vset.pattern.permute.xlu0 127
        %2457 = vperm.xlu0 %2456, %v2423
        %v2458 = vpop.permute.xlu0 %2457
        %v2460 = vsel %vm312, %v2458, %v2455
        %v2461 = vmul.f32 %v2460, -0.11531475
        %v2462 = vadd.f32 %v2452, %v2461
        %v2463 = vmul.f32 %v2460, 0.25714523
        %v2464 = vadd.f32 %v2453, %v2463
        %2465 = vrot.lane.b32.xlu0 %v2423, 126
        %v2466 = vpop.permute.xlu0 %2465
        %v2467 = vsel %vm324, %v2458, %v2466
        %v2468 = vmul.f32 %v2467, 0.018778928
        %v2469 = vadd.f32 %v2462, %v2468
        %v2470 = vmul.f32 %v2467, -0.05108693
        %v2471 = vadd.f32 %v2464, %v2470
        %2472 = vrot.lane.b32.xlu0 %v2423, 125
        %v2473 = vpop.permute.xlu0 %2472
        %v2474 = vsel %vm332, %v2458, %v2473
        %v2475 = vmul.f32 %v2474, 0.004057933
        %v2476 = vadd.f32 %v2471, %v2475
        %2478 = vset.pattern.permute.xlu0 0
        %2479 = vperm.xlu0 %2478, %v2425
        %v2480 = vpop.permute.xlu0 %2479
        %v2482 = vmul.f32 %v2480, %v2469
        %v2483 = vand.u32 2147483647, %v2482
        %vm2484 = vcmp.le.f32.partialorder %v2483, 0.7853982
        %vm2485 = vcmp.lt.s32.totalorder %v2482, 0
        %v2486 = vand.u32 %v2482, 2139095040
        %v2487 = vshrl.u32 %v2486, 23
        %v2488 = vsub.s32 %v2487, 127
        %v2489 = vand.u32 2147483647, %v2482
        %v2490 = vand.u32 %v2489, 8388607
        %v2491 = vor.u32 %v2490, 8388608
        %v2492 = vsub.s32 0, %v2491
        %v2493 = vadd.s32 %v2488, 1
        %vm2494 = vcmp.gt.s32.totalorder %v2493, 0
        %v2495 = vsel %vm2494, %v2493, 0
        %v2496 = vshrl.u32 %v2495, 5
        %v2497 = vand.u32 %v2495, 31
        %v2498 = vsub.s32 32, %v2497
        %v2499 = vshrl.u32 683565275, %v2498
        %v2500 = vshll.u32 683565275, %v2497
        %v2501 = vshrl.u32 2475754826, %v2498
        %v2502 = vor.u32 %v2500, %v2501
        %v2503 = vshll.u32 2475754826, %v2497
        %v2504 = vshrl.u32 2131351028, %v2498
        %v2505 = vor.u32 %v2503, %v2504
        %v2506 = vshll.u32 2131351028, %v2497
        %v2507 = vshrl.u32 2102212464, %v2498
        %v2508 = vor.u32 %v2506, %v2507
        %v2509 = vshll.u32 2102212464, %v2497
        %v2510 = vshrl.u32 920167782, %v2498
        %v2511 = vor.u32 %v2509, %v2510
        %v2512 = vshll.u32 920167782, %v2497
        %v2513 = vshrl.u32 1326507024, %v2498
        %v2514 = vor.u32 %v2512, %v2513
        %vm2515 = vcmp.lt.s32.totalorder %v2496, 1
        %vm2516 = vcmp.lt.s32.totalorder %v2496, 2
        %vm2517 = vcmp.lt.s32.totalorder %v2496, 3
        %vm2518 = vcmp.lt.s32.totalorder %v2496, 4
        %v2519 = vsel %vm2515, %v2499, %v2502
        %v2520 = vsel %vm2518, %v2508, 2102212464
        %v2521 = vsel %vm2517, %v2505, %v2520
        %v2522 = vsel %vm2516, %v2519, %v2521
        %v2523 = vsel %vm2515, %v2502, %v2505
        %v2524 = vsel %vm2518, %v2511, 920167782
        %v2525 = vsel %vm2517, %v2508, %v2524
        %v2526 = vsel %vm2516, %v2523, %v2525
        %v2527 = vsel %vm2515, %v2505, %v2508
        %v2528 = vsel %vm2518, %v2514, 1326507024
        %v2529 = vsel %vm2517, %v2511, %v2528
        %v2530 = vsel %vm2516, %v2527, %v2529
        %v2531 = vshll.u32 %v2491, 8
        %v2532 = vmul.u32.u64.compose %v2531, %v2530
        %v2533 = vextract.low.u32 %v2532
        %v2534 = vextract.high.u32 %v2532
        %v2535 = vmul.u32.u64.compose %v2531, %v2526
        %v2536 = vextract.low.u32 %v2535
        %v2537 = vextract.high.u32 %v2535
        %v2538 = vmul.u32 %v2531, %v2522
        %v2539 = vadd.s32 %v2534, %v2536
        %vm2540 = vc.u32 %v2534, %v2536
        %v2541 = vadd.s32 %v2537, 1
        %v2542 = vsel %vm2540, %v2541, %v2537
        %v2543 = vadd.s32 %v2538, %v2542
        %v2544 = vadd.s32 %v2543, 536870912
        %v2545 = vshrl.u32 %v2544, 30
        %v2546 = vshll.u32 %v2545, 30
        %v2547 = vsub.s32 %v2543, %v2546
        %vm2548 = vcmp.lt.s32.totalorder %v2547, 0
        %v2549 = vsub.s32 0, %v2547
        %v2550 = vsel %vm2548, %v2549, %v2547
        %v2551 = vclz %v2550
        %v2552 = vsub.s32 %v2551, 2
        %vm2553 = vcmp.gt.s32.totalorder 0, %v2552
        %v2554 = vsel %vm2553, 0, %v2552
        %v2555 = vsub.s32 32, %v2554
        %v2556 = vshll.u32 %v2547, %v2554
        %v2557 = vshrl.u32 %v2539, %v2555
        %v2558 = vor.u32 %v2556, %v2557
        %v2559 = vsub.s32 4294967266, %v2554
        %v2560 = vadd.s32 %v2559, 127
        %v2561 = vshll.u32 %v2560, 23
        %v2562 = vor.u32 4788187, %v2561
        %v2563 = vand.u32 2147483647, %v2562
        %v2565 = vcvt.s32.f32 %v2558
        %v2566 = vmul.f32 %v2565, %v2563
        %v2567 = vxor.u32 %v2566, 2147483648
        %v2568 = vsel %vm2485, %v2567, %v2566
        %v2569 = vsub.s32 4, %v2545
        %v2570 = vsel %vm2485, %v2569, %v2545
        %v2571 = vsel %vm2484, %v2482, %v2568
        %v2572 = vsel %vm2484, 0, %v2570
        %v2573 = vcosq.f32.pop %v2571
        %v2574 = vsinq.f32.pop %v2571
        %vm2575 = vweird.f32 %v2482
        %v2576 = vadd.s32 %v2572, 3
        %v2577 = vand.u32 %v2576, 3
        %vm2578 = vcmp.lt.s32.totalorder %v2577, 2
        %vm2579 = vcmp.eq.s32.totalorder %v2577, 0
        %v2580 = vxor.u32 %v2574, 2147483648
        %v2581 = vsel %vm2579, %v2573, %v2580
        %vm2582 = vcmp.eq.s32.totalorder %v2577, 2
        %v2583 = vxor.u32 %v2573, 2147483648
        %v2584 = vsel %vm2582, %v2583, %v2574
        %v2585 = vsel %vm2578, %v2581, %v2584
        %v2586 = vsel %vm2575, nan, %v2585
        %v2587 = vmul.f32 %v2586, %v2586
        %2589 = vset.pattern.permute.xlu0 0
        %2590 = vperm.xlu0 %2589, %v2428
        %v2591 = vpop.permute.xlu0 %2590
        %v2593 = vmul.f32 %v2591, %v2587
        %v2594 = vadd.f32 %v2469, %v2593
        %v2595 = vmul.f32 %v2480, %v2476
        %v2596 = vand.u32 2147483647, %v2595
        %vm2597 = vcmp.le.f32.partialorder %v2596, 0.7853982
        %vm2598 = vcmp.lt.s32.totalorder %v2595, 0
        %v2599 = vand.u32 %v2595, 2139095040
        %v2600 = vshrl.u32 %v2599, 23
        %v2601 = vsub.s32 %v2600, 127
        %v2602 = vand.u32 2147483647, %v2595
        %v2603 = vand.u32 %v2602, 8388607
        %v2604 = vor.u32 %v2603, 8388608
        %v2605 = vsub.s32 0, %v2604
        %v2606 = vadd.s32 %v2601, 1
        %vm2607 = vcmp.gt.s32.totalorder %v2606, 0
        %v2608 = vsel %vm2607, %v2606, 0
        %v2609 = vshrl.u32 %v2608, 5
        %v2610 = vand.u32 %v2608, 31
        %v2611 = vsub.s32 32, %v2610
        %v2612 = vshrl.u32 683565275, %v2611
        %v2613 = vshll.u32 683565275, %v2610
        %v2614 = vshrl.u32 2475754826, %v2611
        %v2615 = vor.u32 %v2613, %v2614
        %v2616 = vshll.u32 2475754826, %v2610
        %v2617 = vshrl.u32 2131351028, %v2611
        %v2618 = vor.u32 %v2616, %v2617
        %v2619 = vshll.u32 2131351028, %v2610
        %v2620 = vshrl.u32 2102212464, %v2611
        %v2621 = vor.u32 %v2619, %v2620
        %v2622 = vshll.u32 2102212464, %v2610
        %v2623 = vshrl.u32 920167782, %v2611
        %v2624 = vor.u32 %v2622, %v2623
        %v2625 = vshll.u32 920167782, %v2610
        %v2626 = vshrl.u32 1326507024, %v2611
        %v2627 = vor.u32 %v2625, %v2626
        %vm2628 = vcmp.lt.s32.totalorder %v2609, 1
        %vm2629 = vcmp.lt.s32.totalorder %v2609, 2
        %vm2630 = vcmp.lt.s32.totalorder %v2609, 3
        %vm2631 = vcmp.lt.s32.totalorder %v2609, 4
        %v2632 = vsel %vm2628, %v2612, %v2615
        %v2633 = vsel %vm2631, %v2621, 2102212464
        %v2634 = vsel %vm2630, %v2618, %v2633
        %v2635 = vsel %vm2629, %v2632, %v2634
        %v2636 = vsel %vm2628, %v2615, %v2618
        %v2637 = vsel %vm2631, %v2624, 920167782
        %v2638 = vsel %vm2630, %v2621, %v2637
        %v2639 = vsel %vm2629, %v2636, %v2638
        %v2640 = vsel %vm2628, %v2618, %v2621
        %v2641 = vsel %vm2631, %v2627, 1326507024
        %v2642 = vsel %vm2630, %v2624, %v2641
        %v2643 = vsel %vm2629, %v2640, %v2642
        %v2644 = vshll.u32 %v2604, 8
        %v2645 = vmul.u32.u64.compose %v2644, %v2643
        %v2646 = vextract.low.u32 %v2645
        %v2647 = vextract.high.u32 %v2645
        %v2648 = vmul.u32.u64.compose %v2644, %v2639
        %v2649 = vextract.low.u32 %v2648
        %v2650 = vextract.high.u32 %v2648
        %v2651 = vmul.u32 %v2644, %v2635
        %v2652 = vadd.s32 %v2647, %v2649
        %vm2653 = vc.u32 %v2647, %v2649
        %v2654 = vadd.s32 %v2650, 1
        %v2655 = vsel %vm2653, %v2654, %v2650
        %v2656 = vadd.s32 %v2651, %v2655
        %v2657 = vadd.s32 %v2656, 536870912
        %v2658 = vshrl.u32 %v2657, 30
        %v2659 = vshll.u32 %v2658, 30
        %v2660 = vsub.s32 %v2656, %v2659
        %vm2661 = vcmp.lt.s32.totalorder %v2660, 0
        %v2662 = vsub.s32 0, %v2660
        %v2663 = vsel %vm2661, %v2662, %v2660
        %v2664 = vclz %v2663
        %v2665 = vsub.s32 %v2664, 2
        %vm2666 = vcmp.gt.s32.totalorder 0, %v2665
        %v2667 = vsel %vm2666, 0, %v2665
        %v2668 = vsub.s32 32, %v2667
        %v2669 = vshll.u32 %v2660, %v2667
        %v2670 = vshrl.u32 %v2652, %v2668
        %v2671 = vor.u32 %v2669, %v2670
        %v2672 = vsub.s32 4294967266, %v2667
        %v2673 = vadd.s32 %v2672, 127
        %v2674 = vshll.u32 %v2673, 23
        %v2675 = vor.u32 4788187, %v2674
        %v2676 = vand.u32 2147483647, %v2675
        %v2678 = vcvt.s32.f32 %v2671
        %v2679 = vmul.f32 %v2678, %v2676
        %v2680 = vxor.u32 %v2679, 2147483648
        %v2681 = vsel %vm2598, %v2680, %v2679
        %v2682 = vsub.s32 4, %v2658
        %v2683 = vsel %vm2598, %v2682, %v2658
        %v2684 = vsel %vm2597, %v2595, %v2681
        %v2685 = vsel %vm2597, 0, %v2683
        %v2686 = vcosq.f32.pop %v2684
        %v2687 = vsinq.f32.pop %v2684
        %vm2688 = vweird.f32 %v2595
        %v2689 = vadd.s32 %v2685, 3
        %v2690 = vand.u32 %v2689, 3
        %vm2691 = vcmp.lt.s32.totalorder %v2690, 2
        %vm2692 = vcmp.eq.s32.totalorder %v2690, 0
        %v2693 = vxor.u32 %v2687, 2147483648
        %v2694 = vsel %vm2692, %v2686, %v2693
        %vm2695 = vcmp.eq.s32.totalorder %v2690, 2
        %v2696 = vxor.u32 %v2686, 2147483648
        %v2697 = vsel %vm2695, %v2696, %v2687
        %v2698 = vsel %vm2691, %v2694, %v2697
        %v2699 = vsel %vm2688, nan, %v2698
        %v2700 = vmul.f32 %v2699, %v2699
        %v2701 = vmul.f32 %v2591, %v2700
        %v2702 = vadd.f32 %v2476, %v2701
        %2703 = vrot.lane.b32.xlu0 %v2702, 3
        %v2704 = vpop.permute.xlu0 %2703
        %2706 = vset.pattern.permute.xlu0 0
        %2707 = vperm.xlu0 %2706, %v2594
        %v2708 = vpop.permute.xlu0 %2707
        %v2710 = vsel %vm284, %v2708, %v2704
        %v2711 = vmul.f32 %v2710, 0.0020289666
        %2712 = vrot.lane.b32.xlu0 %v2594, 2
        %v2713 = vpop.permute.xlu0 %2712
        %v2714 = vsel %vm294, %v2708, %v2713
        %v2715 = vmul.f32 %v2714, 0.009389464
        %v2716 = vadd.f32 %v2711, %v2715
        %2717 = vrot.lane.b32.xlu0 %v2702, 2
        %v2718 = vpop.permute.xlu0 %2717
        %v2719 = vsel %vm294, %v2708, %v2718
        %v2720 = vmul.f32 %v2719, -0.025543464
        %v2721 = vadd.f32 %v2716, %v2720
        %2722 = vrot.lane.b32.xlu0 %v2594, 1
        %v2723 = vpop.permute.xlu0 %2722
        %v2724 = vsel %vm301, %v2708, %v2723
        %v2725 = vmul.f32 %v2724, -0.057657376
        %v2726 = vadd.f32 %v2721, %v2725
        %2727 = vrot.lane.b32.xlu0 %v2702, 1
        %v2728 = vpop.permute.xlu0 %2727
        %v2729 = vsel %vm301, %v2708, %v2728
        %v2730 = vmul.f32 %v2729, 0.12857261
        %v2731 = vadd.f32 %v2726, %v2730
        %v2732 = vmul.f32 %v2594, 0.4432098
        %v2733 = vadd.f32 %v2731, %v2732
        %v2734 = vmul.f32 %v2702, 0.4432098
        %v2735 = vadd.f32 %v2733, %v2734
        %2736 = vrot.lane.b32.xlu0 %v2594, 127
        %v2737 = vpop.permute.xlu0 %2736
        %2739 = vset.pattern.permute.xlu0 127
        %2740 = vperm.xlu0 %2739, %v2702
        %v2741 = vpop.permute.xlu0 %2740
        %v2743 = vsel %vm312, %v2741, %v2737
        %v2744 = vmul.f32 %v2743, 0.12857261
        %v2745 = vadd.f32 %v2735, %v2744
        %2746 = vrot.lane.b32.xlu0 %v2702, 127
        %v2747 = vpop.permute.xlu0 %2746
        %v2748 = vsel %vm312, %v2741, %v2747
        %v2749 = vmul.f32 %v2748, -0.057657376
        %v2750 = vadd.f32 %v2745, %v2749
        %2751 = vrot.lane.b32.xlu0 %v2594, 126
        %v2752 = vpop.permute.xlu0 %2751
        %v2753 = vsel %vm324, %v2741, %v2752
        %v2754 = vmul.f32 %v2753, -0.025543464
        %v2755 = vadd.f32 %v2750, %v2754
        %2756 = vrot.lane.b32.xlu0 %v2702, 126
        %v2757 = vpop.permute.xlu0 %2756
        %v2758 = vsel %vm324, %v2741, %v2757
        %v2759 = vmul.f32 %v2758, 0.009389464
        %v2760 = vadd.f32 %v2755, %v2759
        %2761 = vrot.lane.b32.xlu0 %v2594, 125
        %v2762 = vpop.permute.xlu0 %2761
        %v2763 = vsel %vm332, %v2741, %v2762
        %v2764 = vmul.f32 %v2763, 0.0020289666
        %v2765 = vadd.f32 %v2760, %v2764
        %s2766 = scalar_lea.vmem %s3, 24
        %v2767 = vld [vmem:[%s2766] sm:$0xf]
        %v2768 = vld [vmem:[%s2766 + $0x4] sm:$0xf]
        %v2769 = vld [vmem:[%s2766 + $0x8] sm:$0xf]
        %s2770 = scalar_lea.vmem %s4, 16
        %v2771 = vld [vmem:[%s2770] sm:$0xff]
        %v2772 = vpack.c.bf16 %v2765, %v2765
        %v2776 = vunpack.c.l.b16 %v2767
        %v2777 = vunpack.c.l.b16 %v2768
        %v2778 = vunpack.c.l.b16 %v2769
        %v2779 = vpack.c.b16 %v2777, %v2776
        %v2780 = vpack.c.b16 %v2778, %v2778
        %v2782 = vsel %vm638, %v2779, 0
        %v2785 = vsel %vm638, %v2780, 0
        %v2788 = vsel %vm645, %v2772, 0
        %2790 = vmatprep.subr.bf16.mxu0 0
        %2791 = vmatpush1.bf16.msra.mxu0 0
        %2792 = vmatprep.subr.bf16.mxu0 0
        %2793 = vmatpush1.bf16.msra.mxu0 0
        %2794 = vmatprep.subr.bf16.mxu0 0
        %2795 = vmatpush1.bf16.msra.mxu0 0
        %2796 = vmatprep.subr.bf16.mxu0 0
        %2797 = vmatpush1.bf16.msra.mxu0 0
        %2798 = vmatprep.subr.bf16.mxu0 0
        %2799 = vmatpush1.bf16.msra.mxu0 0
        %2800 = vmatprep.subr.bf16.mxu0 0
        %2801 = vmatpush1.bf16.msra.mxu0 0
        %2802 = vmatprep.subr.bf16.mxu0 0
        %2803 = vmatpush1.bf16.msra.mxu0 0
        %2804 = vmatprep.subr.bf16.mxu0 0
        %2805 = vmatpush1.bf16.msra.mxu0 %v2788
        %2806 = vmatprep.subr.bf16.mxu0 0
        %2807 = vmatpush2.bf16.msra.mxu0 0
        %2808 = vmatprep.subr.bf16.mxu0 0
        %2809 = vmatpush2.bf16.msra.mxu0 0
        %2810 = vmatprep.subr.bf16.mxu0 0
        %2811 = vmatpush2.bf16.msra.mxu0 0
        %2812 = vmatprep.subr.bf16.mxu0 0
        %2813 = vmatpush2.bf16.msra.mxu0 0
        %2814 = vmatprep.subr.bf16.mxu0 0
        %2815 = vmatpush2.bf16.msra.mxu0 0
        %2816 = vmatprep.subr.bf16.mxu0 0
        %2817 = vmatpush2.bf16.msra.mxu0 0
        %2818 = vmatprep.subr.bf16.mxu0 0
        %2819 = vmatpush2.bf16.msra.mxu0 0
        %2820 = vmatprep.subr.bf16.mxu0 0
        %2821 = vmatpush2.bf16.msra.mxu0 0
        %2822 = vmatprep.mubr.bf16.mxu0 0
        %2823 = vmatmul.mubr.bf16.gmra.mxu0 %v2782
        %v2824 = vpop.f32.mrf.mxu0
        %v2825 = vadd.f32 0.0, %v2824
        %v2826 = vpop.f32.mrf.mxu0
        %v2827 = vpop.f32.mrf.mxu0
        %v2828 = vadd.f32 0.0, %v2827
        %v2829 = vpop.f32.mrf.mxu0
        %2830 = vmatprep.mubr.bf16.mxu0 0
        %2831 = vmatmul.mubr.bf16.gmra.mxu0 %v2785
        %v2832 = vpop.f32.mrf.mxu0
        %v2833 = vadd.f32 0.0, %v2832
        %v2834 = vpop.f32.mrf.mxu0
        %v2835 = vpop.f32.mrf.mxu0
        %v2836 = vpop.f32.mrf.mxu0
        %2837 = vdwg.mxu0
        %2838 = vrot.lane.b32.xlu0 %v2825, 1
        %v2839 = vpop.permute.xlu0 %2838
        %v2840 = vsel %vm301, 0.0, %v2839
        %v2841 = vadd.f32 %v2840, %v2828
        %2842 = vrot.lane.b32.xlu0 %v2833, 127
        %v2843 = vpop.permute.xlu0 %2842
        %v2844 = vsel %vm312, 0.0, %v2843
        %v2845 = vadd.f32 %v2841, %v2844
        %2847 = vset.pattern.permute.xlu0 0
        %2848 = vperm.xlu0 %2847, %v2771
        %v2849 = vpop.permute.xlu0 %2848
        %v2851 = vadd.f32 %v2845, %v2849
        %v2852 = vadd.f32 %v2851, %v1993
        %2853 = vst [vmem:[%s269] sm:$0xff] %v2852
        %s2854 = sand.u32 %s181, 1
        %s2855 = scalar_lea.sflag [#allocation3], %s2854
        %s2856 = sand.u32 %s181, 1
        %s2857 = smul.addr %s2856, 8
        %s2858 = scalar_lea.vmem [#allocation2], %s2857
        // Predicated region
        $region49: #{amp_block1_forward.1} parent=47 // pred_check
          %p2859 = pneg %p191
        $region50: #{amp_block1_forward.1} parent=47 // pred_check_branch
          %2861 = sbr.rel (%p2859) target = $region52
        $region51: #{amp_block1_forward.1} parent=47 // pred_region
          %s2863 = ssub.s32 128, 128
          %2864 = vsyncadd %s2855, %s2863
          %s2865 = smul.addr %s21, 128
          %s2866 = scalar_lea.hbm %s7, %s2865
          %s2868 = sshll.u32 %s2858, 4
          %s2869 = int_to_ptr.vmem [resolvable:$true] %s2868
          %2871 = dma.vmem_to_hbm [thread:$0]  %s2869, 128, %s2866, %s2855
        $region52: #{amp_block1_forward.1} parent=47 // pred_fallthru
          _
      $region48: #{amp_block1_forward.1} parent=5 // pred_fallthru
        _
      %p2872 = scmp.le.s32.totalorder 2, %s16
      // Predicated region
      $region53: #{amp_block1_forward.1} parent=5 // pred_check
        %p2873 = pneg %p2872
      $region54: #{amp_block1_forward.1} parent=5 // pred_check_branch
        %2875 = sbr.rel (%p2873) target = $region56
      $region55: #{amp_block1_forward.1} parent=5 // pred_region
        %s2876 = ssub.s32 %s16, 2
        // Predicated region
        $region57: #{amp_block1_forward.1} parent=55 // pred_check
          %p2877 = pneg %p197
        $region58: #{amp_block1_forward.1} parent=55 // pred_check_branch
          %2879 = sbr.rel (%p2877) target = $region60
        $region59: #{amp_block1_forward.1} parent=55 // pred_region
          %s2880 = sand.u32 %s182, 1
          %s2881 = scalar_lea.sflag [#allocation3], %s2880
          %s2882 = sand.u32 %s182, 1
          %s2883 = smul.addr %s2882, 8
          %s2884 = scalar_lea.vmem [#allocation2], %s2883
          %2885 = dma.done %s2881, 128
        $region60: #{amp_block1_forward.1} parent=55 // pred_fallthru
          _
      $region56: #{amp_block1_forward.1} parent=5 // pred_fallthru
        _
    $region6: #{amp_block1_forward.1} parent=1 // loop_footer
      %s20 = sadd.s32 1, %s16
    $region7: #{amp_block1_forward.1} parent=1 // loop_footer_branch
      %15 = sbr.rel target = $region3
    $region8: #{amp_block1_forward.1} parent=1 // loop_exit
      _
    %2886 = vsyncpa [#allocation3], 1
    %s2887 = scalar_lea.sflag [#allocation3], 1
    %2888 = vsyncpa %s2887, 1

</llo_original>
